<compile_context>
chip_gen: v5e
topology: v5e:2x2
jax: 0.10.0
libtpu: 0.0.40
codegen_flags: <defaults>
</compile_context>

<pallas_src>
import functools

import numpy as np

import jax
import jax.numpy as jnp
from jax import lax
from jax.experimental import pallas as pl
from jax.experimental.pallas import tpu as pltpu

# MXU operand dtype (accumulation stays f32). Set to jnp.float32 for exact-f32 math.
MATMUL_DTYPE = jnp.bfloat16


def _encoder_lstm_kernel(x_ref, *refs, n_layers, seq_len, batch, hid_dim):
    """Whole multi-layer LSTM recurrence in one kernel invocation.

    x_ref      : (S*B, E)    bf16  embedded (and dropout'd) inputs, time-major rows
    per layer  : w_ih (4, Din, H) bf16, w_hh (4, H, H) bf16, bias (4, 1, H) f32
    outputs    : hidden (L, B, H) f32, cell (L, B, H) f32
    scratch    : gx (4, S*B, H) f32 (hoisted input projection, gate-major)
                 seq (S*B, H)   f32 (inter-layer hidden sequence)
    """
    layer_refs = refs[: 3 * n_layers]
    hidden_ref = refs[3 * n_layers]
    cell_ref = refs[3 * n_layers + 1]
    gx_ref = refs[3 * n_layers + 2]
    seq_ref = refs[3 * n_layers + 3]

    S, B, H = seq_len, batch, hid_dim

    for layer in range(n_layers):
        w_ih_ref = layer_refs[3 * layer]        # (4, Din, H) bf16
        w_hh_ref = layer_refs[3 * layer + 1]    # (4, H, H)   bf16
        b_ref = layer_refs[3 * layer + 2]       # (4, 1, H)   f32

        # Layer input: embedded tokens for layer 0, previous layer's VMEM-resident
        # hidden sequence otherwise (narrowed only as an MXU operand).
        if layer == 0:
            xin = x_ref[...]                                   # (S*B, E) bf16
        else:
            xin = seq_ref[...].astype(MATMUL_DTYPE)            # (S*B, H) bf16

        # Hoisted input projection for the whole sequence (off the serial critical
        # path): one (S*B, Din) x (Din, H) matmul per gate, bias folded in.
        for k in range(4):
            gx_ref[k] = (
                jnp.dot(xin, w_ih_ref[k], preferred_element_type=jnp.float32)
                + b_ref[k]
            )

        # Loop-invariant recurrent weights: loaded from VMEM once, reused each step.
        w_hh = w_hh_ref[...]                                   # (4, H, H) bf16
        write_seq = layer < n_layers - 1                       # last layer: unused

        def step(t, carry, w_hh=w_hh, write_seq=write_seq):
            h_prev, c_prev = carry                             # f32 (B, H)
            h_mm = h_prev.astype(w_hh.dtype)                   # narrow MXU operand only
            row = pl.multiple_of(t * B, B)

            def gate(k):
                gx_tk = gx_ref[k, pl.ds(row, B), :]            # (B, H) f32
                return gx_tk + jnp.dot(h_mm, w_hh[k],
                                       preferred_element_type=jnp.float32)

            i_g = jax.nn.sigmoid(gate(0))
            f_g = jax.nn.sigmoid(gate(1))
            g_g = jnp.tanh(gate(2))
            o_g = jax.nn.sigmoid(gate(3))

            c_new = f_g * c_prev + i_g * g_g                   # f32 cell state
            h_new = o_g * jnp.tanh(c_new)

            if write_seq:                                      # feed next layer only
                seq_ref[pl.ds(row, B), :] = h_new
            return h_new, c_new

        zeros = jnp.zeros((B, H), jnp.float32)
        h_fin, c_fin = lax.fori_loop(0, S, step, (zeros, zeros), unroll=S <= 16)

        # Final-state writes happen exactly once per layer (not once per timestep).
        hidden_ref[layer] = h_fin
        cell_ref[layer] = c_fin


def encoder_forward(tokens, params, *, n_layers, hid_dim):
    """tokens: (S, B) int32 -> (hidden (n_layers,B,H), cell (n_layers,B,H))."""
    S, B = tokens.shape
    # Embedding gather + dropout (identity at inference) stay as XLA glue.
    emb = jnp.take(params["embedding"], tokens, axis=0)        # (S, B, E) f32
    x = emb.reshape(S * B, emb.shape[-1]).astype(MATMUL_DTYPE)  # time-major rows

    inputs = [x]
    in_specs = [pl.BlockSpec(x.shape, lambda i: (0, 0))]
    for layer in range(n_layers):
        w_ih = params[f"w_ih_t_{layer}"]
        w_hh = params[f"w_hh_g_{layer}"]
        b = params[f"b_{layer}"]
        inputs += [w_ih, w_hh, b]
        in_specs += [
            pl.BlockSpec(w_ih.shape, lambda i: (0, 0, 0)),
            pl.BlockSpec(w_hh.shape, lambda i: (0, 0, 0)),
            pl.BlockSpec(b.shape, lambda i: (0, 0, 0)),
        ]

    H = hid_dim
    out_shape = (
        jax.ShapeDtypeStruct((n_layers, B, H), jnp.float32),
        jax.ShapeDtypeStruct((n_layers, B, H), jnp.float32),
    )
    out_specs = (
        pl.BlockSpec((n_layers, B, H), lambda i: (0, 0, 0)),
        pl.BlockSpec((n_layers, B, H), lambda i: (0, 0, 0)),
    )

    kernel = functools.partial(
        _encoder_lstm_kernel, n_layers=n_layers, seq_len=S, batch=B, hid_dim=H)

    hidden, cell = pl.pallas_call(
        kernel,
        out_shape=out_shape,
        grid=(1,),
        in_specs=in_specs,
        out_specs=out_specs,
        scratch_shapes=[
            pltpu.VMEM((4, S * B, H), jnp.float32),   # gate-major input projections
            pltpu.VMEM((S * B, H), jnp.float32),      # inter-layer hidden sequence
        ],
        compiler_params=pltpu.CompilerParams(
            dimension_semantics=("arbitrary",)),      # single step; recurrence serial
    )(*inputs)
    return hidden, cell


def encoder_reference(tokens, params, *, n_layers, hid_dim):
    """Pure-JAX reference with the same bf16 MXU-operand casts as the kernel."""
    S, B = tokens.shape
    x = jnp.take(params["embedding"], tokens, axis=0)          # (S, B, E)
    layer_in = x.astype(MATMUL_DTYPE)
    hs, cs = [], []
    for layer in range(n_layers):
        w_ih = params[f"w_ih_t_{layer}"]                       # (4, Din, H)
        w_hh = params[f"w_hh_g_{layer}"]                       # (4, H, H)
        b = params[f"b_{layer}"]                               # (4, 1, H)
        gx = jnp.einsum("sbd,gdh->sgbh", layer_in, w_ih,
                        preferred_element_type=jnp.float32) + b[None]

        def step(carry, gx_t, w_hh=w_hh):
            h, c = carry
            g = gx_t + jnp.einsum("bh,ghk->gbk", h.astype(MATMUL_DTYPE), w_hh,
                                  preferred_element_type=jnp.float32)
            i_g, f_g = jax.nn.sigmoid(g[0]), jax.nn.sigmoid(g[1])
            g_g, o_g = jnp.tanh(g[2]), jax.nn.sigmoid(g[3])
            c_new = f_g * c + i_g * g_g
            h_new = o_g * jnp.tanh(c_new)
            return (h_new, c_new), h_new

        zeros = jnp.zeros((B, hid_dim), jnp.float32)
        (h_fin, c_fin), seq = lax.scan(step, (zeros, zeros), gx)
        hs.append(h_fin)
        cs.append(c_fin)
        layer_in = seq.astype(MATMUL_DTYPE)
    return jnp.stack(hs, axis=0), jnp.stack(cs, axis=0)


def init_encoder_params(key, num_embeddings, emb_dim, hid_dim, n_layers):
    """Synthetic parameters; shapes match nn.Embedding + nn.LSTM, then repacked ONCE
    gate-major / pre-transposed so the kernel never transposes or relayouts weights."""
    params = {}
    k_emb, key = jax.random.split(key)
    params["embedding"] = 0.1 * jax.random.normal(
        k_emb, (num_embeddings, emb_dim), dtype=jnp.float32)
    for layer in range(n_layers):
        din = emb_dim if layer == 0 else hid_dim
        k1, k2, k3, k4, key = jax.random.split(key, 5)
        # PyTorch layouts: (4H, Din), (4H, H), (4H,)   gate order i, f, g, o.
        w_ih = 0.1 * jax.random.normal(k1, (4 * hid_dim, din), dtype=jnp.float32)
        w_hh = 0.1 * jax.random.normal(k2, (4 * hid_dim, hid_dim), dtype=jnp.float32)
        b_ih = 0.1 * jax.random.normal(k3, (4 * hid_dim,), dtype=jnp.float32)
        b_hh = 0.1 * jax.random.normal(k4, (4 * hid_dim,), dtype=jnp.float32)
        # One-time repack (zero per-step cost inside the kernel), gate-major leading:
        #   w_ih_t[k, d, j] = W_ih[k*H + j, d]        -> x @ w_ih_t[k] = x @ W_ih_k^T
        #   w_hh_g[k]       = W_hh[k*H:(k+1)*H, :].T  -> h @ w_hh_g[k] = h @ W_hh_k^T
        params[f"w_ih_t_{layer}"] = (
            w_ih.reshape(4, hid_dim, din).transpose(0, 2, 1).astype(MATMUL_DTYPE))
        params[f"w_hh_g_{layer}"] = (
            w_hh.reshape(4, hid_dim, hid_dim).transpose(0, 2, 1).astype(MATMUL_DTYPE))
        params[f"b_{layer}"] = (b_ih + b_hh).reshape(4, 1, hid_dim)
    return params


if __name__ == "__main__":
    NUM_EMBEDDINGS = 50
    EMB_DIM = 16
    HID_DIM = 32
    N_LAYERS = 2
    SEQ_LEN = 8
    BATCH = 2

    key = jax.random.PRNGKey(0)
    k_par, k_tok = jax.random.split(key)
    params = init_encoder_params(k_par, NUM_EMBEDDINGS, EMB_DIM, HID_DIM, N_LAYERS)
    tokens = jax.random.randint(k_tok, (SEQ_LEN, BATCH), 0, NUM_EMBEDDINGS,
                                dtype=jnp.int32)

    fwd = jax.jit(functools.partial(
        encoder_forward, n_layers=N_LAYERS, hid_dim=HID_DIM))
    hidden, cell = fwd(tokens, params)
    hidden, cell = jax.block_until_ready((hidden, cell))

    assert hidden.shape == (N_LAYERS, BATCH, HID_DIM)
    assert cell.shape == (N_LAYERS, BATCH, HID_DIM)
    assert hidden.dtype == jnp.float32 and cell.dtype == jnp.float32
    assert bool(jnp.all(jnp.isfinite(hidden))) and bool(jnp.all(jnp.isfinite(cell)))

    # Pure-JAX reference (same bf16 operand casts) — catches structural bugs.
    ref_fwd = jax.jit(functools.partial(
        encoder_reference, n_layers=N_LAYERS, hid_dim=HID_DIM))
    ref_hidden, ref_cell = jax.block_until_ready(ref_fwd(tokens, params))
    np.testing.assert_allclose(np.asarray(hidden), np.asarray(ref_hidden),
                               rtol=2e-2, atol=2e-3)
    np.testing.assert_allclose(np.asarray(cell), np.asarray(ref_cell),
                               rtol=2e-2, atol=2e-3)

    print("KERNEL_OK")
</pallas_src>

<mosaic_0001>
module attributes {stable_mosaic.version = 11 : i64} {
  func.func @_encoder_lstm_kernel(%arg0: i32, %arg1: memref<16x16xbf16, #tpu.memory_space<vmem>>, %arg2: memref<4x16x32xbf16, #tpu.memory_space<vmem>>, %arg3: memref<4x32x32xbf16, #tpu.memory_space<vmem>>, %arg4: memref<4x1x32xf32, #tpu.memory_space<vmem>>, %arg5: memref<4x32x32xbf16, #tpu.memory_space<vmem>>, %arg6: memref<4x32x32xbf16, #tpu.memory_space<vmem>>, %arg7: memref<4x1x32xf32, #tpu.memory_space<vmem>>, %arg8: memref<2x2x32xf32, #tpu.memory_space<vmem>>, %arg9: memref<2x2x32xf32, #tpu.memory_space<vmem>>, %arg10: memref<4x16x32xf32, #tpu.memory_space<vmem>>, %arg11: memref<16x32xf32, #tpu.memory_space<vmem>>) attributes {dimension_semantics = [#tpu.dimension_semantics<arbitrary>], iteration_bounds = array<i64: 1>, scalar_prefetch = 0 : i64, scratch_operands = 2 : i64, tpu.core_type = #tpu.core_type<tc>, window_params = [{pipeline_mode = #tpu.pipeline_mode<synchronous>, transform_indices = @transform_0, window_bounds = array<i64: 16, 16>}, {pipeline_mode = #tpu.pipeline_mode<synchronous>, transform_indices = @transform_1, window_bounds = array<i64: 4, 16, 32>}, {pipeline_mode = #tpu.pipeline_mode<synchronous>, transform_indices = @transform_2, window_bounds = array<i64: 4, 32, 32>}, {pipeline_mode = #tpu.pipeline_mode<synchronous>, transform_indices = @transform_3, window_bounds = array<i64: 4, 1, 32>}, {pipeline_mode = #tpu.pipeline_mode<synchronous>, transform_indices = @transform_4, window_bounds = array<i64: 4, 32, 32>}, {pipeline_mode = #tpu.pipeline_mode<synchronous>, transform_indices = @transform_5, window_bounds = array<i64: 4, 32, 32>}, {pipeline_mode = #tpu.pipeline_mode<synchronous>, transform_indices = @transform_6, window_bounds = array<i64: 4, 1, 32>}, {pipeline_mode = #tpu.pipeline_mode<synchronous>, transform_indices = @transform_7, window_bounds = array<i64: 2, 2, 32>}, {pipeline_mode = #tpu.pipeline_mode<synchronous>, transform_indices = @transform_8, window_bounds = array<i64: 2, 2, 32>}]} {
    %c0 = arith.constant 0 : index
    %c0_0 = arith.constant 0 : index
    %0 = vector.load %arg1[%c0, %c0_0] : memref<16x16xbf16, #tpu.memory_space<vmem>>, vector<16x16xbf16>
    %c0_1 = arith.constant 0 : index
    %c0_2 = arith.constant 0 : index
    %c0_3 = arith.constant 0 : index
    %1 = vector.load %arg2[%c0_1, %c0_2, %c0_3] : memref<4x16x32xbf16, #tpu.memory_space<vmem>>, vector<1x16x32xbf16>
    %2 = vector.shape_cast %1 : vector<1x16x32xbf16> to vector<16x32xbf16>
    %cst = arith.constant dense<0.000000e+00> : vector<16x32xf32>
    %3 = tpu.matmul %0, %2, %cst {dimension_numbers = #tpu.dot_dimension_numbers<[1], [0], [0], [1], [0, 0, 1, 1], [], []>} : vector<16x16xbf16>, vector<16x32xbf16>, vector<16x32xf32> -> vector<16x32xf32>
    %c0_4 = arith.constant 0 : index
    %c0_5 = arith.constant 0 : index
    %c0_6 = arith.constant 0 : index
    %4 = vector.load %arg4[%c0_4, %c0_5, %c0_6] : memref<4x1x32xf32, #tpu.memory_space<vmem>>, vector<1x1x32xf32>
    %5 = vector.shape_cast %4 : vector<1x1x32xf32> to vector<1x32xf32>
    %6 = vector.broadcast %5 : vector<1x32xf32> to vector<16x32xf32>
    %7 = arith.addf %3, %6 : vector<16x32xf32>
    %c0_7 = arith.constant 0 : index
    %c0_8 = arith.constant 0 : index
    %c0_9 = arith.constant 0 : index
    %8 = vector.load %arg10[%c0_7, %c0_8, %c0_9] : memref<4x16x32xf32, #tpu.memory_space<vmem>>, vector<1x16x32xf32>
    %9 = vector.shape_cast %8 : vector<1x16x32xf32> to vector<16x32xf32>
    %10 = vector.shape_cast %7 : vector<16x32xf32> to vector<1x16x32xf32>
    tpu.vector_store %arg10[%c0_7, %c0_8, %c0_9], %10 {strides = array<i32>} : memref<4x16x32xf32, #tpu.memory_space<vmem>>, vector<1x16x32xf32>,
    %c1 = arith.constant 1 : index
    %c0_10 = arith.constant 0 : index
    %c0_11 = arith.constant 0 : index
    %11 = vector.load %arg2[%c1, %c0_10, %c0_11] : memref<4x16x32xbf16, #tpu.memory_space<vmem>>, vector<1x16x32xbf16>
    %12 = vector.shape_cast %11 : vector<1x16x32xbf16> to vector<16x32xbf16>
    %cst_12 = arith.constant dense<0.000000e+00> : vector<16x32xf32>
    %13 = tpu.matmul %0, %12, %cst_12 {dimension_numbers = #tpu.dot_dimension_numbers<[1], [0], [0], [1], [0, 0, 1, 1], [], []>} : vector<16x16xbf16>, vector<16x32xbf16>, vector<16x32xf32> -> vector<16x32xf32>
    %c1_13 = arith.constant 1 : index
    %c0_14 = arith.constant 0 : index
    %c0_15 = arith.constant 0 : index
    %14 = vector.load %arg4[%c1_13, %c0_14, %c0_15] : memref<4x1x32xf32, #tpu.memory_space<vmem>>, vector<1x1x32xf32>
    %15 = vector.shape_cast %14 : vector<1x1x32xf32> to vector<1x32xf32>
    %16 = vector.broadcast %15 : vector<1x32xf32> to vector<16x32xf32>
    %17 = arith.addf %13, %16 : vector<16x32xf32>
    %c1_16 = arith.constant 1 : index
    %c0_17 = arith.constant 0 : index
    %c0_18 = arith.constant 0 : index
    %18 = vector.load %arg10[%c1_16, %c0_17, %c0_18] : memref<4x16x32xf32, #tpu.memory_space<vmem>>, vector<1x16x32xf32>
    %19 = vector.shape_cast %18 : vector<1x16x32xf32> to vector<16x32xf32>
    %20 = vector.shape_cast %17 : vector<16x32xf32> to vector<1x16x32xf32>
    tpu.vector_store %arg10[%c1_16, %c0_17, %c0_18], %20 {strides = array<i32>} : memref<4x16x32xf32, #tpu.memory_space<vmem>>, vector<1x16x32xf32>,
    %c2 = arith.constant 2 : index
    %c0_19 = arith.constant 0 : index
    %c0_20 = arith.constant 0 : index
    %21 = vector.load %arg2[%c2, %c0_19, %c0_20] : memref<4x16x32xbf16, #tpu.memory_space<vmem>>, vector<1x16x32xbf16>
    %22 = vector.shape_cast %21 : vector<1x16x32xbf16> to vector<16x32xbf16>
    %cst_21 = arith.constant dense<0.000000e+00> : vector<16x32xf32>
    %23 = tpu.matmul %0, %22, %cst_21 {dimension_numbers = #tpu.dot_dimension_numbers<[1], [0], [0], [1], [0, 0, 1, 1], [], []>} : vector<16x16xbf16>, vector<16x32xbf16>, vector<16x32xf32> -> vector<16x32xf32>
    %c2_22 = arith.constant 2 : index
    %c0_23 = arith.constant 0 : index
    %c0_24 = arith.constant 0 : index
    %24 = vector.load %arg4[%c2_22, %c0_23, %c0_24] : memref<4x1x32xf32, #tpu.memory_space<vmem>>, vector<1x1x32xf32>
    %25 = vector.shape_cast %24 : vector<1x1x32xf32> to vector<1x32xf32>
    %26 = vector.broadcast %25 : vector<1x32xf32> to vector<16x32xf32>
    %27 = arith.addf %23, %26 : vector<16x32xf32>
    %c2_25 = arith.constant 2 : index
    %c0_26 = arith.constant 0 : index
    %c0_27 = arith.constant 0 : index
    %28 = vector.load %arg10[%c2_25, %c0_26, %c0_27] : memref<4x16x32xf32, #tpu.memory_space<vmem>>, vector<1x16x32xf32>
    %29 = vector.shape_cast %28 : vector<1x16x32xf32> to vector<16x32xf32>
    %30 = vector.shape_cast %27 : vector<16x32xf32> to vector<1x16x32xf32>
    tpu.vector_store %arg10[%c2_25, %c0_26, %c0_27], %30 {strides = array<i32>} : memref<4x16x32xf32, #tpu.memory_space<vmem>>, vector<1x16x32xf32>,
    %c3 = arith.constant 3 : index
    %c0_28 = arith.constant 0 : index
    %c0_29 = arith.constant 0 : index
    %31 = vector.load %arg2[%c3, %c0_28, %c0_29] : memref<4x16x32xbf16, #tpu.memory_space<vmem>>, vector<1x16x32xbf16>
    %32 = vector.shape_cast %31 : vector<1x16x32xbf16> to vector<16x32xbf16>
    %cst_30 = arith.constant dense<0.000000e+00> : vector<16x32xf32>
    %33 = tpu.matmul %0, %32, %cst_30 {dimension_numbers = #tpu.dot_dimension_numbers<[1], [0], [0], [1], [0, 0, 1, 1], [], []>} : vector<16x16xbf16>, vector<16x32xbf16>, vector<16x32xf32> -> vector<16x32xf32>
    %c3_31 = arith.constant 3 : index
    %c0_32 = arith.constant 0 : index
    %c0_33 = arith.constant 0 : index
    %34 = vector.load %arg4[%c3_31, %c0_32, %c0_33] : memref<4x1x32xf32, #tpu.memory_space<vmem>>, vector<1x1x32xf32>
    %35 = vector.shape_cast %34 : vector<1x1x32xf32> to vector<1x32xf32>
    %36 = vector.broadcast %35 : vector<1x32xf32> to vector<16x32xf32>
    %37 = arith.addf %33, %36 : vector<16x32xf32>
    %c3_34 = arith.constant 3 : index
    %c0_35 = arith.constant 0 : index
    %c0_36 = arith.constant 0 : index
    %38 = vector.load %arg10[%c3_34, %c0_35, %c0_36] : memref<4x16x32xf32, #tpu.memory_space<vmem>>, vector<1x16x32xf32>
    %39 = vector.shape_cast %38 : vector<1x16x32xf32> to vector<16x32xf32>
    %40 = vector.shape_cast %37 : vector<16x32xf32> to vector<1x16x32xf32>
    tpu.vector_store %arg10[%c3_34, %c0_35, %c0_36], %40 {strides = array<i32>} : memref<4x16x32xf32, #tpu.memory_space<vmem>>, vector<1x16x32xf32>,
    %c0_37 = arith.constant 0 : index
    %c0_38 = arith.constant 0 : index
    %c0_39 = arith.constant 0 : index
    %41 = vector.load %arg3[%c0_37, %c0_38, %c0_39] : memref<4x32x32xbf16, #tpu.memory_space<vmem>>, vector<4x32x32xbf16>
    %cst_40 = arith.constant 0.000000e+00 : f32
    %42 = vector.broadcast %cst_40 : f32 to vector<2x32xf32>
    %c0_i32 = arith.constant 0 : i32
    %43 = arith.truncf %42 : vector<2x32xf32> to vector<2x32xbf16>
    %c2_i32 = arith.constant 2 : i32
    %44 = arith.muli %c0_i32, %c2_i32 : i32
    %45 = tpu.assume_multiple %44, 2 : i32
    %c0_41 = arith.constant 0 : index
    %46 = arith.index_cast %45 : i32 to index
    %c0_42 = arith.constant 0 : index
    %47 = vector.load %arg10[%c0_41, %46, %c0_42] : memref<4x16x32xf32, #tpu.memory_space<vmem>>, vector<1x2x32xf32>
    %48 = vector.shape_cast %47 : vector<1x2x32xf32> to vector<2x32xf32>
    %49 = vector.extract_strided_slice %41 {offsets = [0, 0, 0], sizes = [1, 32, 32], strides = [1, 1, 1]} : vector<4x32x32xbf16> to vector<1x32x32xbf16>
    %50 = vector.shape_cast %49 : vector<1x32x32xbf16> to vector<32x32xbf16>
    %cst_43 = arith.constant dense<0.000000e+00> : vector<2x32xf32>
    %51 = tpu.matmul %43, %50, %cst_43 {dimension_numbers = #tpu.dot_dimension_numbers<[1], [0], [0], [1], [0, 0, 1, 1], [], []>} : vector<2x32xbf16>, vector<32x32xbf16>, vector<2x32xf32> -> vector<2x32xf32>
    %52 = arith.addf %48, %51 : vector<2x32xf32>
    %53 = arith.negf %52 : vector<2x32xf32>
    %54 = math.exp %53 : vector<2x32xf32>
    %cst_44 = arith.constant 1.000000e+00 : f32
    %55 = vector.broadcast %cst_44 : f32 to vector<2x32xf32>
    %56 = arith.addf %55, %54 : vector<2x32xf32>
    %57 = arith.divf %55, %56 : vector<2x32xf32>
    %c1_45 = arith.constant 1 : index
    %58 = arith.index_cast %45 : i32 to index
    %c0_46 = arith.constant 0 : index
    %59 = vector.load %arg10[%c1_45, %58, %c0_46] : memref<4x16x32xf32, #tpu.memory_space<vmem>>, vector<1x2x32xf32>
    %60 = vector.shape_cast %59 : vector<1x2x32xf32> to vector<2x32xf32>
    %61 = vector.extract_strided_slice %41 {offsets = [1, 0, 0], sizes = [1, 32, 32], strides = [1, 1, 1]} : vector<4x32x32xbf16> to vector<1x32x32xbf16>
    %62 = vector.shape_cast %61 : vector<1x32x32xbf16> to vector<32x32xbf16>
    %cst_47 = arith.constant dense<0.000000e+00> : vector<2x32xf32>
    %63 = tpu.matmul %43, %62, %cst_47 {dimension_numbers = #tpu.dot_dimension_numbers<[1], [0], [0], [1], [0, 0, 1, 1], [], []>} : vector<2x32xbf16>, vector<32x32xbf16>, vector<2x32xf32> -> vector<2x32xf32>
    %64 = arith.addf %60, %63 : vector<2x32xf32>
    %65 = arith.negf %64 : vector<2x32xf32>
    %66 = math.exp %65 : vector<2x32xf32>
    %cst_48 = arith.constant 1.000000e+00 : f32
    %67 = vector.broadcast %cst_48 : f32 to vector<2x32xf32>
    %68 = arith.addf %67, %66 : vector<2x32xf32>
    %69 = arith.divf %67, %68 : vector<2x32xf32>
    %c2_49 = arith.constant 2 : index
    %70 = arith.index_cast %45 : i32 to index
    %c0_50 = arith.constant 0 : index
    %71 = vector.load %arg10[%c2_49, %70, %c0_50] : memref<4x16x32xf32, #tpu.memory_space<vmem>>, vector<1x2x32xf32>
    %72 = vector.shape_cast %71 : vector<1x2x32xf32> to vector<2x32xf32>
    %73 = vector.extract_strided_slice %41 {offsets = [2, 0, 0], sizes = [1, 32, 32], strides = [1, 1, 1]} : vector<4x32x32xbf16> to vector<1x32x32xbf16>
    %74 = vector.shape_cast %73 : vector<1x32x32xbf16> to vector<32x32xbf16>
    %cst_51 = arith.constant dense<0.000000e+00> : vector<2x32xf32>
    %75 = tpu.matmul %43, %74, %cst_51 {dimension_numbers = #tpu.dot_dimension_numbers<[1], [0], [0], [1], [0, 0, 1, 1], [], []>} : vector<2x32xbf16>, vector<32x32xbf16>, vector<2x32xf32> -> vector<2x32xf32>
    %76 = arith.addf %72, %75 : vector<2x32xf32>
    %77 = math.tanh %76 : vector<2x32xf32>
    %c3_52 = arith.constant 3 : index
    %78 = arith.index_cast %45 : i32 to index
    %c0_53 = arith.constant 0 : index
    %79 = vector.load %arg10[%c3_52, %78, %c0_53] : memref<4x16x32xf32, #tpu.memory_space<vmem>>, vector<1x2x32xf32>
    %80 = vector.shape_cast %79 : vector<1x2x32xf32> to vector<2x32xf32>
    %81 = vector.extract_strided_slice %41 {offsets = [3, 0, 0], sizes = [1, 32, 32], strides = [1, 1, 1]} : vector<4x32x32xbf16> to vector<1x32x32xbf16>
    %82 = vector.shape_cast %81 : vector<1x32x32xbf16> to vector<32x32xbf16>
    %cst_54 = arith.constant dense<0.000000e+00> : vector<2x32xf32>
    %83 = tpu.matmul %43, %82, %cst_54 {dimension_numbers = #tpu.dot_dimension_numbers<[1], [0], [0], [1], [0, 0, 1, 1], [], []>} : vector<2x32xbf16>, vector<32x32xbf16>, vector<2x32xf32> -> vector<2x32xf32>
    %84 = arith.addf %80, %83 : vector<2x32xf32>
    %85 = arith.negf %84 : vector<2x32xf32>
    %86 = math.exp %85 : vector<2x32xf32>
    %cst_55 = arith.constant 1.000000e+00 : f32
    %87 = vector.broadcast %cst_55 : f32 to vector<2x32xf32>
    %88 = arith.addf %87, %86 : vector<2x32xf32>
    %89 = arith.divf %87, %88 : vector<2x32xf32>
    %90 = arith.mulf %69, %42 : vector<2x32xf32>
    %91 = arith.mulf %57, %77 : vector<2x32xf32>
    %92 = arith.addf %90, %91 : vector<2x32xf32>
    %93 = math.tanh %92 : vector<2x32xf32>
    %94 = arith.mulf %89, %93 : vector<2x32xf32>
    %95 = arith.index_cast %45 : i32 to index
    %c0_56 = arith.constant 0 : index
    %96 = vector.load %arg11[%95, %c0_56] : memref<16x32xf32, #tpu.memory_space<vmem>>, vector<2x32xf32>
    tpu.vector_store %arg11[%95, %c0_56], %94 {strides = array<i32>} : memref<16x32xf32, #tpu.memory_space<vmem>>, vector<2x32xf32>,
    %c1_i32 = arith.constant 1 : i32
    %97 = arith.truncf %94 : vector<2x32xf32> to vector<2x32xbf16>
    %c2_i32_57 = arith.constant 2 : i32
    %98 = arith.muli %c1_i32, %c2_i32_57 : i32
    %99 = tpu.assume_multiple %98, 2 : i32
    %c0_58 = arith.constant 0 : index
    %100 = arith.index_cast %99 : i32 to index
    %c0_59 = arith.constant 0 : index
    %101 = vector.load %arg10[%c0_58, %100, %c0_59] : memref<4x16x32xf32, #tpu.memory_space<vmem>>, vector<1x2x32xf32>
    %102 = vector.shape_cast %101 : vector<1x2x32xf32> to vector<2x32xf32>
    %103 = vector.extract_strided_slice %41 {offsets = [0, 0, 0], sizes = [1, 32, 32], strides = [1, 1, 1]} : vector<4x32x32xbf16> to vector<1x32x32xbf16>
    %104 = vector.shape_cast %103 : vector<1x32x32xbf16> to vector<32x32xbf16>
    %cst_60 = arith.constant dense<0.000000e+00> : vector<2x32xf32>
    %105 = tpu.matmul %97, %104, %cst_60 {dimension_numbers = #tpu.dot_dimension_numbers<[1], [0], [0], [1], [0, 0, 1, 1], [], []>} : vector<2x32xbf16>, vector<32x32xbf16>, vector<2x32xf32> -> vector<2x32xf32>
    %106 = arith.addf %102, %105 : vector<2x32xf32>
    %107 = arith.negf %106 : vector<2x32xf32>
    %108 = math.exp %107 : vector<2x32xf32>
    %cst_61 = arith.constant 1.000000e+00 : f32
    %109 = vector.broadcast %cst_61 : f32 to vector<2x32xf32>
    %110 = arith.addf %109, %108 : vector<2x32xf32>
    %111 = arith.divf %109, %110 : vector<2x32xf32>
    %c1_62 = arith.constant 1 : index
    %112 = arith.index_cast %99 : i32 to index
    %c0_63 = arith.constant 0 : index
    %113 = vector.load %arg10[%c1_62, %112, %c0_63] : memref<4x16x32xf32, #tpu.memory_space<vmem>>, vector<1x2x32xf32>
    %114 = vector.shape_cast %113 : vector<1x2x32xf32> to vector<2x32xf32>
    %115 = vector.extract_strided_slice %41 {offsets = [1, 0, 0], sizes = [1, 32, 32], strides = [1, 1, 1]} : vector<4x32x32xbf16> to vector<1x32x32xbf16>
    %116 = vector.shape_cast %115 : vector<1x32x32xbf16> to vector<32x32xbf16>
    %cst_64 = arith.constant dense<0.000000e+00> : vector<2x32xf32>
    %117 = tpu.matmul %97, %116, %cst_64 {dimension_numbers = #tpu.dot_dimension_numbers<[1], [0], [0], [1], [0, 0, 1, 1], [], []>} : vector<2x32xbf16>, vector<32x32xbf16>, vector<2x32xf32> -> vector<2x32xf32>
    %118 = arith.addf %114, %117 : vector<2x32xf32>
    %119 = arith.negf %118 : vector<2x32xf32>
    %120 = math.exp %119 : vector<2x32xf32>
    %cst_65 = arith.constant 1.000000e+00 : f32
    %121 = vector.broadcast %cst_65 : f32 to vector<2x32xf32>
    %122 = arith.addf %121, %120 : vector<2x32xf32>
    %123 = arith.divf %121, %122 : vector<2x32xf32>
    %c2_66 = arith.constant 2 : index
    %124 = arith.index_cast %99 : i32 to index
    %c0_67 = arith.constant 0 : index
    %125 = vector.load %arg10[%c2_66, %124, %c0_67] : memref<4x16x32xf32, #tpu.memory_space<vmem>>, vector<1x2x32xf32>
    %126 = vector.shape_cast %125 : vector<1x2x32xf32> to vector<2x32xf32>
    %127 = vector.extract_strided_slice %41 {offsets = [2, 0, 0], sizes = [1, 32, 32], strides = [1, 1, 1]} : vector<4x32x32xbf16> to vector<1x32x32xbf16>
    %128 = vector.shape_cast %127 : vector<1x32x32xbf16> to vector<32x32xbf16>
    %cst_68 = arith.constant dense<0.000000e+00> : vector<2x32xf32>
    %129 = tpu.matmul %97, %128, %cst_68 {dimension_numbers = #tpu.dot_dimension_numbers<[1], [0], [0], [1], [0, 0, 1, 1], [], []>} : vector<2x32xbf16>, vector<32x32xbf16>, vector<2x32xf32> -> vector<2x32xf32>
    %130 = arith.addf %126, %129 : vector<2x32xf32>
    %131 = math.tanh %130 : vector<2x32xf32>
    %c3_69 = arith.constant 3 : index
    %132 = arith.index_cast %99 : i32 to index
    %c0_70 = arith.constant 0 : index
    %133 = vector.load %arg10[%c3_69, %132, %c0_70] : memref<4x16x32xf32, #tpu.memory_space<vmem>>, vector<1x2x32xf32>
    %134 = vector.shape_cast %133 : vector<1x2x32xf32> to vector<2x32xf32>
    %135 = vector.extract_strided_slice %41 {offsets = [3, 0, 0], sizes = [1, 32, 32], strides = [1, 1, 1]} : vector<4x32x32xbf16> to vector<1x32x32xbf16>
    %136 = vector.shape_cast %135 : vector<1x32x32xbf16> to vector<32x32xbf16>
    %cst_71 = arith.constant dense<0.000000e+00> : vector<2x32xf32>
    %137 = tpu.matmul %97, %136, %cst_71 {dimension_numbers = #tpu.dot_dimension_numbers<[1], [0], [0], [1], [0, 0, 1, 1], [], []>} : vector<2x32xbf16>, vector<32x32xbf16>, vector<2x32xf32> -> vector<2x32xf32>
    %138 = arith.addf %134, %137 : vector<2x32xf32>
    %139 = arith.negf %138 : vector<2x32xf32>
    %140 = math.exp %139 : vector<2x32xf32>
    %cst_72 = arith.constant 1.000000e+00 : f32
    %141 = vector.broadcast %cst_72 : f32 to vector<2x32xf32>
    %142 = arith.addf %141, %140 : vector<2x32xf32>
    %143 = arith.divf %141, %142 : vector<2x32xf32>
    %144 = arith.mulf %123, %92 : vector<2x32xf32>
    %145 = arith.mulf %111, %131 : vector<2x32xf32>
    %146 = arith.addf %144, %145 : vector<2x32xf32>
    %147 = math.tanh %146 : vector<2x32xf32>
    %148 = arith.mulf %143, %147 : vector<2x32xf32>
    %149 = arith.index_cast %99 : i32 to index
    %c0_73 = arith.constant 0 : index
    %150 = vector.load %arg11[%149, %c0_73] : memref<16x32xf32, #tpu.memory_space<vmem>>, vector<2x32xf32>
    tpu.vector_store %arg11[%149, %c0_73], %148 {strides = array<i32>} : memref<16x32xf32, #tpu.memory_space<vmem>>, vector<2x32xf32>,
    %c2_i32_74 = arith.constant 2 : i32
    %151 = arith.truncf %148 : vector<2x32xf32> to vector<2x32xbf16>
    %c2_i32_75 = arith.constant 2 : i32
    %152 = arith.muli %c2_i32_74, %c2_i32_75 : i32
    %153 = tpu.assume_multiple %152, 2 : i32
    %c0_76 = arith.constant 0 : index
    %154 = arith.index_cast %153 : i32 to index
    %c0_77 = arith.constant 0 : index
    %155 = vector.load %arg10[%c0_76, %154, %c0_77] : memref<4x16x32xf32, #tpu.memory_space<vmem>>, vector<1x2x32xf32>
    %156 = vector.shape_cast %155 : vector<1x2x32xf32> to vector<2x32xf32>
    %157 = vector.extract_strided_slice %41 {offsets = [0, 0, 0], sizes = [1, 32, 32], strides = [1, 1, 1]} : vector<4x32x32xbf16> to vector<1x32x32xbf16>
    %158 = vector.shape_cast %157 : vector<1x32x32xbf16> to vector<32x32xbf16>
    %cst_78 = arith.constant dense<0.000000e+00> : vector<2x32xf32>
    %159 = tpu.matmul %151, %158, %cst_78 {dimension_numbers = #tpu.dot_dimension_numbers<[1], [0], [0], [1], [0, 0, 1, 1], [], []>} : vector<2x32xbf16>, vector<32x32xbf16>, vector<2x32xf32> -> vector<2x32xf32>
    %160 = arith.addf %156, %159 : vector<2x32xf32>
    %161 = arith.negf %160 : vector<2x32xf32>
    %162 = math.exp %161 : vector<2x32xf32>
    %cst_79 = arith.constant 1.000000e+00 : f32
    %163 = vector.broadcast %cst_79 : f32 to vector<2x32xf32>
    %164 = arith.addf %163, %162 : vector<2x32xf32>
    %165 = arith.divf %163, %164 : vector<2x32xf32>
    %c1_80 = arith.constant 1 : index
    %166 = arith.index_cast %153 : i32 to index
    %c0_81 = arith.constant 0 : index
    %167 = vector.load %arg10[%c1_80, %166, %c0_81] : memref<4x16x32xf32, #tpu.memory_space<vmem>>, vector<1x2x32xf32>
    %168 = vector.shape_cast %167 : vector<1x2x32xf32> to vector<2x32xf32>
    %169 = vector.extract_strided_slice %41 {offsets = [1, 0, 0], sizes = [1, 32, 32], strides = [1, 1, 1]} : vector<4x32x32xbf16> to vector<1x32x32xbf16>
    %170 = vector.shape_cast %169 : vector<1x32x32xbf16> to vector<32x32xbf16>
    %cst_82 = arith.constant dense<0.000000e+00> : vector<2x32xf32>
    %171 = tpu.matmul %151, %170, %cst_82 {dimension_numbers = #tpu.dot_dimension_numbers<[1], [0], [0], [1], [0, 0, 1, 1], [], []>} : vector<2x32xbf16>, vector<32x32xbf16>, vector<2x32xf32> -> vector<2x32xf32>
    %172 = arith.addf %168, %171 : vector<2x32xf32>
    %173 = arith.negf %172 : vector<2x32xf32>
    %174 = math.exp %173 : vector<2x32xf32>
    %cst_83 = arith.constant 1.000000e+00 : f32
    %175 = vector.broadcast %cst_83 : f32 to vector<2x32xf32>
    %176 = arith.addf %175, %174 : vector<2x32xf32>
    %177 = arith.divf %175, %176 : vector<2x32xf32>
    %c2_84 = arith.constant 2 : index
    %178 = arith.index_cast %153 : i32 to index
    %c0_85 = arith.constant 0 : index
    %179 = vector.load %arg10[%c2_84, %178, %c0_85] : memref<4x16x32xf32, #tpu.memory_space<vmem>>, vector<1x2x32xf32>
    %180 = vector.shape_cast %179 : vector<1x2x32xf32> to vector<2x32xf32>
    %181 = vector.extract_strided_slice %41 {offsets = [2, 0, 0], sizes = [1, 32, 32], strides = [1, 1, 1]} : vector<4x32x32xbf16> to vector<1x32x32xbf16>
    %182 = vector.shape_cast %181 : vector<1x32x32xbf16> to vector<32x32xbf16>
    %cst_86 = arith.constant dense<0.000000e+00> : vector<2x32xf32>
    %183 = tpu.matmul %151, %182, %cst_86 {dimension_numbers = #tpu.dot_dimension_numbers<[1], [0], [0], [1], [0, 0, 1, 1], [], []>} : vector<2x32xbf16>, vector<32x32xbf16>, vector<2x32xf32> -> vector<2x32xf32>
    %184 = arith.addf %180, %183 : vector<2x32xf32>
    %185 = math.tanh %184 : vector<2x32xf32>
    %c3_87 = arith.constant 3 : index
    %186 = arith.index_cast %153 : i32 to index
    %c0_88 = arith.constant 0 : index
    %187 = vector.load %arg10[%c3_87, %186, %c0_88] : memref<4x16x32xf32, #tpu.memory_space<vmem>>, vector<1x2x32xf32>
    %188 = vector.shape_cast %187 : vector<1x2x32xf32> to vector<2x32xf32>
    %189 = vector.extract_strided_slice %41 {offsets = [3, 0, 0], sizes = [1, 32, 32], strides = [1, 1, 1]} : vector<4x32x32xbf16> to vector<1x32x32xbf16>
    %190 = vector.shape_cast %189 : vector<1x32x32xbf16> to vector<32x32xbf16>
    %cst_89 = arith.constant dense<0.000000e+00> : vector<2x32xf32>
    %191 = tpu.matmul %151, %190, %cst_89 {dimension_numbers = #tpu.dot_dimension_numbers<[1], [0], [0], [1], [0, 0, 1, 1], [], []>} : vector<2x32xbf16>, vector<32x32xbf16>, vector<2x32xf32> -> vector<2x32xf32>
    %192 = arith.addf %188, %191 : vector<2x32xf32>
    %193 = arith.negf %192 : vector<2x32xf32>
    %194 = math.exp %193 : vector<2x32xf32>
    %cst_90 = arith.constant 1.000000e+00 : f32
    %195 = vector.broadcast %cst_90 : f32 to vector<2x32xf32>
    %196 = arith.addf %195, %194 : vector<2x32xf32>
    %197 = arith.divf %195, %196 : vector<2x32xf32>
    %198 = arith.mulf %177, %146 : vector<2x32xf32>
    %199 = arith.mulf %165, %185 : vector<2x32xf32>
    %200 = arith.addf %198, %199 : vector<2x32xf32>
    %201 = math.tanh %200 : vector<2x32xf32>
    %202 = arith.mulf %197, %201 : vector<2x32xf32>
    %203 = arith.index_cast %153 : i32 to index
    %c0_91 = arith.constant 0 : index
    %204 = vector.load %arg11[%203, %c0_91] : memref<16x32xf32, #tpu.memory_space<vmem>>, vector<2x32xf32>
    tpu.vector_store %arg11[%203, %c0_91], %202 {strides = array<i32>} : memref<16x32xf32, #tpu.memory_space<vmem>>, vector<2x32xf32>,
    %c3_i32 = arith.constant 3 : i32
    %205 = arith.truncf %202 : vector<2x32xf32> to vector<2x32xbf16>
    %c2_i32_92 = arith.constant 2 : i32
    %206 = arith.muli %c3_i32, %c2_i32_92 : i32
    %207 = tpu.assume_multiple %206, 2 : i32
    %c0_93 = arith.constant 0 : index
    %208 = arith.index_cast %207 : i32 to index
    %c0_94 = arith.constant 0 : index
    %209 = vector.load %arg10[%c0_93, %208, %c0_94] : memref<4x16x32xf32, #tpu.memory_space<vmem>>, vector<1x2x32xf32>
    %210 = vector.shape_cast %209 : vector<1x2x32xf32> to vector<2x32xf32>
    %211 = vector.extract_strided_slice %41 {offsets = [0, 0, 0], sizes = [1, 32, 32], strides = [1, 1, 1]} : vector<4x32x32xbf16> to vector<1x32x32xbf16>
    %212 = vector.shape_cast %211 : vector<1x32x32xbf16> to vector<32x32xbf16>
    %cst_95 = arith.constant dense<0.000000e+00> : vector<2x32xf32>
    %213 = tpu.matmul %205, %212, %cst_95 {dimension_numbers = #tpu.dot_dimension_numbers<[1], [0], [0], [1], [0, 0, 1, 1], [], []>} : vector<2x32xbf16>, vector<32x32xbf16>, vector<2x32xf32> -> vector<2x32xf32>
    %214 = arith.addf %210, %213 : vector<2x32xf32>
    %215 = arith.negf %214 : vector<2x32xf32>
    %216 = math.exp %215 : vector<2x32xf32>
    %cst_96 = arith.constant 1.000000e+00 : f32
    %217 = vector.broadcast %cst_96 : f32 to vector<2x32xf32>
    %218 = arith.addf %217, %216 : vector<2x32xf32>
    %219 = arith.divf %217, %218 : vector<2x32xf32>
    %c1_97 = arith.constant 1 : index
    %220 = arith.index_cast %207 : i32 to index
    %c0_98 = arith.constant 0 : index
    %221 = vector.load %arg10[%c1_97, %220, %c0_98] : memref<4x16x32xf32, #tpu.memory_space<vmem>>, vector<1x2x32xf32>
    %222 = vector.shape_cast %221 : vector<1x2x32xf32> to vector<2x32xf32>
    %223 = vector.extract_strided_slice %41 {offsets = [1, 0, 0], sizes = [1, 32, 32], strides = [1, 1, 1]} : vector<4x32x32xbf16> to vector<1x32x32xbf16>
    %224 = vector.shape_cast %223 : vector<1x32x32xbf16> to vector<32x32xbf16>
    %cst_99 = arith.constant dense<0.000000e+00> : vector<2x32xf32>
    %225 = tpu.matmul %205, %224, %cst_99 {dimension_numbers = #tpu.dot_dimension_numbers<[1], [0], [0], [1], [0, 0, 1, 1], [], []>} : vector<2x32xbf16>, vector<32x32xbf16>, vector<2x32xf32> -> vector<2x32xf32>
    %226 = arith.addf %222, %225 : vector<2x32xf32>
    %227 = arith.negf %226 : vector<2x32xf32>
    %228 = math.exp %227 : vector<2x32xf32>
    %cst_100 = arith.constant 1.000000e+00 : f32
    %229 = vector.broadcast %cst_100 : f32 to vector<2x32xf32>
    %230 = arith.addf %229, %228 : vector<2x32xf32>
    %231 = arith.divf %229, %230 : vector<2x32xf32>
    %c2_101 = arith.constant 2 : index
    %232 = arith.index_cast %207 : i32 to index
    %c0_102 = arith.constant 0 : index
    %233 = vector.load %arg10[%c2_101, %232, %c0_102] : memref<4x16x32xf32, #tpu.memory_space<vmem>>, vector<1x2x32xf32>
    %234 = vector.shape_cast %233 : vector<1x2x32xf32> to vector<2x32xf32>
    %235 = vector.extract_strided_slice %41 {offsets = [2, 0, 0], sizes = [1, 32, 32], strides = [1, 1, 1]} : vector<4x32x32xbf16> to vector<1x32x32xbf16>
    %236 = vector.shape_cast %235 : vector<1x32x32xbf16> to vector<32x32xbf16>
    %cst_103 = arith.constant dense<0.000000e+00> : vector<2x32xf32>
    %237 = tpu.matmul %205, %236, %cst_103 {dimension_numbers = #tpu.dot_dimension_numbers<[1], [0], [0], [1], [0, 0, 1, 1], [], []>} : vector<2x32xbf16>, vector<32x32xbf16>, vector<2x32xf32> -> vector<2x32xf32>
    %238 = arith.addf %234, %237 : vector<2x32xf32>
    %239 = math.tanh %238 : vector<2x32xf32>
    %c3_104 = arith.constant 3 : index
    %240 = arith.index_cast %207 : i32 to index
    %c0_105 = arith.constant 0 : index
    %241 = vector.load %arg10[%c3_104, %240, %c0_105] : memref<4x16x32xf32, #tpu.memory_space<vmem>>, vector<1x2x32xf32>
    %242 = vector.shape_cast %241 : vector<1x2x32xf32> to vector<2x32xf32>
    %243 = vector.extract_strided_slice %41 {offsets = [3, 0, 0], sizes = [1, 32, 32], strides = [1, 1, 1]} : vector<4x32x32xbf16> to vector<1x32x32xbf16>
    %244 = vector.shape_cast %243 : vector<1x32x32xbf16> to vector<32x32xbf16>
    %cst_106 = arith.constant dense<0.000000e+00> : vector<2x32xf32>
    %245 = tpu.matmul %205, %244, %cst_106 {dimension_numbers = #tpu.dot_dimension_numbers<[1], [0], [0], [1], [0, 0, 1, 1], [], []>} : vector<2x32xbf16>, vector<32x32xbf16>, vector<2x32xf32> -> vector<2x32xf32>
    %246 = arith.addf %242, %245 : vector<2x32xf32>
    %247 = arith.negf %246 : vector<2x32xf32>
    %248 = math.exp %247 : vector<2x32xf32>
    %cst_107 = arith.constant 1.000000e+00 : f32
    %249 = vector.broadcast %cst_107 : f32 to vector<2x32xf32>
    %250 = arith.addf %249, %248 : vector<2x32xf32>
    %251 = arith.divf %249, %250 : vector<2x32xf32>
    %252 = arith.mulf %231, %200 : vector<2x32xf32>
    %253 = arith.mulf %219, %239 : vector<2x32xf32>
    %254 = arith.addf %252, %253 : vector<2x32xf32>
    %255 = math.tanh %254 : vector<2x32xf32>
    %256 = arith.mulf %251, %255 : vector<2x32xf32>
    %257 = arith.index_cast %207 : i32 to index
    %c0_108 = arith.constant 0 : index
    %258 = vector.load %arg11[%257, %c0_108] : memref<16x32xf32, #tpu.memory_space<vmem>>, vector<2x32xf32>
    tpu.vector_store %arg11[%257, %c0_108], %256 {strides = array<i32>} : memref<16x32xf32, #tpu.memory_space<vmem>>, vector<2x32xf32>,
    %c4_i32 = arith.constant 4 : i32
    %259 = arith.truncf %256 : vector<2x32xf32> to vector<2x32xbf16>
    %c2_i32_109 = arith.constant 2 : i32
    %260 = arith.muli %c4_i32, %c2_i32_109 : i32
    %261 = tpu.assume_multiple %260, 2 : i32
    %c0_110 = arith.constant 0 : index
    %262 = arith.index_cast %261 : i32 to index
    %c0_111 = arith.constant 0 : index
    %263 = vector.load %arg10[%c0_110, %262, %c0_111] : memref<4x16x32xf32, #tpu.memory_space<vmem>>, vector<1x2x32xf32>
    %264 = vector.shape_cast %263 : vector<1x2x32xf32> to vector<2x32xf32>
    %265 = vector.extract_strided_slice %41 {offsets = [0, 0, 0], sizes = [1, 32, 32], strides = [1, 1, 1]} : vector<4x32x32xbf16> to vector<1x32x32xbf16>
    %266 = vector.shape_cast %265 : vector<1x32x32xbf16> to vector<32x32xbf16>
    %cst_112 = arith.constant dense<0.000000e+00> : vector<2x32xf32>
    %267 = tpu.matmul %259, %266, %cst_112 {dimension_numbers = #tpu.dot_dimension_numbers<[1], [0], [0], [1], [0, 0, 1, 1], [], []>} : vector<2x32xbf16>, vector<32x32xbf16>, vector<2x32xf32> -> vector<2x32xf32>
    %268 = arith.addf %264, %267 : vector<2x32xf32>
    %269 = arith.negf %268 : vector<2x32xf32>
    %270 = math.exp %269 : vector<2x32xf32>
    %cst_113 = arith.constant 1.000000e+00 : f32
    %271 = vector.broadcast %cst_113 : f32 to vector<2x32xf32>
    %272 = arith.addf %271, %270 : vector<2x32xf32>
    %273 = arith.divf %271, %272 : vector<2x32xf32>
    %c1_114 = arith.constant 1 : index
    %274 = arith.index_cast %261 : i32 to index
    %c0_115 = arith.constant 0 : index
    %275 = vector.load %arg10[%c1_114, %274, %c0_115] : memref<4x16x32xf32, #tpu.memory_space<vmem>>, vector<1x2x32xf32>
    %276 = vector.shape_cast %275 : vector<1x2x32xf32> to vector<2x32xf32>
    %277 = vector.extract_strided_slice %41 {offsets = [1, 0, 0], sizes = [1, 32, 32], strides = [1, 1, 1]} : vector<4x32x32xbf16> to vector<1x32x32xbf16>
    %278 = vector.shape_cast %277 : vector<1x32x32xbf16> to vector<32x32xbf16>
    %cst_116 = arith.constant dense<0.000000e+00> : vector<2x32xf32>
    %279 = tpu.matmul %259, %278, %cst_116 {dimension_numbers = #tpu.dot_dimension_numbers<[1], [0], [0], [1], [0, 0, 1, 1], [], []>} : vector<2x32xbf16>, vector<32x32xbf16>, vector<2x32xf32> -> vector<2x32xf32>
    %280 = arith.addf %276, %279 : vector<2x32xf32>
    %281 = arith.negf %280 : vector<2x32xf32>
    %282 = math.exp %281 : vector<2x32xf32>
    %cst_117 = arith.constant 1.000000e+00 : f32
    %283 = vector.broadcast %cst_117 : f32 to vector<2x32xf32>
    %284 = arith.addf %283, %282 : vector<2x32xf32>
    %285 = arith.divf %283, %284 : vector<2x32xf32>
    %c2_118 = arith.constant 2 : index
    %286 = arith.index_cast %261 : i32 to index
    %c0_119 = arith.constant 0 : index
    %287 = vector.load %arg10[%c2_118, %286, %c0_119] : memref<4x16x32xf32, #tpu.memory_space<vmem>>, vector<1x2x32xf32>
    %288 = vector.shape_cast %287 : vector<1x2x32xf32> to vector<2x32xf32>
    %289 = vector.extract_strided_slice %41 {offsets = [2, 0, 0], sizes = [1, 32, 32], strides = [1, 1, 1]} : vector<4x32x32xbf16> to vector<1x32x32xbf16>
    %290 = vector.shape_cast %289 : vector<1x32x32xbf16> to vector<32x32xbf16>
    %cst_120 = arith.constant dense<0.000000e+00> : vector<2x32xf32>
    %291 = tpu.matmul %259, %290, %cst_120 {dimension_numbers = #tpu.dot_dimension_numbers<[1], [0], [0], [1], [0, 0, 1, 1], [], []>} : vector<2x32xbf16>, vector<32x32xbf16>, vector<2x32xf32> -> vector<2x32xf32>
    %292 = arith.addf %288, %291 : vector<2x32xf32>
    %293 = math.tanh %292 : vector<2x32xf32>
    %c3_121 = arith.constant 3 : index
    %294 = arith.index_cast %261 : i32 to index
    %c0_122 = arith.constant 0 : index
    %295 = vector.load %arg10[%c3_121, %294, %c0_122] : memref<4x16x32xf32, #tpu.memory_space<vmem>>, vector<1x2x32xf32>
    %296 = vector.shape_cast %295 : vector<1x2x32xf32> to vector<2x32xf32>
    %297 = vector.extract_strided_slice %41 {offsets = [3, 0, 0], sizes = [1, 32, 32], strides = [1, 1, 1]} : vector<4x32x32xbf16> to vector<1x32x32xbf16>
    %298 = vector.shape_cast %297 : vector<1x32x32xbf16> to vector<32x32xbf16>
    %cst_123 = arith.constant dense<0.000000e+00> : vector<2x32xf32>
    %299 = tpu.matmul %259, %298, %cst_123 {dimension_numbers = #tpu.dot_dimension_numbers<[1], [0], [0], [1], [0, 0, 1, 1], [], []>} : vector<2x32xbf16>, vector<32x32xbf16>, vector<2x32xf32> -> vector<2x32xf32>
    %300 = arith.addf %296, %299 : vector<2x32xf32>
    %301 = arith.negf %300 : vector<2x32xf32>
    %302 = math.exp %301 : vector<2x32xf32>
    %cst_124 = arith.constant 1.000000e+00 : f32
    %303 = vector.broadcast %cst_124 : f32 to vector<2x32xf32>
    %304 = arith.addf %303, %302 : vector<2x32xf32>
    %305 = arith.divf %303, %304 : vector<2x32xf32>
    %306 = arith.mulf %285, %254 : vector<2x32xf32>
    %307 = arith.mulf %273, %293 : vector<2x32xf32>
    %308 = arith.addf %306, %307 : vector<2x32xf32>
    %309 = math.tanh %308 : vector<2x32xf32>
    %310 = arith.mulf %305, %309 : vector<2x32xf32>
    %311 = arith.index_cast %261 : i32 to index
    %c0_125 = arith.constant 0 : index
    %312 = vector.load %arg11[%311, %c0_125] : memref<16x32xf32, #tpu.memory_space<vmem>>, vector<2x32xf32>
    tpu.vector_store %arg11[%311, %c0_125], %310 {strides = array<i32>} : memref<16x32xf32, #tpu.memory_space<vmem>>, vector<2x32xf32>,
    %c5_i32 = arith.constant 5 : i32
    %313 = arith.truncf %310 : vector<2x32xf32> to vector<2x32xbf16>
    %c2_i32_126 = arith.constant 2 : i32
    %314 = arith.muli %c5_i32, %c2_i32_126 : i32
    %315 = tpu.assume_multiple %314, 2 : i32
    %c0_127 = arith.constant 0 : index
    %316 = arith.index_cast %315 : i32 to index
    %c0_128 = arith.constant 0 : index
    %317 = vector.load %arg10[%c0_127, %316, %c0_128] : memref<4x16x32xf32, #tpu.memory_space<vmem>>, vector<1x2x32xf32>
    %318 = vector.shape_cast %317 : vector<1x2x32xf32> to vector<2x32xf32>
    %319 = vector.extract_strided_slice %41 {offsets = [0, 0, 0], sizes = [1, 32, 32], strides = [1, 1, 1]} : vector<4x32x32xbf16> to vector<1x32x32xbf16>
    %320 = vector.shape_cast %319 : vector<1x32x32xbf16> to vector<32x32xbf16>
    %cst_129 = arith.constant dense<0.000000e+00> : vector<2x32xf32>
    %321 = tpu.matmul %313, %320, %cst_129 {dimension_numbers = #tpu.dot_dimension_numbers<[1], [0], [0], [1], [0, 0, 1, 1], [], []>} : vector<2x32xbf16>, vector<32x32xbf16>, vector<2x32xf32> -> vector<2x32xf32>
    %322 = arith.addf %318, %321 : vector<2x32xf32>
    %323 = arith.negf %322 : vector<2x32xf32>
    %324 = math.exp %323 : vector<2x32xf32>
    %cst_130 = arith.constant 1.000000e+00 : f32
    %325 = vector.broadcast %cst_130 : f32 to vector<2x32xf32>
    %326 = arith.addf %325, %324 : vector<2x32xf32>
    %327 = arith.divf %325, %326 : vector<2x32xf32>
    %c1_131 = arith.constant 1 : index
    %328 = arith.index_cast %315 : i32 to index
    %c0_132 = arith.constant 0 : index
    %329 = vector.load %arg10[%c1_131, %328, %c0_132] : memref<4x16x32xf32, #tpu.memory_space<vmem>>, vector<1x2x32xf32>
    %330 = vector.shape_cast %329 : vector<1x2x32xf32> to vector<2x32xf32>
    %331 = vector.extract_strided_slice %41 {offsets = [1, 0, 0], sizes = [1, 32, 32], strides = [1, 1, 1]} : vector<4x32x32xbf16> to vector<1x32x32xbf16>
    %332 = vector.shape_cast %331 : vector<1x32x32xbf16> to vector<32x32xbf16>
    %cst_133 = arith.constant dense<0.000000e+00> : vector<2x32xf32>
    %333 = tpu.matmul %313, %332, %cst_133 {dimension_numbers = #tpu.dot_dimension_numbers<[1], [0], [0], [1], [0, 0, 1, 1], [], []>} : vector<2x32xbf16>, vector<32x32xbf16>, vector<2x32xf32> -> vector<2x32xf32>
    %334 = arith.addf %330, %333 : vector<2x32xf32>
    %335 = arith.negf %334 : vector<2x32xf32>
    %336 = math.exp %335 : vector<2x32xf32>
    %cst_134 = arith.constant 1.000000e+00 : f32
    %337 = vector.broadcast %cst_134 : f32 to vector<2x32xf32>
    %338 = arith.addf %337, %336 : vector<2x32xf32>
    %339 = arith.divf %337, %338 : vector<2x32xf32>
    %c2_135 = arith.constant 2 : index
    %340 = arith.index_cast %315 : i32 to index
    %c0_136 = arith.constant 0 : index
    %341 = vector.load %arg10[%c2_135, %340, %c0_136] : memref<4x16x32xf32, #tpu.memory_space<vmem>>, vector<1x2x32xf32>
    %342 = vector.shape_cast %341 : vector<1x2x32xf32> to vector<2x32xf32>
    %343 = vector.extract_strided_slice %41 {offsets = [2, 0, 0], sizes = [1, 32, 32], strides = [1, 1, 1]} : vector<4x32x32xbf16> to vector<1x32x32xbf16>
    %344 = vector.shape_cast %343 : vector<1x32x32xbf16> to vector<32x32xbf16>
    %cst_137 = arith.constant dense<0.000000e+00> : vector<2x32xf32>
    %345 = tpu.matmul %313, %344, %cst_137 {dimension_numbers = #tpu.dot_dimension_numbers<[1], [0], [0], [1], [0, 0, 1, 1], [], []>} : vector<2x32xbf16>, vector<32x32xbf16>, vector<2x32xf32> -> vector<2x32xf32>
    %346 = arith.addf %342, %345 : vector<2x32xf32>
    %347 = math.tanh %346 : vector<2x32xf32>
    %c3_138 = arith.constant 3 : index
    %348 = arith.index_cast %315 : i32 to index
    %c0_139 = arith.constant 0 : index
    %349 = vector.load %arg10[%c3_138, %348, %c0_139] : memref<4x16x32xf32, #tpu.memory_space<vmem>>, vector<1x2x32xf32>
    %350 = vector.shape_cast %349 : vector<1x2x32xf32> to vector<2x32xf32>
    %351 = vector.extract_strided_slice %41 {offsets = [3, 0, 0], sizes = [1, 32, 32], strides = [1, 1, 1]} : vector<4x32x32xbf16> to vector<1x32x32xbf16>
    %352 = vector.shape_cast %351 : vector<1x32x32xbf16> to vector<32x32xbf16>
    %cst_140 = arith.constant dense<0.000000e+00> : vector<2x32xf32>
    %353 = tpu.matmul %313, %352, %cst_140 {dimension_numbers = #tpu.dot_dimension_numbers<[1], [0], [0], [1], [0, 0, 1, 1], [], []>} : vector<2x32xbf16>, vector<32x32xbf16>, vector<2x32xf32> -> vector<2x32xf32>
    %354 = arith.addf %350, %353 : vector<2x32xf32>
    %355 = arith.negf %354 : vector<2x32xf32>
    %356 = math.exp %355 : vector<2x32xf32>
    %cst_141 = arith.constant 1.000000e+00 : f32
    %357 = vector.broadcast %cst_141 : f32 to vector<2x32xf32>
    %358 = arith.addf %357, %356 : vector<2x32xf32>
    %359 = arith.divf %357, %358 : vector<2x32xf32>
    %360 = arith.mulf %339, %308 : vector<2x32xf32>
    %361 = arith.mulf %327, %347 : vector<2x32xf32>
    %362 = arith.addf %360, %361 : vector<2x32xf32>
    %363 = math.tanh %362 : vector<2x32xf32>
    %364 = arith.mulf %359, %363 : vector<2x32xf32>
    %365 = arith.index_cast %315 : i32 to index
    %c0_142 = arith.constant 0 : index
    %366 = vector.load %arg11[%365, %c0_142] : memref<16x32xf32, #tpu.memory_space<vmem>>, vector<2x32xf32>
    tpu.vector_store %arg11[%365, %c0_142], %364 {strides = array<i32>} : memref<16x32xf32, #tpu.memory_space<vmem>>, vector<2x32xf32>,
    %c6_i32 = arith.constant 6 : i32
    %367 = arith.truncf %364 : vector<2x32xf32> to vector<2x32xbf16>
    %c2_i32_143 = arith.constant 2 : i32
    %368 = arith.muli %c6_i32, %c2_i32_143 : i32
    %369 = tpu.assume_multiple %368, 2 : i32
    %c0_144 = arith.constant 0 : index
    %370 = arith.index_cast %369 : i32 to index
    %c0_145 = arith.constant 0 : index
    %371 = vector.load %arg10[%c0_144, %370, %c0_145] : memref<4x16x32xf32, #tpu.memory_space<vmem>>, vector<1x2x32xf32>
    %372 = vector.shape_cast %371 : vector<1x2x32xf32> to vector<2x32xf32>
    %373 = vector.extract_strided_slice %41 {offsets = [0, 0, 0], sizes = [1, 32, 32], strides = [1, 1, 1]} : vector<4x32x32xbf16> to vector<1x32x32xbf16>
    %374 = vector.shape_cast %373 : vector<1x32x32xbf16> to vector<32x32xbf16>
    %cst_146 = arith.constant dense<0.000000e+00> : vector<2x32xf32>
    %375 = tpu.matmul %367, %374, %cst_146 {dimension_numbers = #tpu.dot_dimension_numbers<[1], [0], [0], [1], [0, 0, 1, 1], [], []>} : vector<2x32xbf16>, vector<32x32xbf16>, vector<2x32xf32> -> vector<2x32xf32>
    %376 = arith.addf %372, %375 : vector<2x32xf32>
    %377 = arith.negf %376 : vector<2x32xf32>
    %378 = math.exp %377 : vector<2x32xf32>
    %cst_147 = arith.constant 1.000000e+00 : f32
    %379 = vector.broadcast %cst_147 : f32 to vector<2x32xf32>
    %380 = arith.addf %379, %378 : vector<2x32xf32>
    %381 = arith.divf %379, %380 : vector<2x32xf32>
    %c1_148 = arith.constant 1 : index
    %382 = arith.index_cast %369 : i32 to index
    %c0_149 = arith.constant 0 : index
    %383 = vector.load %arg10[%c1_148, %382, %c0_149] : memref<4x16x32xf32, #tpu.memory_space<vmem>>, vector<1x2x32xf32>
    %384 = vector.shape_cast %383 : vector<1x2x32xf32> to vector<2x32xf32>
    %385 = vector.extract_strided_slice %41 {offsets = [1, 0, 0], sizes = [1, 32, 32], strides = [1, 1, 1]} : vector<4x32x32xbf16> to vector<1x32x32xbf16>
    %386 = vector.shape_cast %385 : vector<1x32x32xbf16> to vector<32x32xbf16>
    %cst_150 = arith.constant dense<0.000000e+00> : vector<2x32xf32>
    %387 = tpu.matmul %367, %386, %cst_150 {dimension_numbers = #tpu.dot_dimension_numbers<[1], [0], [0], [1], [0, 0, 1, 1], [], []>} : vector<2x32xbf16>, vector<32x32xbf16>, vector<2x32xf32> -> vector<2x32xf32>
    %388 = arith.addf %384, %387 : vector<2x32xf32>
    %389 = arith.negf %388 : vector<2x32xf32>
    %390 = math.exp %389 : vector<2x32xf32>
    %cst_151 = arith.constant 1.000000e+00 : f32
    %391 = vector.broadcast %cst_151 : f32 to vector<2x32xf32>
    %392 = arith.addf %391, %390 : vector<2x32xf32>
    %393 = arith.divf %391, %392 : vector<2x32xf32>
    %c2_152 = arith.constant 2 : index
    %394 = arith.index_cast %369 : i32 to index
    %c0_153 = arith.constant 0 : index
    %395 = vector.load %arg10[%c2_152, %394, %c0_153] : memref<4x16x32xf32, #tpu.memory_space<vmem>>, vector<1x2x32xf32>
    %396 = vector.shape_cast %395 : vector<1x2x32xf32> to vector<2x32xf32>
    %397 = vector.extract_strided_slice %41 {offsets = [2, 0, 0], sizes = [1, 32, 32], strides = [1, 1, 1]} : vector<4x32x32xbf16> to vector<1x32x32xbf16>
    %398 = vector.shape_cast %397 : vector<1x32x32xbf16> to vector<32x32xbf16>
    %cst_154 = arith.constant dense<0.000000e+00> : vector<2x32xf32>
    %399 = tpu.matmul %367, %398, %cst_154 {dimension_numbers = #tpu.dot_dimension_numbers<[1], [0], [0], [1], [0, 0, 1, 1], [], []>} : vector<2x32xbf16>, vector<32x32xbf16>, vector<2x32xf32> -> vector<2x32xf32>
    %400 = arith.addf %396, %399 : vector<2x32xf32>
    %401 = math.tanh %400 : vector<2x32xf32>
    %c3_155 = arith.constant 3 : index
    %402 = arith.index_cast %369 : i32 to index
    %c0_156 = arith.constant 0 : index
    %403 = vector.load %arg10[%c3_155, %402, %c0_156] : memref<4x16x32xf32, #tpu.memory_space<vmem>>, vector<1x2x32xf32>
    %404 = vector.shape_cast %403 : vector<1x2x32xf32> to vector<2x32xf32>
    %405 = vector.extract_strided_slice %41 {offsets = [3, 0, 0], sizes = [1, 32, 32], strides = [1, 1, 1]} : vector<4x32x32xbf16> to vector<1x32x32xbf16>
    %406 = vector.shape_cast %405 : vector<1x32x32xbf16> to vector<32x32xbf16>
    %cst_157 = arith.constant dense<0.000000e+00> : vector<2x32xf32>
    %407 = tpu.matmul %367, %406, %cst_157 {dimension_numbers = #tpu.dot_dimension_numbers<[1], [0], [0], [1], [0, 0, 1, 1], [], []>} : vector<2x32xbf16>, vector<32x32xbf16>, vector<2x32xf32> -> vector<2x32xf32>
    %408 = arith.addf %404, %407 : vector<2x32xf32>
    %409 = arith.negf %408 : vector<2x32xf32>
    %410 = math.exp %409 : vector<2x32xf32>
    %cst_158 = arith.constant 1.000000e+00 : f32
    %411 = vector.broadcast %cst_158 : f32 to vector<2x32xf32>
    %412 = arith.addf %411, %410 : vector<2x32xf32>
    %413 = arith.divf %411, %412 : vector<2x32xf32>
    %414 = arith.mulf %393, %362 : vector<2x32xf32>
    %415 = arith.mulf %381, %401 : vector<2x32xf32>
    %416 = arith.addf %414, %415 : vector<2x32xf32>
    %417 = math.tanh %416 : vector<2x32xf32>
    %418 = arith.mulf %413, %417 : vector<2x32xf32>
    %419 = arith.index_cast %369 : i32 to index
    %c0_159 = arith.constant 0 : index
    %420 = vector.load %arg11[%419, %c0_159] : memref<16x32xf32, #tpu.memory_space<vmem>>, vector<2x32xf32>
    tpu.vector_store %arg11[%419, %c0_159], %418 {strides = array<i32>} : memref<16x32xf32, #tpu.memory_space<vmem>>, vector<2x32xf32>,
    %c7_i32 = arith.constant 7 : i32
    %421 = arith.truncf %418 : vector<2x32xf32> to vector<2x32xbf16>
    %c2_i32_160 = arith.constant 2 : i32
    %422 = arith.muli %c7_i32, %c2_i32_160 : i32
    %423 = tpu.assume_multiple %422, 2 : i32
    %c0_161 = arith.constant 0 : index
    %424 = arith.index_cast %423 : i32 to index
    %c0_162 = arith.constant 0 : index
    %425 = vector.load %arg10[%c0_161, %424, %c0_162] : memref<4x16x32xf32, #tpu.memory_space<vmem>>, vector<1x2x32xf32>
    %426 = vector.shape_cast %425 : vector<1x2x32xf32> to vector<2x32xf32>
    %427 = vector.extract_strided_slice %41 {offsets = [0, 0, 0], sizes = [1, 32, 32], strides = [1, 1, 1]} : vector<4x32x32xbf16> to vector<1x32x32xbf16>
    %428 = vector.shape_cast %427 : vector<1x32x32xbf16> to vector<32x32xbf16>
    %cst_163 = arith.constant dense<0.000000e+00> : vector<2x32xf32>
    %429 = tpu.matmul %421, %428, %cst_163 {dimension_numbers = #tpu.dot_dimension_numbers<[1], [0], [0], [1], [0, 0, 1, 1], [], []>} : vector<2x32xbf16>, vector<32x32xbf16>, vector<2x32xf32> -> vector<2x32xf32>
    %430 = arith.addf %426, %429 : vector<2x32xf32>
    %431 = arith.negf %430 : vector<2x32xf32>
    %432 = math.exp %431 : vector<2x32xf32>
    %cst_164 = arith.constant 1.000000e+00 : f32
    %433 = vector.broadcast %cst_164 : f32 to vector<2x32xf32>
    %434 = arith.addf %433, %432 : vector<2x32xf32>
    %435 = arith.divf %433, %434 : vector<2x32xf32>
    %c1_165 = arith.constant 1 : index
    %436 = arith.index_cast %423 : i32 to index
    %c0_166 = arith.constant 0 : index
    %437 = vector.load %arg10[%c1_165, %436, %c0_166] : memref<4x16x32xf32, #tpu.memory_space<vmem>>, vector<1x2x32xf32>
    %438 = vector.shape_cast %437 : vector<1x2x32xf32> to vector<2x32xf32>
    %439 = vector.extract_strided_slice %41 {offsets = [1, 0, 0], sizes = [1, 32, 32], strides = [1, 1, 1]} : vector<4x32x32xbf16> to vector<1x32x32xbf16>
    %440 = vector.shape_cast %439 : vector<1x32x32xbf16> to vector<32x32xbf16>
    %cst_167 = arith.constant dense<0.000000e+00> : vector<2x32xf32>
    %441 = tpu.matmul %421, %440, %cst_167 {dimension_numbers = #tpu.dot_dimension_numbers<[1], [0], [0], [1], [0, 0, 1, 1], [], []>} : vector<2x32xbf16>, vector<32x32xbf16>, vector<2x32xf32> -> vector<2x32xf32>
    %442 = arith.addf %438, %441 : vector<2x32xf32>
    %443 = arith.negf %442 : vector<2x32xf32>
    %444 = math.exp %443 : vector<2x32xf32>
    %cst_168 = arith.constant 1.000000e+00 : f32
    %445 = vector.broadcast %cst_168 : f32 to vector<2x32xf32>
    %446 = arith.addf %445, %444 : vector<2x32xf32>
    %447 = arith.divf %445, %446 : vector<2x32xf32>
    %c2_169 = arith.constant 2 : index
    %448 = arith.index_cast %423 : i32 to index
    %c0_170 = arith.constant 0 : index
    %449 = vector.load %arg10[%c2_169, %448, %c0_170] : memref<4x16x32xf32, #tpu.memory_space<vmem>>, vector<1x2x32xf32>
    %450 = vector.shape_cast %449 : vector<1x2x32xf32> to vector<2x32xf32>
    %451 = vector.extract_strided_slice %41 {offsets = [2, 0, 0], sizes = [1, 32, 32], strides = [1, 1, 1]} : vector<4x32x32xbf16> to vector<1x32x32xbf16>
    %452 = vector.shape_cast %451 : vector<1x32x32xbf16> to vector<32x32xbf16>
    %cst_171 = arith.constant dense<0.000000e+00> : vector<2x32xf32>
    %453 = tpu.matmul %421, %452, %cst_171 {dimension_numbers = #tpu.dot_dimension_numbers<[1], [0], [0], [1], [0, 0, 1, 1], [], []>} : vector<2x32xbf16>, vector<32x32xbf16>, vector<2x32xf32> -> vector<2x32xf32>
    %454 = arith.addf %450, %453 : vector<2x32xf32>
    %455 = math.tanh %454 : vector<2x32xf32>
    %c3_172 = arith.constant 3 : index
    %456 = arith.index_cast %423 : i32 to index
    %c0_173 = arith.constant 0 : index
    %457 = vector.load %arg10[%c3_172, %456, %c0_173] : memref<4x16x32xf32, #tpu.memory_space<vmem>>, vector<1x2x32xf32>
    %458 = vector.shape_cast %457 : vector<1x2x32xf32> to vector<2x32xf32>
    %459 = vector.extract_strided_slice %41 {offsets = [3, 0, 0], sizes = [1, 32, 32], strides = [1, 1, 1]} : vector<4x32x32xbf16> to vector<1x32x32xbf16>
    %460 = vector.shape_cast %459 : vector<1x32x32xbf16> to vector<32x32xbf16>
    %cst_174 = arith.constant dense<0.000000e+00> : vector<2x32xf32>
    %461 = tpu.matmul %421, %460, %cst_174 {dimension_numbers = #tpu.dot_dimension_numbers<[1], [0], [0], [1], [0, 0, 1, 1], [], []>} : vector<2x32xbf16>, vector<32x32xbf16>, vector<2x32xf32> -> vector<2x32xf32>
    %462 = arith.addf %458, %461 : vector<2x32xf32>
    %463 = arith.negf %462 : vector<2x32xf32>
    %464 = math.exp %463 : vector<2x32xf32>
    %cst_175 = arith.constant 1.000000e+00 : f32
    %465 = vector.broadcast %cst_175 : f32 to vector<2x32xf32>
    %466 = arith.addf %465, %464 : vector<2x32xf32>
    %467 = arith.divf %465, %466 : vector<2x32xf32>
    %468 = arith.mulf %447, %416 : vector<2x32xf32>
    %469 = arith.mulf %435, %455 : vector<2x32xf32>
    %470 = arith.addf %468, %469 : vector<2x32xf32>
    %471 = math.tanh %470 : vector<2x32xf32>
    %472 = arith.mulf %467, %471 : vector<2x32xf32>
    %473 = arith.index_cast %423 : i32 to index
    %c0_176 = arith.constant 0 : index
    %474 = vector.load %arg11[%473, %c0_176] : memref<16x32xf32, #tpu.memory_space<vmem>>, vector<2x32xf32>
    tpu.vector_store %arg11[%473, %c0_176], %472 {strides = array<i32>} : memref<16x32xf32, #tpu.memory_space<vmem>>, vector<2x32xf32>,
    %c8_i32 = arith.constant 8 : i32
    %c0_177 = arith.constant 0 : index
    %c0_178 = arith.constant 0 : index
    %c0_179 = arith.constant 0 : index
    %475 = vector.load %arg8[%c0_177, %c0_178, %c0_179] : memref<2x2x32xf32, #tpu.memory_space<vmem>>, vector<1x2x32xf32>
    %476 = vector.shape_cast %475 : vector<1x2x32xf32> to vector<2x32xf32>
    %477 = vector.shape_cast %472 : vector<2x32xf32> to vector<1x2x32xf32>
    tpu.vector_store %arg8[%c0_177, %c0_178, %c0_179], %477 {strides = array<i32>} : memref<2x2x32xf32, #tpu.memory_space<vmem>>, vector<1x2x32xf32>,
    %c0_180 = arith.constant 0 : index
    %c0_181 = arith.constant 0 : index
    %c0_182 = arith.constant 0 : index
    %478 = vector.load %arg9[%c0_180, %c0_181, %c0_182] : memref<2x2x32xf32, #tpu.memory_space<vmem>>, vector<1x2x32xf32>
    %479 = vector.shape_cast %478 : vector<1x2x32xf32> to vector<2x32xf32>
    %480 = vector.shape_cast %470 : vector<2x32xf32> to vector<1x2x32xf32>
    tpu.vector_store %arg9[%c0_180, %c0_181, %c0_182], %480 {strides = array<i32>} : memref<2x2x32xf32, #tpu.memory_space<vmem>>, vector<1x2x32xf32>,
    %c0_183 = arith.constant 0 : index
    %c0_184 = arith.constant 0 : index
    %481 = vector.load %arg11[%c0_183, %c0_184] : memref<16x32xf32, #tpu.memory_space<vmem>>, vector<16x32xf32>
    %482 = arith.truncf %481 : vector<16x32xf32> to vector<16x32xbf16>
    %c0_185 = arith.constant 0 : index
    %c0_186 = arith.constant 0 : index
    %c0_187 = arith.constant 0 : index
    %483 = vector.load %arg5[%c0_185, %c0_186, %c0_187] : memref<4x32x32xbf16, #tpu.memory_space<vmem>>, vector<1x32x32xbf16>
    %484 = vector.shape_cast %483 : vector<1x32x32xbf16> to vector<32x32xbf16>
    %cst_188 = arith.constant dense<0.000000e+00> : vector<16x32xf32>
    %485 = tpu.matmul %482, %484, %cst_188 {dimension_numbers = #tpu.dot_dimension_numbers<[1], [0], [0], [1], [0, 0, 1, 1], [], []>} : vector<16x32xbf16>, vector<32x32xbf16>, vector<16x32xf32> -> vector<16x32xf32>
    %c0_189 = arith.constant 0 : index
    %c0_190 = arith.constant 0 : index
    %c0_191 = arith.constant 0 : index
    %486 = vector.load %arg7[%c0_189, %c0_190, %c0_191] : memref<4x1x32xf32, #tpu.memory_space<vmem>>, vector<1x1x32xf32>
    %487 = vector.shape_cast %486 : vector<1x1x32xf32> to vector<1x32xf32>
    %488 = vector.broadcast %487 : vector<1x32xf32> to vector<16x32xf32>
    %489 = arith.addf %485, %488 : vector<16x32xf32>
    %c0_192 = arith.constant 0 : index
    %c0_193 = arith.constant 0 : index
    %c0_194 = arith.constant 0 : index
    %490 = vector.load %arg10[%c0_192, %c0_193, %c0_194] : memref<4x16x32xf32, #tpu.memory_space<vmem>>, vector<1x16x32xf32>
    %491 = vector.shape_cast %490 : vector<1x16x32xf32> to vector<16x32xf32>
    %492 = vector.shape_cast %489 : vector<16x32xf32> to vector<1x16x32xf32>
    tpu.vector_store %arg10[%c0_192, %c0_193, %c0_194], %492 {strides = array<i32>} : memref<4x16x32xf32, #tpu.memory_space<vmem>>, vector<1x16x32xf32>,
    %c1_195 = arith.constant 1 : index
    %c0_196 = arith.constant 0 : index
    %c0_197 = arith.constant 0 : index
    %493 = vector.load %arg5[%c1_195, %c0_196, %c0_197] : memref<4x32x32xbf16, #tpu.memory_space<vmem>>, vector<1x32x32xbf16>
    %494 = vector.shape_cast %493 : vector<1x32x32xbf16> to vector<32x32xbf16>
    %cst_198 = arith.constant dense<0.000000e+00> : vector<16x32xf32>
    %495 = tpu.matmul %482, %494, %cst_198 {dimension_numbers = #tpu.dot_dimension_numbers<[1], [0], [0], [1], [0, 0, 1, 1], [], []>} : vector<16x32xbf16>, vector<32x32xbf16>, vector<16x32xf32> -> vector<16x32xf32>
    %c1_199 = arith.constant 1 : index
    %c0_200 = arith.constant 0 : index
    %c0_201 = arith.constant 0 : index
    %496 = vector.load %arg7[%c1_199, %c0_200, %c0_201] : memref<4x1x32xf32, #tpu.memory_space<vmem>>, vector<1x1x32xf32>
    %497 = vector.shape_cast %496 : vector<1x1x32xf32> to vector<1x32xf32>
    %498 = vector.broadcast %497 : vector<1x32xf32> to vector<16x32xf32>
    %499 = arith.addf %495, %498 : vector<16x32xf32>
    %c1_202 = arith.constant 1 : index
    %c0_203 = arith.constant 0 : index
    %c0_204 = arith.constant 0 : index
    %500 = vector.load %arg10[%c1_202, %c0_203, %c0_204] : memref<4x16x32xf32, #tpu.memory_space<vmem>>, vector<1x16x32xf32>
    %501 = vector.shape_cast %500 : vector<1x16x32xf32> to vector<16x32xf32>
    %502 = vector.shape_cast %499 : vector<16x32xf32> to vector<1x16x32xf32>
    tpu.vector_store %arg10[%c1_202, %c0_203, %c0_204], %502 {strides = array<i32>} : memref<4x16x32xf32, #tpu.memory_space<vmem>>, vector<1x16x32xf32>,
    %c2_205 = arith.constant 2 : index
    %c0_206 = arith.constant 0 : index
    %c0_207 = arith.constant 0 : index
    %503 = vector.load %arg5[%c2_205, %c0_206, %c0_207] : memref<4x32x32xbf16, #tpu.memory_space<vmem>>, vector<1x32x32xbf16>
    %504 = vector.shape_cast %503 : vector<1x32x32xbf16> to vector<32x32xbf16>
    %cst_208 = arith.constant dense<0.000000e+00> : vector<16x32xf32>
    %505 = tpu.matmul %482, %504, %cst_208 {dimension_numbers = #tpu.dot_dimension_numbers<[1], [0], [0], [1], [0, 0, 1, 1], [], []>} : vector<16x32xbf16>, vector<32x32xbf16>, vector<16x32xf32> -> vector<16x32xf32>
    %c2_209 = arith.constant 2 : index
    %c0_210 = arith.constant 0 : index
    %c0_211 = arith.constant 0 : index
    %506 = vector.load %arg7[%c2_209, %c0_210, %c0_211] : memref<4x1x32xf32, #tpu.memory_space<vmem>>, vector<1x1x32xf32>
    %507 = vector.shape_cast %506 : vector<1x1x32xf32> to vector<1x32xf32>
    %508 = vector.broadcast %507 : vector<1x32xf32> to vector<16x32xf32>
    %509 = arith.addf %505, %508 : vector<16x32xf32>
    %c2_212 = arith.constant 2 : index
    %c0_213 = arith.constant 0 : index
    %c0_214 = arith.constant 0 : index
    %510 = vector.load %arg10[%c2_212, %c0_213, %c0_214] : memref<4x16x32xf32, #tpu.memory_space<vmem>>, vector<1x16x32xf32>
    %511 = vector.shape_cast %510 : vector<1x16x32xf32> to vector<16x32xf32>
    %512 = vector.shape_cast %509 : vector<16x32xf32> to vector<1x16x32xf32>
    tpu.vector_store %arg10[%c2_212, %c0_213, %c0_214], %512 {strides = array<i32>} : memref<4x16x32xf32, #tpu.memory_space<vmem>>, vector<1x16x32xf32>,
    %c3_215 = arith.constant 3 : index
    %c0_216 = arith.constant 0 : index
    %c0_217 = arith.constant 0 : index
    %513 = vector.load %arg5[%c3_215, %c0_216, %c0_217] : memref<4x32x32xbf16, #tpu.memory_space<vmem>>, vector<1x32x32xbf16>
    %514 = vector.shape_cast %513 : vector<1x32x32xbf16> to vector<32x32xbf16>
    %cst_218 = arith.constant dense<0.000000e+00> : vector<16x32xf32>
    %515 = tpu.matmul %482, %514, %cst_218 {dimension_numbers = #tpu.dot_dimension_numbers<[1], [0], [0], [1], [0, 0, 1, 1], [], []>} : vector<16x32xbf16>, vector<32x32xbf16>, vector<16x32xf32> -> vector<16x32xf32>
    %c3_219 = arith.constant 3 : index
    %c0_220 = arith.constant 0 : index
    %c0_221 = arith.constant 0 : index
    %516 = vector.load %arg7[%c3_219, %c0_220, %c0_221] : memref<4x1x32xf32, #tpu.memory_space<vmem>>, vector<1x1x32xf32>
    %517 = vector.shape_cast %516 : vector<1x1x32xf32> to vector<1x32xf32>
    %518 = vector.broadcast %517 : vector<1x32xf32> to vector<16x32xf32>
    %519 = arith.addf %515, %518 : vector<16x32xf32>
    %c3_222 = arith.constant 3 : index
    %c0_223 = arith.constant 0 : index
    %c0_224 = arith.constant 0 : index
    %520 = vector.load %arg10[%c3_222, %c0_223, %c0_224] : memref<4x16x32xf32, #tpu.memory_space<vmem>>, vector<1x16x32xf32>
    %521 = vector.shape_cast %520 : vector<1x16x32xf32> to vector<16x32xf32>
    %522 = vector.shape_cast %519 : vector<16x32xf32> to vector<1x16x32xf32>
    tpu.vector_store %arg10[%c3_222, %c0_223, %c0_224], %522 {strides = array<i32>} : memref<4x16x32xf32, #tpu.memory_space<vmem>>, vector<1x16x32xf32>,
    %c0_225 = arith.constant 0 : index
    %c0_226 = arith.constant 0 : index
    %c0_227 = arith.constant 0 : index
    %523 = vector.load %arg6[%c0_225, %c0_226, %c0_227] : memref<4x32x32xbf16, #tpu.memory_space<vmem>>, vector<4x32x32xbf16>
    %cst_228 = arith.constant 0.000000e+00 : f32
    %524 = vector.broadcast %cst_228 : f32 to vector<2x32xf32>
    %c0_i32_229 = arith.constant 0 : i32
    %525 = arith.truncf %524 : vector<2x32xf32> to vector<2x32xbf16>
    %c2_i32_230 = arith.constant 2 : i32
    %526 = arith.muli %c0_i32_229, %c2_i32_230 : i32
    %527 = tpu.assume_multiple %526, 2 : i32
    %c0_231 = arith.constant 0 : index
    %528 = arith.index_cast %527 : i32 to index
    %c0_232 = arith.constant 0 : index
    %529 = vector.load %arg10[%c0_231, %528, %c0_232] : memref<4x16x32xf32, #tpu.memory_space<vmem>>, vector<1x2x32xf32>
    %530 = vector.shape_cast %529 : vector<1x2x32xf32> to vector<2x32xf32>
    %531 = vector.extract_strided_slice %523 {offsets = [0, 0, 0], sizes = [1, 32, 32], strides = [1, 1, 1]} : vector<4x32x32xbf16> to vector<1x32x32xbf16>
    %532 = vector.shape_cast %531 : vector<1x32x32xbf16> to vector<32x32xbf16>
    %cst_233 = arith.constant dense<0.000000e+00> : vector<2x32xf32>
    %533 = tpu.matmul %525, %532, %cst_233 {dimension_numbers = #tpu.dot_dimension_numbers<[1], [0], [0], [1], [0, 0, 1, 1], [], []>} : vector<2x32xbf16>, vector<32x32xbf16>, vector<2x32xf32> -> vector<2x32xf32>
    %534 = arith.addf %530, %533 : vector<2x32xf32>
    %535 = arith.negf %534 : vector<2x32xf32>
    %536 = math.exp %535 : vector<2x32xf32>
    %cst_234 = arith.constant 1.000000e+00 : f32
    %537 = vector.broadcast %cst_234 : f32 to vector<2x32xf32>
    %538 = arith.addf %537, %536 : vector<2x32xf32>
    %539 = arith.divf %537, %538 : vector<2x32xf32>
    %c1_235 = arith.constant 1 : index
    %540 = arith.index_cast %527 : i32 to index
    %c0_236 = arith.constant 0 : index
    %541 = vector.load %arg10[%c1_235, %540, %c0_236] : memref<4x16x32xf32, #tpu.memory_space<vmem>>, vector<1x2x32xf32>
    %542 = vector.shape_cast %541 : vector<1x2x32xf32> to vector<2x32xf32>
    %543 = vector.extract_strided_slice %523 {offsets = [1, 0, 0], sizes = [1, 32, 32], strides = [1, 1, 1]} : vector<4x32x32xbf16> to vector<1x32x32xbf16>
    %544 = vector.shape_cast %543 : vector<1x32x32xbf16> to vector<32x32xbf16>
    %cst_237 = arith.constant dense<0.000000e+00> : vector<2x32xf32>
    %545 = tpu.matmul %525, %544, %cst_237 {dimension_numbers = #tpu.dot_dimension_numbers<[1], [0], [0], [1], [0, 0, 1, 1], [], []>} : vector<2x32xbf16>, vector<32x32xbf16>, vector<2x32xf32> -> vector<2x32xf32>
    %546 = arith.addf %542, %545 : vector<2x32xf32>
    %547 = arith.negf %546 : vector<2x32xf32>
    %548 = math.exp %547 : vector<2x32xf32>
    %cst_238 = arith.constant 1.000000e+00 : f32
    %549 = vector.broadcast %cst_238 : f32 to vector<2x32xf32>
    %550 = arith.addf %549, %548 : vector<2x32xf32>
    %551 = arith.divf %549, %550 : vector<2x32xf32>
    %c2_239 = arith.constant 2 : index
    %552 = arith.index_cast %527 : i32 to index
    %c0_240 = arith.constant 0 : index
    %553 = vector.load %arg10[%c2_239, %552, %c0_240] : memref<4x16x32xf32, #tpu.memory_space<vmem>>, vector<1x2x32xf32>
    %554 = vector.shape_cast %553 : vector<1x2x32xf32> to vector<2x32xf32>
    %555 = vector.extract_strided_slice %523 {offsets = [2, 0, 0], sizes = [1, 32, 32], strides = [1, 1, 1]} : vector<4x32x32xbf16> to vector<1x32x32xbf16>
    %556 = vector.shape_cast %555 : vector<1x32x32xbf16> to vector<32x32xbf16>
    %cst_241 = arith.constant dense<0.000000e+00> : vector<2x32xf32>
    %557 = tpu.matmul %525, %556, %cst_241 {dimension_numbers = #tpu.dot_dimension_numbers<[1], [0], [0], [1], [0, 0, 1, 1], [], []>} : vector<2x32xbf16>, vector<32x32xbf16>, vector<2x32xf32> -> vector<2x32xf32>
    %558 = arith.addf %554, %557 : vector<2x32xf32>
    %559 = math.tanh %558 : vector<2x32xf32>
    %c3_242 = arith.constant 3 : index
    %560 = arith.index_cast %527 : i32 to index
    %c0_243 = arith.constant 0 : index
    %561 = vector.load %arg10[%c3_242, %560, %c0_243] : memref<4x16x32xf32, #tpu.memory_space<vmem>>, vector<1x2x32xf32>
    %562 = vector.shape_cast %561 : vector<1x2x32xf32> to vector<2x32xf32>
    %563 = vector.extract_strided_slice %523 {offsets = [3, 0, 0], sizes = [1, 32, 32], strides = [1, 1, 1]} : vector<4x32x32xbf16> to vector<1x32x32xbf16>
    %564 = vector.shape_cast %563 : vector<1x32x32xbf16> to vector<32x32xbf16>
    %cst_244 = arith.constant dense<0.000000e+00> : vector<2x32xf32>
    %565 = tpu.matmul %525, %564, %cst_244 {dimension_numbers = #tpu.dot_dimension_numbers<[1], [0], [0], [1], [0, 0, 1, 1], [], []>} : vector<2x32xbf16>, vector<32x32xbf16>, vector<2x32xf32> -> vector<2x32xf32>
    %566 = arith.addf %562, %565 : vector<2x32xf32>
    %567 = arith.negf %566 : vector<2x32xf32>
    %568 = math.exp %567 : vector<2x32xf32>
    %cst_245 = arith.constant 1.000000e+00 : f32
    %569 = vector.broadcast %cst_245 : f32 to vector<2x32xf32>
    %570 = arith.addf %569, %568 : vector<2x32xf32>
    %571 = arith.divf %569, %570 : vector<2x32xf32>
    %572 = arith.mulf %551, %524 : vector<2x32xf32>
    %573 = arith.mulf %539, %559 : vector<2x32xf32>
    %574 = arith.addf %572, %573 : vector<2x32xf32>
    %575 = math.tanh %574 : vector<2x32xf32>
    %576 = arith.mulf %571, %575 : vector<2x32xf32>
    %c1_i32_246 = arith.constant 1 : i32
    %577 = arith.truncf %576 : vector<2x32xf32> to vector<2x32xbf16>
    %c2_i32_247 = arith.constant 2 : i32
    %578 = arith.muli %c1_i32_246, %c2_i32_247 : i32
    %579 = tpu.assume_multiple %578, 2 : i32
    %c0_248 = arith.constant 0 : index
    %580 = arith.index_cast %579 : i32 to index
    %c0_249 = arith.constant 0 : index
    %581 = vector.load %arg10[%c0_248, %580, %c0_249] : memref<4x16x32xf32, #tpu.memory_space<vmem>>, vector<1x2x32xf32>
    %582 = vector.shape_cast %581 : vector<1x2x32xf32> to vector<2x32xf32>
    %583 = vector.extract_strided_slice %523 {offsets = [0, 0, 0], sizes = [1, 32, 32], strides = [1, 1, 1]} : vector<4x32x32xbf16> to vector<1x32x32xbf16>
    %584 = vector.shape_cast %583 : vector<1x32x32xbf16> to vector<32x32xbf16>
    %cst_250 = arith.constant dense<0.000000e+00> : vector<2x32xf32>
    %585 = tpu.matmul %577, %584, %cst_250 {dimension_numbers = #tpu.dot_dimension_numbers<[1], [0], [0], [1], [0, 0, 1, 1], [], []>} : vector<2x32xbf16>, vector<32x32xbf16>, vector<2x32xf32> -> vector<2x32xf32>
    %586 = arith.addf %582, %585 : vector<2x32xf32>
    %587 = arith.negf %586 : vector<2x32xf32>
    %588 = math.exp %587 : vector<2x32xf32>
    %cst_251 = arith.constant 1.000000e+00 : f32
    %589 = vector.broadcast %cst_251 : f32 to vector<2x32xf32>
    %590 = arith.addf %589, %588 : vector<2x32xf32>
    %591 = arith.divf %589, %590 : vector<2x32xf32>
    %c1_252 = arith.constant 1 : index
    %592 = arith.index_cast %579 : i32 to index
    %c0_253 = arith.constant 0 : index
    %593 = vector.load %arg10[%c1_252, %592, %c0_253] : memref<4x16x32xf32, #tpu.memory_space<vmem>>, vector<1x2x32xf32>
    %594 = vector.shape_cast %593 : vector<1x2x32xf32> to vector<2x32xf32>
    %595 = vector.extract_strided_slice %523 {offsets = [1, 0, 0], sizes = [1, 32, 32], strides = [1, 1, 1]} : vector<4x32x32xbf16> to vector<1x32x32xbf16>
    %596 = vector.shape_cast %595 : vector<1x32x32xbf16> to vector<32x32xbf16>
    %cst_254 = arith.constant dense<0.000000e+00> : vector<2x32xf32>
    %597 = tpu.matmul %577, %596, %cst_254 {dimension_numbers = #tpu.dot_dimension_numbers<[1], [0], [0], [1], [0, 0, 1, 1], [], []>} : vector<2x32xbf16>, vector<32x32xbf16>, vector<2x32xf32> -> vector<2x32xf32>
    %598 = arith.addf %594, %597 : vector<2x32xf32>
    %599 = arith.negf %598 : vector<2x32xf32>
    %600 = math.exp %599 : vector<2x32xf32>
    %cst_255 = arith.constant 1.000000e+00 : f32
    %601 = vector.broadcast %cst_255 : f32 to vector<2x32xf32>
    %602 = arith.addf %601, %600 : vector<2x32xf32>
    %603 = arith.divf %601, %602 : vector<2x32xf32>
    %c2_256 = arith.constant 2 : index
    %604 = arith.index_cast %579 : i32 to index
    %c0_257 = arith.constant 0 : index
    %605 = vector.load %arg10[%c2_256, %604, %c0_257] : memref<4x16x32xf32, #tpu.memory_space<vmem>>, vector<1x2x32xf32>
    %606 = vector.shape_cast %605 : vector<1x2x32xf32> to vector<2x32xf32>
    %607 = vector.extract_strided_slice %523 {offsets = [2, 0, 0], sizes = [1, 32, 32], strides = [1, 1, 1]} : vector<4x32x32xbf16> to vector<1x32x32xbf16>
    %608 = vector.shape_cast %607 : vector<1x32x32xbf16> to vector<32x32xbf16>
    %cst_258 = arith.constant dense<0.000000e+00> : vector<2x32xf32>
    %609 = tpu.matmul %577, %608, %cst_258 {dimension_numbers = #tpu.dot_dimension_numbers<[1], [0], [0], [1], [0, 0, 1, 1], [], []>} : vector<2x32xbf16>, vector<32x32xbf16>, vector<2x32xf32> -> vector<2x32xf32>
    %610 = arith.addf %606, %609 : vector<2x32xf32>
    %611 = math.tanh %610 : vector<2x32xf32>
    %c3_259 = arith.constant 3 : index
    %612 = arith.index_cast %579 : i32 to index
    %c0_260 = arith.constant 0 : index
    %613 = vector.load %arg10[%c3_259, %612, %c0_260] : memref<4x16x32xf32, #tpu.memory_space<vmem>>, vector<1x2x32xf32>
    %614 = vector.shape_cast %613 : vector<1x2x32xf32> to vector<2x32xf32>
    %615 = vector.extract_strided_slice %523 {offsets = [3, 0, 0], sizes = [1, 32, 32], strides = [1, 1, 1]} : vector<4x32x32xbf16> to vector<1x32x32xbf16>
    %616 = vector.shape_cast %615 : vector<1x32x32xbf16> to vector<32x32xbf16>
    %cst_261 = arith.constant dense<0.000000e+00> : vector<2x32xf32>
    %617 = tpu.matmul %577, %616, %cst_261 {dimension_numbers = #tpu.dot_dimension_numbers<[1], [0], [0], [1], [0, 0, 1, 1], [], []>} : vector<2x32xbf16>, vector<32x32xbf16>, vector<2x32xf32> -> vector<2x32xf32>
    %618 = arith.addf %614, %617 : vector<2x32xf32>
    %619 = arith.negf %618 : vector<2x32xf32>
    %620 = math.exp %619 : vector<2x32xf32>
    %cst_262 = arith.constant 1.000000e+00 : f32
    %621 = vector.broadcast %cst_262 : f32 to vector<2x32xf32>
    %622 = arith.addf %621, %620 : vector<2x32xf32>
    %623 = arith.divf %621, %622 : vector<2x32xf32>
    %624 = arith.mulf %603, %574 : vector<2x32xf32>
    %625 = arith.mulf %591, %611 : vector<2x32xf32>
    %626 = arith.addf %624, %625 : vector<2x32xf32>
    %627 = math.tanh %626 : vector<2x32xf32>
    %628 = arith.mulf %623, %627 : vector<2x32xf32>
    %c2_i32_263 = arith.constant 2 : i32
    %629 = arith.truncf %628 : vector<2x32xf32> to vector<2x32xbf16>
    %c2_i32_264 = arith.constant 2 : i32
    %630 = arith.muli %c2_i32_263, %c2_i32_264 : i32
    %631 = tpu.assume_multiple %630, 2 : i32
    %c0_265 = arith.constant 0 : index
    %632 = arith.index_cast %631 : i32 to index
    %c0_266 = arith.constant 0 : index
    %633 = vector.load %arg10[%c0_265, %632, %c0_266] : memref<4x16x32xf32, #tpu.memory_space<vmem>>, vector<1x2x32xf32>
    %634 = vector.shape_cast %633 : vector<1x2x32xf32> to vector<2x32xf32>
    %635 = vector.extract_strided_slice %523 {offsets = [0, 0, 0], sizes = [1, 32, 32], strides = [1, 1, 1]} : vector<4x32x32xbf16> to vector<1x32x32xbf16>
    %636 = vector.shape_cast %635 : vector<1x32x32xbf16> to vector<32x32xbf16>
    %cst_267 = arith.constant dense<0.000000e+00> : vector<2x32xf32>
    %637 = tpu.matmul %629, %636, %cst_267 {dimension_numbers = #tpu.dot_dimension_numbers<[1], [0], [0], [1], [0, 0, 1, 1], [], []>} : vector<2x32xbf16>, vector<32x32xbf16>, vector<2x32xf32> -> vector<2x32xf32>
    %638 = arith.addf %634, %637 : vector<2x32xf32>
    %639 = arith.negf %638 : vector<2x32xf32>
    %640 = math.exp %639 : vector<2x32xf32>
    %cst_268 = arith.constant 1.000000e+00 : f32
    %641 = vector.broadcast %cst_268 : f32 to vector<2x32xf32>
    %642 = arith.addf %641, %640 : vector<2x32xf32>
    %643 = arith.divf %641, %642 : vector<2x32xf32>
    %c1_269 = arith.constant 1 : index
    %644 = arith.index_cast %631 : i32 to index
    %c0_270 = arith.constant 0 : index
    %645 = vector.load %arg10[%c1_269, %644, %c0_270] : memref<4x16x32xf32, #tpu.memory_space<vmem>>, vector<1x2x32xf32>
    %646 = vector.shape_cast %645 : vector<1x2x32xf32> to vector<2x32xf32>
    %647 = vector.extract_strided_slice %523 {offsets = [1, 0, 0], sizes = [1, 32, 32], strides = [1, 1, 1]} : vector<4x32x32xbf16> to vector<1x32x32xbf16>
    %648 = vector.shape_cast %647 : vector<1x32x32xbf16> to vector<32x32xbf16>
    %cst_271 = arith.constant dense<0.000000e+00> : vector<2x32xf32>
    %649 = tpu.matmul %629, %648, %cst_271 {dimension_numbers = #tpu.dot_dimension_numbers<[1], [0], [0], [1], [0, 0, 1, 1], [], []>} : vector<2x32xbf16>, vector<32x32xbf16>, vector<2x32xf32> -> vector<2x32xf32>
    %650 = arith.addf %646, %649 : vector<2x32xf32>
    %651 = arith.negf %650 : vector<2x32xf32>
    %652 = math.exp %651 : vector<2x32xf32>
    %cst_272 = arith.constant 1.000000e+00 : f32
    %653 = vector.broadcast %cst_272 : f32 to vector<2x32xf32>
    %654 = arith.addf %653, %652 : vector<2x32xf32>
    %655 = arith.divf %653, %654 : vector<2x32xf32>
    %c2_273 = arith.constant 2 : index
    %656 = arith.index_cast %631 : i32 to index
    %c0_274 = arith.constant 0 : index
    %657 = vector.load %arg10[%c2_273, %656, %c0_274] : memref<4x16x32xf32, #tpu.memory_space<vmem>>, vector<1x2x32xf32>
    %658 = vector.shape_cast %657 : vector<1x2x32xf32> to vector<2x32xf32>
    %659 = vector.extract_strided_slice %523 {offsets = [2, 0, 0], sizes = [1, 32, 32], strides = [1, 1, 1]} : vector<4x32x32xbf16> to vector<1x32x32xbf16>
    %660 = vector.shape_cast %659 : vector<1x32x32xbf16> to vector<32x32xbf16>
    %cst_275 = arith.constant dense<0.000000e+00> : vector<2x32xf32>
    %661 = tpu.matmul %629, %660, %cst_275 {dimension_numbers = #tpu.dot_dimension_numbers<[1], [0], [0], [1], [0, 0, 1, 1], [], []>} : vector<2x32xbf16>, vector<32x32xbf16>, vector<2x32xf32> -> vector<2x32xf32>
    %662 = arith.addf %658, %661 : vector<2x32xf32>
    %663 = math.tanh %662 : vector<2x32xf32>
    %c3_276 = arith.constant 3 : index
    %664 = arith.index_cast %631 : i32 to index
    %c0_277 = arith.constant 0 : index
    %665 = vector.load %arg10[%c3_276, %664, %c0_277] : memref<4x16x32xf32, #tpu.memory_space<vmem>>, vector<1x2x32xf32>
    %666 = vector.shape_cast %665 : vector<1x2x32xf32> to vector<2x32xf32>
    %667 = vector.extract_strided_slice %523 {offsets = [3, 0, 0], sizes = [1, 32, 32], strides = [1, 1, 1]} : vector<4x32x32xbf16> to vector<1x32x32xbf16>
    %668 = vector.shape_cast %667 : vector<1x32x32xbf16> to vector<32x32xbf16>
    %cst_278 = arith.constant dense<0.000000e+00> : vector<2x32xf32>
    %669 = tpu.matmul %629, %668, %cst_278 {dimension_numbers = #tpu.dot_dimension_numbers<[1], [0], [0], [1], [0, 0, 1, 1], [], []>} : vector<2x32xbf16>, vector<32x32xbf16>, vector<2x32xf32> -> vector<2x32xf32>
    %670 = arith.addf %666, %669 : vector<2x32xf32>
    %671 = arith.negf %670 : vector<2x32xf32>
    %672 = math.exp %671 : vector<2x32xf32>
    %cst_279 = arith.constant 1.000000e+00 : f32
    %673 = vector.broadcast %cst_279 : f32 to vector<2x32xf32>
    %674 = arith.addf %673, %672 : vector<2x32xf32>
    %675 = arith.divf %673, %674 : vector<2x32xf32>
    %676 = arith.mulf %655, %626 : vector<2x32xf32>
    %677 = arith.mulf %643, %663 : vector<2x32xf32>
    %678 = arith.addf %676, %677 : vector<2x32xf32>
    %679 = math.tanh %678 : vector<2x32xf32>
    %680 = arith.mulf %675, %679 : vector<2x32xf32>
    %c3_i32_280 = arith.constant 3 : i32
    %681 = arith.truncf %680 : vector<2x32xf32> to vector<2x32xbf16>
    %c2_i32_281 = arith.constant 2 : i32
    %682 = arith.muli %c3_i32_280, %c2_i32_281 : i32
    %683 = tpu.assume_multiple %682, 2 : i32
    %c0_282 = arith.constant 0 : index
    %684 = arith.index_cast %683 : i32 to index
    %c0_283 = arith.constant 0 : index
    %685 = vector.load %arg10[%c0_282, %684, %c0_283] : memref<4x16x32xf32, #tpu.memory_space<vmem>>, vector<1x2x32xf32>
    %686 = vector.shape_cast %685 : vector<1x2x32xf32> to vector<2x32xf32>
    %687 = vector.extract_strided_slice %523 {offsets = [0, 0, 0], sizes = [1, 32, 32], strides = [1, 1, 1]} : vector<4x32x32xbf16> to vector<1x32x32xbf16>
    %688 = vector.shape_cast %687 : vector<1x32x32xbf16> to vector<32x32xbf16>
    %cst_284 = arith.constant dense<0.000000e+00> : vector<2x32xf32>
    %689 = tpu.matmul %681, %688, %cst_284 {dimension_numbers = #tpu.dot_dimension_numbers<[1], [0], [0], [1], [0, 0, 1, 1], [], []>} : vector<2x32xbf16>, vector<32x32xbf16>, vector<2x32xf32> -> vector<2x32xf32>
    %690 = arith.addf %686, %689 : vector<2x32xf32>
    %691 = arith.negf %690 : vector<2x32xf32>
    %692 = math.exp %691 : vector<2x32xf32>
    %cst_285 = arith.constant 1.000000e+00 : f32
    %693 = vector.broadcast %cst_285 : f32 to vector<2x32xf32>
    %694 = arith.addf %693, %692 : vector<2x32xf32>
    %695 = arith.divf %693, %694 : vector<2x32xf32>
    %c1_286 = arith.constant 1 : index
    %696 = arith.index_cast %683 : i32 to index
    %c0_287 = arith.constant 0 : index
    %697 = vector.load %arg10[%c1_286, %696, %c0_287] : memref<4x16x32xf32, #tpu.memory_space<vmem>>, vector<1x2x32xf32>
    %698 = vector.shape_cast %697 : vector<1x2x32xf32> to vector<2x32xf32>
    %699 = vector.extract_strided_slice %523 {offsets = [1, 0, 0], sizes = [1, 32, 32], strides = [1, 1, 1]} : vector<4x32x32xbf16> to vector<1x32x32xbf16>
    %700 = vector.shape_cast %699 : vector<1x32x32xbf16> to vector<32x32xbf16>
    %cst_288 = arith.constant dense<0.000000e+00> : vector<2x32xf32>
    %701 = tpu.matmul %681, %700, %cst_288 {dimension_numbers = #tpu.dot_dimension_numbers<[1], [0], [0], [1], [0, 0, 1, 1], [], []>} : vector<2x32xbf16>, vector<32x32xbf16>, vector<2x32xf32> -> vector<2x32xf32>
    %702 = arith.addf %698, %701 : vector<2x32xf32>
    %703 = arith.negf %702 : vector<2x32xf32>
    %704 = math.exp %703 : vector<2x32xf32>
    %cst_289 = arith.constant 1.000000e+00 : f32
    %705 = vector.broadcast %cst_289 : f32 to vector<2x32xf32>
    %706 = arith.addf %705, %704 : vector<2x32xf32>
    %707 = arith.divf %705, %706 : vector<2x32xf32>
    %c2_290 = arith.constant 2 : index
    %708 = arith.index_cast %683 : i32 to index
    %c0_291 = arith.constant 0 : index
    %709 = vector.load %arg10[%c2_290, %708, %c0_291] : memref<4x16x32xf32, #tpu.memory_space<vmem>>, vector<1x2x32xf32>
    %710 = vector.shape_cast %709 : vector<1x2x32xf32> to vector<2x32xf32>
    %711 = vector.extract_strided_slice %523 {offsets = [2, 0, 0], sizes = [1, 32, 32], strides = [1, 1, 1]} : vector<4x32x32xbf16> to vector<1x32x32xbf16>
    %712 = vector.shape_cast %711 : vector<1x32x32xbf16> to vector<32x32xbf16>
    %cst_292 = arith.constant dense<0.000000e+00> : vector<2x32xf32>
    %713 = tpu.matmul %681, %712, %cst_292 {dimension_numbers = #tpu.dot_dimension_numbers<[1], [0], [0], [1], [0, 0, 1, 1], [], []>} : vector<2x32xbf16>, vector<32x32xbf16>, vector<2x32xf32> -> vector<2x32xf32>
    %714 = arith.addf %710, %713 : vector<2x32xf32>
    %715 = math.tanh %714 : vector<2x32xf32>
    %c3_293 = arith.constant 3 : index
    %716 = arith.index_cast %683 : i32 to index
    %c0_294 = arith.constant 0 : index
    %717 = vector.load %arg10[%c3_293, %716, %c0_294] : memref<4x16x32xf32, #tpu.memory_space<vmem>>, vector<1x2x32xf32>
    %718 = vector.shape_cast %717 : vector<1x2x32xf32> to vector<2x32xf32>
    %719 = vector.extract_strided_slice %523 {offsets = [3, 0, 0], sizes = [1, 32, 32], strides = [1, 1, 1]} : vector<4x32x32xbf16> to vector<1x32x32xbf16>
    %720 = vector.shape_cast %719 : vector<1x32x32xbf16> to vector<32x32xbf16>
    %cst_295 = arith.constant dense<0.000000e+00> : vector<2x32xf32>
    %721 = tpu.matmul %681, %720, %cst_295 {dimension_numbers = #tpu.dot_dimension_numbers<[1], [0], [0], [1], [0, 0, 1, 1], [], []>} : vector<2x32xbf16>, vector<32x32xbf16>, vector<2x32xf32> -> vector<2x32xf32>
    %722 = arith.addf %718, %721 : vector<2x32xf32>
    %723 = arith.negf %722 : vector<2x32xf32>
    %724 = math.exp %723 : vector<2x32xf32>
    %cst_296 = arith.constant 1.000000e+00 : f32
    %725 = vector.broadcast %cst_296 : f32 to vector<2x32xf32>
    %726 = arith.addf %725, %724 : vector<2x32xf32>
    %727 = arith.divf %725, %726 : vector<2x32xf32>
    %728 = arith.mulf %707, %678 : vector<2x32xf32>
    %729 = arith.mulf %695, %715 : vector<2x32xf32>
    %730 = arith.addf %728, %729 : vector<2x32xf32>
    %731 = math.tanh %730 : vector<2x32xf32>
    %732 = arith.mulf %727, %731 : vector<2x32xf32>
    %c4_i32_297 = arith.constant 4 : i32
    %733 = arith.truncf %732 : vector<2x32xf32> to vector<2x32xbf16>
    %c2_i32_298 = arith.constant 2 : i32
    %734 = arith.muli %c4_i32_297, %c2_i32_298 : i32
    %735 = tpu.assume_multiple %734, 2 : i32
    %c0_299 = arith.constant 0 : index
    %736 = arith.index_cast %735 : i32 to index
    %c0_300 = arith.constant 0 : index
    %737 = vector.load %arg10[%c0_299, %736, %c0_300] : memref<4x16x32xf32, #tpu.memory_space<vmem>>, vector<1x2x32xf32>
    %738 = vector.shape_cast %737 : vector<1x2x32xf32> to vector<2x32xf32>
    %739 = vector.extract_strided_slice %523 {offsets = [0, 0, 0], sizes = [1, 32, 32], strides = [1, 1, 1]} : vector<4x32x32xbf16> to vector<1x32x32xbf16>
    %740 = vector.shape_cast %739 : vector<1x32x32xbf16> to vector<32x32xbf16>
    %cst_301 = arith.constant dense<0.000000e+00> : vector<2x32xf32>
    %741 = tpu.matmul %733, %740, %cst_301 {dimension_numbers = #tpu.dot_dimension_numbers<[1], [0], [0], [1], [0, 0, 1, 1], [], []>} : vector<2x32xbf16>, vector<32x32xbf16>, vector<2x32xf32> -> vector<2x32xf32>
    %742 = arith.addf %738, %741 : vector<2x32xf32>
    %743 = arith.negf %742 : vector<2x32xf32>
    %744 = math.exp %743 : vector<2x32xf32>
    %cst_302 = arith.constant 1.000000e+00 : f32
    %745 = vector.broadcast %cst_302 : f32 to vector<2x32xf32>
    %746 = arith.addf %745, %744 : vector<2x32xf32>
    %747 = arith.divf %745, %746 : vector<2x32xf32>
    %c1_303 = arith.constant 1 : index
    %748 = arith.index_cast %735 : i32 to index
    %c0_304 = arith.constant 0 : index
    %749 = vector.load %arg10[%c1_303, %748, %c0_304] : memref<4x16x32xf32, #tpu.memory_space<vmem>>, vector<1x2x32xf32>
    %750 = vector.shape_cast %749 : vector<1x2x32xf32> to vector<2x32xf32>
    %751 = vector.extract_strided_slice %523 {offsets = [1, 0, 0], sizes = [1, 32, 32], strides = [1, 1, 1]} : vector<4x32x32xbf16> to vector<1x32x32xbf16>
    %752 = vector.shape_cast %751 : vector<1x32x32xbf16> to vector<32x32xbf16>
    %cst_305 = arith.constant dense<0.000000e+00> : vector<2x32xf32>
    %753 = tpu.matmul %733, %752, %cst_305 {dimension_numbers = #tpu.dot_dimension_numbers<[1], [0], [0], [1], [0, 0, 1, 1], [], []>} : vector<2x32xbf16>, vector<32x32xbf16>, vector<2x32xf32> -> vector<2x32xf32>
    %754 = arith.addf %750, %753 : vector<2x32xf32>
    %755 = arith.negf %754 : vector<2x32xf32>
    %756 = math.exp %755 : vector<2x32xf32>
    %cst_306 = arith.constant 1.000000e+00 : f32
    %757 = vector.broadcast %cst_306 : f32 to vector<2x32xf32>
    %758 = arith.addf %757, %756 : vector<2x32xf32>
    %759 = arith.divf %757, %758 : vector<2x32xf32>
    %c2_307 = arith.constant 2 : index
    %760 = arith.index_cast %735 : i32 to index
    %c0_308 = arith.constant 0 : index
    %761 = vector.load %arg10[%c2_307, %760, %c0_308] : memref<4x16x32xf32, #tpu.memory_space<vmem>>, vector<1x2x32xf32>
    %762 = vector.shape_cast %761 : vector<1x2x32xf32> to vector<2x32xf32>
    %763 = vector.extract_strided_slice %523 {offsets = [2, 0, 0], sizes = [1, 32, 32], strides = [1, 1, 1]} : vector<4x32x32xbf16> to vector<1x32x32xbf16>
    %764 = vector.shape_cast %763 : vector<1x32x32xbf16> to vector<32x32xbf16>
    %cst_309 = arith.constant dense<0.000000e+00> : vector<2x32xf32>
    %765 = tpu.matmul %733, %764, %cst_309 {dimension_numbers = #tpu.dot_dimension_numbers<[1], [0], [0], [1], [0, 0, 1, 1], [], []>} : vector<2x32xbf16>, vector<32x32xbf16>, vector<2x32xf32> -> vector<2x32xf32>
    %766 = arith.addf %762, %765 : vector<2x32xf32>
    %767 = math.tanh %766 : vector<2x32xf32>
    %c3_310 = arith.constant 3 : index
    %768 = arith.index_cast %735 : i32 to index
    %c0_311 = arith.constant 0 : index
    %769 = vector.load %arg10[%c3_310, %768, %c0_311] : memref<4x16x32xf32, #tpu.memory_space<vmem>>, vector<1x2x32xf32>
    %770 = vector.shape_cast %769 : vector<1x2x32xf32> to vector<2x32xf32>
    %771 = vector.extract_strided_slice %523 {offsets = [3, 0, 0], sizes = [1, 32, 32], strides = [1, 1, 1]} : vector<4x32x32xbf16> to vector<1x32x32xbf16>
    %772 = vector.shape_cast %771 : vector<1x32x32xbf16> to vector<32x32xbf16>
    %cst_312 = arith.constant dense<0.000000e+00> : vector<2x32xf32>
    %773 = tpu.matmul %733, %772, %cst_312 {dimension_numbers = #tpu.dot_dimension_numbers<[1], [0], [0], [1], [0, 0, 1, 1], [], []>} : vector<2x32xbf16>, vector<32x32xbf16>, vector<2x32xf32> -> vector<2x32xf32>
    %774 = arith.addf %770, %773 : vector<2x32xf32>
    %775 = arith.negf %774 : vector<2x32xf32>
    %776 = math.exp %775 : vector<2x32xf32>
    %cst_313 = arith.constant 1.000000e+00 : f32
    %777 = vector.broadcast %cst_313 : f32 to vector<2x32xf32>
    %778 = arith.addf %777, %776 : vector<2x32xf32>
    %779 = arith.divf %777, %778 : vector<2x32xf32>
    %780 = arith.mulf %759, %730 : vector<2x32xf32>
    %781 = arith.mulf %747, %767 : vector<2x32xf32>
    %782 = arith.addf %780, %781 : vector<2x32xf32>
    %783 = math.tanh %782 : vector<2x32xf32>
    %784 = arith.mulf %779, %783 : vector<2x32xf32>
    %c5_i32_314 = arith.constant 5 : i32
    %785 = arith.truncf %784 : vector<2x32xf32> to vector<2x32xbf16>
    %c2_i32_315 = arith.constant 2 : i32
    %786 = arith.muli %c5_i32_314, %c2_i32_315 : i32
    %787 = tpu.assume_multiple %786, 2 : i32
    %c0_316 = arith.constant 0 : index
    %788 = arith.index_cast %787 : i32 to index
    %c0_317 = arith.constant 0 : index
    %789 = vector.load %arg10[%c0_316, %788, %c0_317] : memref<4x16x32xf32, #tpu.memory_space<vmem>>, vector<1x2x32xf32>
    %790 = vector.shape_cast %789 : vector<1x2x32xf32> to vector<2x32xf32>
    %791 = vector.extract_strided_slice %523 {offsets = [0, 0, 0], sizes = [1, 32, 32], strides = [1, 1, 1]} : vector<4x32x32xbf16> to vector<1x32x32xbf16>
    %792 = vector.shape_cast %791 : vector<1x32x32xbf16> to vector<32x32xbf16>
    %cst_318 = arith.constant dense<0.000000e+00> : vector<2x32xf32>
    %793 = tpu.matmul %785, %792, %cst_318 {dimension_numbers = #tpu.dot_dimension_numbers<[1], [0], [0], [1], [0, 0, 1, 1], [], []>} : vector<2x32xbf16>, vector<32x32xbf16>, vector<2x32xf32> -> vector<2x32xf32>
    %794 = arith.addf %790, %793 : vector<2x32xf32>
    %795 = arith.negf %794 : vector<2x32xf32>
    %796 = math.exp %795 : vector<2x32xf32>
    %cst_319 = arith.constant 1.000000e+00 : f32
    %797 = vector.broadcast %cst_319 : f32 to vector<2x32xf32>
    %798 = arith.addf %797, %796 : vector<2x32xf32>
    %799 = arith.divf %797, %798 : vector<2x32xf32>
    %c1_320 = arith.constant 1 : index
    %800 = arith.index_cast %787 : i32 to index
    %c0_321 = arith.constant 0 : index
    %801 = vector.load %arg10[%c1_320, %800, %c0_321] : memref<4x16x32xf32, #tpu.memory_space<vmem>>, vector<1x2x32xf32>
    %802 = vector.shape_cast %801 : vector<1x2x32xf32> to vector<2x32xf32>
    %803 = vector.extract_strided_slice %523 {offsets = [1, 0, 0], sizes = [1, 32, 32], strides = [1, 1, 1]} : vector<4x32x32xbf16> to vector<1x32x32xbf16>
    %804 = vector.shape_cast %803 : vector<1x32x32xbf16> to vector<32x32xbf16>
    %cst_322 = arith.constant dense<0.000000e+00> : vector<2x32xf32>
    %805 = tpu.matmul %785, %804, %cst_322 {dimension_numbers = #tpu.dot_dimension_numbers<[1], [0], [0], [1], [0, 0, 1, 1], [], []>} : vector<2x32xbf16>, vector<32x32xbf16>, vector<2x32xf32> -> vector<2x32xf32>
    %806 = arith.addf %802, %805 : vector<2x32xf32>
    %807 = arith.negf %806 : vector<2x32xf32>
    %808 = math.exp %807 : vector<2x32xf32>
    %cst_323 = arith.constant 1.000000e+00 : f32
    %809 = vector.broadcast %cst_323 : f32 to vector<2x32xf32>
    %810 = arith.addf %809, %808 : vector<2x32xf32>
    %811 = arith.divf %809, %810 : vector<2x32xf32>
    %c2_324 = arith.constant 2 : index
    %812 = arith.index_cast %787 : i32 to index
    %c0_325 = arith.constant 0 : index
    %813 = vector.load %arg10[%c2_324, %812, %c0_325] : memref<4x16x32xf32, #tpu.memory_space<vmem>>, vector<1x2x32xf32>
    %814 = vector.shape_cast %813 : vector<1x2x32xf32> to vector<2x32xf32>
    %815 = vector.extract_strided_slice %523 {offsets = [2, 0, 0], sizes = [1, 32, 32], strides = [1, 1, 1]} : vector<4x32x32xbf16> to vector<1x32x32xbf16>
    %816 = vector.shape_cast %815 : vector<1x32x32xbf16> to vector<32x32xbf16>
    %cst_326 = arith.constant dense<0.000000e+00> : vector<2x32xf32>
    %817 = tpu.matmul %785, %816, %cst_326 {dimension_numbers = #tpu.dot_dimension_numbers<[1], [0], [0], [1], [0, 0, 1, 1], [], []>} : vector<2x32xbf16>, vector<32x32xbf16>, vector<2x32xf32> -> vector<2x32xf32>
    %818 = arith.addf %814, %817 : vector<2x32xf32>
    %819 = math.tanh %818 : vector<2x32xf32>
    %c3_327 = arith.constant 3 : index
    %820 = arith.index_cast %787 : i32 to index
    %c0_328 = arith.constant 0 : index
    %821 = vector.load %arg10[%c3_327, %820, %c0_328] : memref<4x16x32xf32, #tpu.memory_space<vmem>>, vector<1x2x32xf32>
    %822 = vector.shape_cast %821 : vector<1x2x32xf32> to vector<2x32xf32>
    %823 = vector.extract_strided_slice %523 {offsets = [3, 0, 0], sizes = [1, 32, 32], strides = [1, 1, 1]} : vector<4x32x32xbf16> to vector<1x32x32xbf16>
    %824 = vector.shape_cast %823 : vector<1x32x32xbf16> to vector<32x32xbf16>
    %cst_329 = arith.constant dense<0.000000e+00> : vector<2x32xf32>
    %825 = tpu.matmul %785, %824, %cst_329 {dimension_numbers = #tpu.dot_dimension_numbers<[1], [0], [0], [1], [0, 0, 1, 1], [], []>} : vector<2x32xbf16>, vector<32x32xbf16>, vector<2x32xf32> -> vector<2x32xf32>
    %826 = arith.addf %822, %825 : vector<2x32xf32>
    %827 = arith.negf %826 : vector<2x32xf32>
    %828 = math.exp %827 : vector<2x32xf32>
    %cst_330 = arith.constant 1.000000e+00 : f32
    %829 = vector.broadcast %cst_330 : f32 to vector<2x32xf32>
    %830 = arith.addf %829, %828 : vector<2x32xf32>
    %831 = arith.divf %829, %830 : vector<2x32xf32>
    %832 = arith.mulf %811, %782 : vector<2x32xf32>
    %833 = arith.mulf %799, %819 : vector<2x32xf32>
    %834 = arith.addf %832, %833 : vector<2x32xf32>
    %835 = math.tanh %834 : vector<2x32xf32>
    %836 = arith.mulf %831, %835 : vector<2x32xf32>
    %c6_i32_331 = arith.constant 6 : i32
    %837 = arith.truncf %836 : vector<2x32xf32> to vector<2x32xbf16>
    %c2_i32_332 = arith.constant 2 : i32
    %838 = arith.muli %c6_i32_331, %c2_i32_332 : i32
    %839 = tpu.assume_multiple %838, 2 : i32
    %c0_333 = arith.constant 0 : index
    %840 = arith.index_cast %839 : i32 to index
    %c0_334 = arith.constant 0 : index
    %841 = vector.load %arg10[%c0_333, %840, %c0_334] : memref<4x16x32xf32, #tpu.memory_space<vmem>>, vector<1x2x32xf32>
    %842 = vector.shape_cast %841 : vector<1x2x32xf32> to vector<2x32xf32>
    %843 = vector.extract_strided_slice %523 {offsets = [0, 0, 0], sizes = [1, 32, 32], strides = [1, 1, 1]} : vector<4x32x32xbf16> to vector<1x32x32xbf16>
    %844 = vector.shape_cast %843 : vector<1x32x32xbf16> to vector<32x32xbf16>
    %cst_335 = arith.constant dense<0.000000e+00> : vector<2x32xf32>
    %845 = tpu.matmul %837, %844, %cst_335 {dimension_numbers = #tpu.dot_dimension_numbers<[1], [0], [0], [1], [0, 0, 1, 1], [], []>} : vector<2x32xbf16>, vector<32x32xbf16>, vector<2x32xf32> -> vector<2x32xf32>
    %846 = arith.addf %842, %845 : vector<2x32xf32>
    %847 = arith.negf %846 : vector<2x32xf32>
    %848 = math.exp %847 : vector<2x32xf32>
    %cst_336 = arith.constant 1.000000e+00 : f32
    %849 = vector.broadcast %cst_336 : f32 to vector<2x32xf32>
    %850 = arith.addf %849, %848 : vector<2x32xf32>
    %851 = arith.divf %849, %850 : vector<2x32xf32>
    %c1_337 = arith.constant 1 : index
    %852 = arith.index_cast %839 : i32 to index
    %c0_338 = arith.constant 0 : index
    %853 = vector.load %arg10[%c1_337, %852, %c0_338] : memref<4x16x32xf32, #tpu.memory_space<vmem>>, vector<1x2x32xf32>
    %854 = vector.shape_cast %853 : vector<1x2x32xf32> to vector<2x32xf32>
    %855 = vector.extract_strided_slice %523 {offsets = [1, 0, 0], sizes = [1, 32, 32], strides = [1, 1, 1]} : vector<4x32x32xbf16> to vector<1x32x32xbf16>
    %856 = vector.shape_cast %855 : vector<1x32x32xbf16> to vector<32x32xbf16>
    %cst_339 = arith.constant dense<0.000000e+00> : vector<2x32xf32>
    %857 = tpu.matmul %837, %856, %cst_339 {dimension_numbers = #tpu.dot_dimension_numbers<[1], [0], [0], [1], [0, 0, 1, 1], [], []>} : vector<2x32xbf16>, vector<32x32xbf16>, vector<2x32xf32> -> vector<2x32xf32>
    %858 = arith.addf %854, %857 : vector<2x32xf32>
    %859 = arith.negf %858 : vector<2x32xf32>
    %860 = math.exp %859 : vector<2x32xf32>
    %cst_340 = arith.constant 1.000000e+00 : f32
    %861 = vector.broadcast %cst_340 : f32 to vector<2x32xf32>
    %862 = arith.addf %861, %860 : vector<2x32xf32>
    %863 = arith.divf %861, %862 : vector<2x32xf32>
    %c2_341 = arith.constant 2 : index
    %864 = arith.index_cast %839 : i32 to index
    %c0_342 = arith.constant 0 : index
    %865 = vector.load %arg10[%c2_341, %864, %c0_342] : memref<4x16x32xf32, #tpu.memory_space<vmem>>, vector<1x2x32xf32>
    %866 = vector.shape_cast %865 : vector<1x2x32xf32> to vector<2x32xf32>
    %867 = vector.extract_strided_slice %523 {offsets = [2, 0, 0], sizes = [1, 32, 32], strides = [1, 1, 1]} : vector<4x32x32xbf16> to vector<1x32x32xbf16>
    %868 = vector.shape_cast %867 : vector<1x32x32xbf16> to vector<32x32xbf16>
    %cst_343 = arith.constant dense<0.000000e+00> : vector<2x32xf32>
    %869 = tpu.matmul %837, %868, %cst_343 {dimension_numbers = #tpu.dot_dimension_numbers<[1], [0], [0], [1], [0, 0, 1, 1], [], []>} : vector<2x32xbf16>, vector<32x32xbf16>, vector<2x32xf32> -> vector<2x32xf32>
    %870 = arith.addf %866, %869 : vector<2x32xf32>
    %871 = math.tanh %870 : vector<2x32xf32>
    %c3_344 = arith.constant 3 : index
    %872 = arith.index_cast %839 : i32 to index
    %c0_345 = arith.constant 0 : index
    %873 = vector.load %arg10[%c3_344, %872, %c0_345] : memref<4x16x32xf32, #tpu.memory_space<vmem>>, vector<1x2x32xf32>
    %874 = vector.shape_cast %873 : vector<1x2x32xf32> to vector<2x32xf32>
    %875 = vector.extract_strided_slice %523 {offsets = [3, 0, 0], sizes = [1, 32, 32], strides = [1, 1, 1]} : vector<4x32x32xbf16> to vector<1x32x32xbf16>
    %876 = vector.shape_cast %875 : vector<1x32x32xbf16> to vector<32x32xbf16>
    %cst_346 = arith.constant dense<0.000000e+00> : vector<2x32xf32>
    %877 = tpu.matmul %837, %876, %cst_346 {dimension_numbers = #tpu.dot_dimension_numbers<[1], [0], [0], [1], [0, 0, 1, 1], [], []>} : vector<2x32xbf16>, vector<32x32xbf16>, vector<2x32xf32> -> vector<2x32xf32>
    %878 = arith.addf %874, %877 : vector<2x32xf32>
    %879 = arith.negf %878 : vector<2x32xf32>
    %880 = math.exp %879 : vector<2x32xf32>
    %cst_347 = arith.constant 1.000000e+00 : f32
    %881 = vector.broadcast %cst_347 : f32 to vector<2x32xf32>
    %882 = arith.addf %881, %880 : vector<2x32xf32>
    %883 = arith.divf %881, %882 : vector<2x32xf32>
    %884 = arith.mulf %863, %834 : vector<2x32xf32>
    %885 = arith.mulf %851, %871 : vector<2x32xf32>
    %886 = arith.addf %884, %885 : vector<2x32xf32>
    %887 = math.tanh %886 : vector<2x32xf32>
    %888 = arith.mulf %883, %887 : vector<2x32xf32>
    %c7_i32_348 = arith.constant 7 : i32
    %889 = arith.truncf %888 : vector<2x32xf32> to vector<2x32xbf16>
    %c2_i32_349 = arith.constant 2 : i32
    %890 = arith.muli %c7_i32_348, %c2_i32_349 : i32
    %891 = tpu.assume_multiple %890, 2 : i32
    %c0_350 = arith.constant 0 : index
    %892 = arith.index_cast %891 : i32 to index
    %c0_351 = arith.constant 0 : index
    %893 = vector.load %arg10[%c0_350, %892, %c0_351] : memref<4x16x32xf32, #tpu.memory_space<vmem>>, vector<1x2x32xf32>
    %894 = vector.shape_cast %893 : vector<1x2x32xf32> to vector<2x32xf32>
    %895 = vector.extract_strided_slice %523 {offsets = [0, 0, 0], sizes = [1, 32, 32], strides = [1, 1, 1]} : vector<4x32x32xbf16> to vector<1x32x32xbf16>
    %896 = vector.shape_cast %895 : vector<1x32x32xbf16> to vector<32x32xbf16>
    %cst_352 = arith.constant dense<0.000000e+00> : vector<2x32xf32>
    %897 = tpu.matmul %889, %896, %cst_352 {dimension_numbers = #tpu.dot_dimension_numbers<[1], [0], [0], [1], [0, 0, 1, 1], [], []>} : vector<2x32xbf16>, vector<32x32xbf16>, vector<2x32xf32> -> vector<2x32xf32>
    %898 = arith.addf %894, %897 : vector<2x32xf32>
    %899 = arith.negf %898 : vector<2x32xf32>
    %900 = math.exp %899 : vector<2x32xf32>
    %cst_353 = arith.constant 1.000000e+00 : f32
    %901 = vector.broadcast %cst_353 : f32 to vector<2x32xf32>
    %902 = arith.addf %901, %900 : vector<2x32xf32>
    %903 = arith.divf %901, %902 : vector<2x32xf32>
    %c1_354 = arith.constant 1 : index
    %904 = arith.index_cast %891 : i32 to index
    %c0_355 = arith.constant 0 : index
    %905 = vector.load %arg10[%c1_354, %904, %c0_355] : memref<4x16x32xf32, #tpu.memory_space<vmem>>, vector<1x2x32xf32>
    %906 = vector.shape_cast %905 : vector<1x2x32xf32> to vector<2x32xf32>
    %907 = vector.extract_strided_slice %523 {offsets = [1, 0, 0], sizes = [1, 32, 32], strides = [1, 1, 1]} : vector<4x32x32xbf16> to vector<1x32x32xbf16>
    %908 = vector.shape_cast %907 : vector<1x32x32xbf16> to vector<32x32xbf16>
    %cst_356 = arith.constant dense<0.000000e+00> : vector<2x32xf32>
    %909 = tpu.matmul %889, %908, %cst_356 {dimension_numbers = #tpu.dot_dimension_numbers<[1], [0], [0], [1], [0, 0, 1, 1], [], []>} : vector<2x32xbf16>, vector<32x32xbf16>, vector<2x32xf32> -> vector<2x32xf32>
    %910 = arith.addf %906, %909 : vector<2x32xf32>
    %911 = arith.negf %910 : vector<2x32xf32>
    %912 = math.exp %911 : vector<2x32xf32>
    %cst_357 = arith.constant 1.000000e+00 : f32
    %913 = vector.broadcast %cst_357 : f32 to vector<2x32xf32>
    %914 = arith.addf %913, %912 : vector<2x32xf32>
    %915 = arith.divf %913, %914 : vector<2x32xf32>
    %c2_358 = arith.constant 2 : index
    %916 = arith.index_cast %891 : i32 to index
    %c0_359 = arith.constant 0 : index
    %917 = vector.load %arg10[%c2_358, %916, %c0_359] : memref<4x16x32xf32, #tpu.memory_space<vmem>>, vector<1x2x32xf32>
    %918 = vector.shape_cast %917 : vector<1x2x32xf32> to vector<2x32xf32>
    %919 = vector.extract_strided_slice %523 {offsets = [2, 0, 0], sizes = [1, 32, 32], strides = [1, 1, 1]} : vector<4x32x32xbf16> to vector<1x32x32xbf16>
    %920 = vector.shape_cast %919 : vector<1x32x32xbf16> to vector<32x32xbf16>
    %cst_360 = arith.constant dense<0.000000e+00> : vector<2x32xf32>
    %921 = tpu.matmul %889, %920, %cst_360 {dimension_numbers = #tpu.dot_dimension_numbers<[1], [0], [0], [1], [0, 0, 1, 1], [], []>} : vector<2x32xbf16>, vector<32x32xbf16>, vector<2x32xf32> -> vector<2x32xf32>
    %922 = arith.addf %918, %921 : vector<2x32xf32>
    %923 = math.tanh %922 : vector<2x32xf32>
    %c3_361 = arith.constant 3 : index
    %924 = arith.index_cast %891 : i32 to index
    %c0_362 = arith.constant 0 : index
    %925 = vector.load %arg10[%c3_361, %924, %c0_362] : memref<4x16x32xf32, #tpu.memory_space<vmem>>, vector<1x2x32xf32>
    %926 = vector.shape_cast %925 : vector<1x2x32xf32> to vector<2x32xf32>
    %927 = vector.extract_strided_slice %523 {offsets = [3, 0, 0], sizes = [1, 32, 32], strides = [1, 1, 1]} : vector<4x32x32xbf16> to vector<1x32x32xbf16>
    %928 = vector.shape_cast %927 : vector<1x32x32xbf16> to vector<32x32xbf16>
    %cst_363 = arith.constant dense<0.000000e+00> : vector<2x32xf32>
    %929 = tpu.matmul %889, %928, %cst_363 {dimension_numbers = #tpu.dot_dimension_numbers<[1], [0], [0], [1], [0, 0, 1, 1], [], []>} : vector<2x32xbf16>, vector<32x32xbf16>, vector<2x32xf32> -> vector<2x32xf32>
    %930 = arith.addf %926, %929 : vector<2x32xf32>
    %931 = arith.negf %930 : vector<2x32xf32>
    %932 = math.exp %931 : vector<2x32xf32>
    %cst_364 = arith.constant 1.000000e+00 : f32
    %933 = vector.broadcast %cst_364 : f32 to vector<2x32xf32>
    %934 = arith.addf %933, %932 : vector<2x32xf32>
    %935 = arith.divf %933, %934 : vector<2x32xf32>
    %936 = arith.mulf %915, %886 : vector<2x32xf32>
    %937 = arith.mulf %903, %923 : vector<2x32xf32>
    %938 = arith.addf %936, %937 : vector<2x32xf32>
    %939 = math.tanh %938 : vector<2x32xf32>
    %940 = arith.mulf %935, %939 : vector<2x32xf32>
    %c8_i32_365 = arith.constant 8 : i32
    %c1_366 = arith.constant 1 : index
    %c0_367 = arith.constant 0 : index
    %c0_368 = arith.constant 0 : index
    %941 = vector.load %arg8[%c1_366, %c0_367, %c0_368] : memref<2x2x32xf32, #tpu.memory_space<vmem>>, vector<1x2x32xf32>
    %942 = vector.shape_cast %941 : vector<1x2x32xf32> to vector<2x32xf32>
    %943 = vector.shape_cast %940 : vector<2x32xf32> to vector<1x2x32xf32>
    tpu.vector_store %arg8[%c1_366, %c0_367, %c0_368], %943 {strides = array<i32>} : memref<2x2x32xf32, #tpu.memory_space<vmem>>, vector<1x2x32xf32>,
    %c1_369 = arith.constant 1 : index
    %c0_370 = arith.constant 0 : index
    %c0_371 = arith.constant 0 : index
    %944 = vector.load %arg9[%c1_369, %c0_370, %c0_371] : memref<2x2x32xf32, #tpu.memory_space<vmem>>, vector<1x2x32xf32>
    %945 = vector.shape_cast %944 : vector<1x2x32xf32> to vector<2x32xf32>
    %946 = vector.shape_cast %938 : vector<2x32xf32> to vector<1x2x32xf32>
    tpu.vector_store %arg9[%c1_369, %c0_370, %c0_371], %946 {strides = array<i32>} : memref<2x2x32xf32, #tpu.memory_space<vmem>>, vector<1x2x32xf32>,
    return
  }
  func.func @transform_0(%arg0: i32) -> (i32, i32) {
    %c0_i32 = arith.constant 0 : i32
    %c0_i32_0 = arith.constant 0 : i32
    %c0_i32_1 = arith.constant 0 : i32
    return %c0_i32, %c0_i32_0 : i32, i32
  }
  func.func @transform_1(%arg0: i32) -> (i32, i32, i32) {
    %c0_i32 = arith.constant 0 : i32
    %c0_i32_0 = arith.constant 0 : i32
    %c0_i32_1 = arith.constant 0 : i32
    %c0_i32_2 = arith.constant 0 : i32
    return %c0_i32, %c0_i32_0, %c0_i32_1 : i32, i32, i32
  }
  func.func @transform_2(%arg0: i32) -> (i32, i32, i32) {
    %c0_i32 = arith.constant 0 : i32
    %c0_i32_0 = arith.constant 0 : i32
    %c0_i32_1 = arith.constant 0 : i32
    %c0_i32_2 = arith.constant 0 : i32
    return %c0_i32, %c0_i32_0, %c0_i32_1 : i32, i32, i32
  }
  func.func @transform_3(%arg0: i32) -> (i32, i32, i32) {
    %c0_i32 = arith.constant 0 : i32
    %c0_i32_0 = arith.constant 0 : i32
    %c0_i32_1 = arith.constant 0 : i32
    %c0_i32_2 = arith.constant 0 : i32
    return %c0_i32, %c0_i32_0, %c0_i32_1 : i32, i32, i32
  }
  func.func @transform_4(%arg0: i32) -> (i32, i32, i32) {
    %c0_i32 = arith.constant 0 : i32
    %c0_i32_0 = arith.constant 0 : i32
    %c0_i32_1 = arith.constant 0 : i32
    %c0_i32_2 = arith.constant 0 : i32
    return %c0_i32, %c0_i32_0, %c0_i32_1 : i32, i32, i32
  }
  func.func @transform_5(%arg0: i32) -> (i32, i32, i32) {
    %c0_i32 = arith.constant 0 : i32
    %c0_i32_0 = arith.constant 0 : i32
    %c0_i32_1 = arith.constant 0 : i32
    %c0_i32_2 = arith.constant 0 : i32
    return %c0_i32, %c0_i32_0, %c0_i32_1 : i32, i32, i32
  }
  func.func @transform_6(%arg0: i32) -> (i32, i32, i32) {
    %c0_i32 = arith.constant 0 : i32
    %c0_i32_0 = arith.constant 0 : i32
    %c0_i32_1 = arith.constant 0 : i32
    %c0_i32_2 = arith.constant 0 : i32
    return %c0_i32, %c0_i32_0, %c0_i32_1 : i32, i32, i32
  }
  func.func @transform_7(%arg0: i32) -> (i32, i32, i32) {
    %c0_i32 = arith.constant 0 : i32
    %c0_i32_0 = arith.constant 0 : i32
    %c0_i32_1 = arith.constant 0 : i32
    %c0_i32_2 = arith.constant 0 : i32
    return %c0_i32, %c0_i32_0, %c0_i32_1 : i32, i32, i32
  }
  func.func @transform_8(%arg0: i32) -> (i32, i32, i32) {
    %c0_i32 = arith.constant 0 : i32
    %c0_i32_0 = arith.constant 0 : i32
    %c0_i32_1 = arith.constant 0 : i32
    %c0_i32_2 = arith.constant 0 : i32
    return %c0_i32, %c0_i32_0, %c0_i32_1 : i32, i32, i32
  }
}

</mosaic_0001>

<llo_original>
// kernel: encoder_forward.1
$region0: #{encoder_forward.1}
  #allocation0 [shape = 'u32[]', space=smem, size = 0x4, offset = 0x4, fixed_abs, tag = 'smem constant byte address 0x4 - core index']
  #allocation1 [shape = 'u32[72,128]{1,0:T(1,128)}', space=vmem, size = 0x9000, scoped, tag = 'internal scratch']
  #allocation2 [shape = 'f32[4,16,32]{2,1,0:T(8,128)}', space=vmem, size = 0x8000, scoped, tag = 'scratch operand']
  #allocation3 [shape = 'f32[16,32]{1,0:T(8,128)}', space=vmem, size = 0x2000, scoped, tag = 'scratch operand']
  %s0 = inlined_call_operand.vmem [shape: bf16[16,16], index: 0, kind: input, shape index: {}]
  %s1 = inlined_call_operand.vmem [shape: bf16[4,16,32], index: 1, kind: input, shape index: {}]
  %s2 = inlined_call_operand.vmem [shape: bf16[4,32,32], index: 2, kind: input, shape index: {}]
  %s3 = inlined_call_operand.vmem [shape: f32[4,1,32], index: 3, kind: input, shape index: {}]
  %s4 = inlined_call_operand.vmem [shape: bf16[4,32,32], index: 4, kind: input, shape index: {}]
  %s5 = inlined_call_operand.hbm [shape: bf16[4,32,32], index: 5, kind: input, shape index: {}]
  %s6 = inlined_call_operand.vmem [shape: f32[4,1,32], index: 6, kind: input, shape index: {}]
  %s7 = inlined_call_operand.hbm [shape: f32[2,2,32], index: 7, kind: output, shape index: {0}]
  %s8 = inlined_call_operand.hbm [shape: f32[2,2,32], index: 8, kind: output, shape index: {1}]
  %9 = xla_tuple %s7, %s8
  %s10 = sld [smem:[#allocation0]]
  $region50: #{encoder_forward.1} parent=0
    _
  %s12 = ssub.s32 1, %s10
  %s13 = scalar_select 0, %s12, %s10
  $region1: #{encoder_forward.1} parent=0
    #allocation4 [shape = 'u8[32768]{0}', space=vmem, size = 0x8000, scoped, tag = 'input window, operand 5, single buffered']
    #allocation5 [shape = 's32[1]{0}', space=sflag, size = 0x4, scoped, tag = 'scoped memory for encoder_forward.1']
    #allocation6 [shape = 's32[1]{0}', space=sflag, size = 0x4, scoped, tag = 'scoped memory for encoder_forward.1']
    #allocation7 [shape = 'u8[2048]{0}', space=vmem, size = 0x800, scoped, tag = 'output window, operand 0, single buffered']
    #allocation8 [shape = 'u8[2048]{0}', space=vmem, size = 0x800, scoped, tag = 'output window, operand 1, single buffered']
    #allocation9 [shape = 's32[1]{0}', space=sflag, size = 0x4, scoped, tag = 'scoped memory for encoder_forward.1']
    %14 = vsyncpa [#allocation5], 0
    %15 = vsyncpa [#allocation6], 0
    %16 = vsyncpa [#allocation9], 0
    // Predicated region
    $region2: #{encoder_forward.1} parent=1 // pred_check
      _
    $region3: #{encoder_forward.1} parent=1 // pred_check_branch
      %18 = sbr.rel (0) target = $region5
    $region4: #{encoder_forward.1} parent=1 // pred_region
      _
    $region5: #{encoder_forward.1} parent=1 // pred_fallthru
      _
    // Predicated region
    $region6: #{encoder_forward.1} parent=1 // pred_check
      _
    $region7: #{encoder_forward.1} parent=1 // pred_check_branch
      %20 = sbr.rel (0) target = $region9
    $region8: #{encoder_forward.1} parent=1 // pred_region
      _
    $region9: #{encoder_forward.1} parent=1 // pred_fallthru
      _
    // Predicated region
    $region10: #{encoder_forward.1} parent=1 // pred_check
      _
    $region11: #{encoder_forward.1} parent=1 // pred_check_branch
      %22 = sbr.rel (0) target = $region13
    $region12: #{encoder_forward.1} parent=1 // pred_region
      _
    $region13: #{encoder_forward.1} parent=1 // pred_fallthru
      _
    // Predicated region
    $region14: #{encoder_forward.1} parent=1 // pred_check
      _
    $region15: #{encoder_forward.1} parent=1 // pred_check_branch
      %24 = sbr.rel (0) target = $region17
    $region16: #{encoder_forward.1} parent=1 // pred_region
      _
    $region17: #{encoder_forward.1} parent=1 // pred_fallthru
      _
    // Predicated region
    $region18: #{encoder_forward.1} parent=1 // pred_check
      _
    $region19: #{encoder_forward.1} parent=1 // pred_check_branch
      %26 = sbr.rel (0) target = $region21
    $region20: #{encoder_forward.1} parent=1 // pred_region
      _
    $region21: #{encoder_forward.1} parent=1 // pred_fallthru
      _
    // Predicated region
    $region22: #{encoder_forward.1} parent=1 // pred_check
      _
    $region23: #{encoder_forward.1} parent=1 // pred_check_branch
      %28 = sbr.rel (0) target = $region25
    $region24: #{encoder_forward.1} parent=1 // pred_region
      %30 = vsyncadd [#allocation5], 0
      %s31 = sshll.u32 %s5, 4
      %s32 = int_to_ptr.hbm [resolvable:$true] %s31
      %s33 = sshll.u32 [#allocation4], 4
      %s34 = int_to_ptr.vmem [resolvable:$true] %s33
      %39 = dma.hbm_to_vmem [thread:$0]  %s32, 1024, %s34, [#allocation5], 64, 64, 4
    $region25: #{encoder_forward.1} parent=1 // pred_fallthru
      _
    // Predicated region
    $region26: #{encoder_forward.1} parent=1 // pred_check
      _
    $region27: #{encoder_forward.1} parent=1 // pred_check_branch
      %41 = sbr.rel (0) target = $region29
    $region28: #{encoder_forward.1} parent=1 // pred_region
      _
    $region29: #{encoder_forward.1} parent=1 // pred_fallthru
      _
    // Predicated region
    $region30: #{encoder_forward.1} parent=1 // pred_check
      _
    $region31: #{encoder_forward.1} parent=1 // pred_check_branch
      %43 = sbr.rel (0) target = $region33
    $region32: #{encoder_forward.1} parent=1 // pred_region
      %45 = dma.done [#allocation5], 1024
    $region33: #{encoder_forward.1} parent=1 // pred_fallthru
      _
    %v47 = vld [vmem:[%s0] sm:$0xf]
    %v48 = vld [vmem:[%s0 + $0x4] sm:$0xf]
    %v49 = vld [vmem:[%s1] sm:$0xf]
    %v50 = vld [vmem:[%s1 + $0x4] sm:$0xf]
    %v51 = vld [vmem:[%s3] sm:$0x1]
    %v53 = vperm.slane %v51, 0
    %v57 = vunpack.c.l.b16 %v47
    %v58 = vunpack.c.l.b16 %v48
    %v59 = vpack.c.b16 %v58, %v57
    %v62 = vunpack.c.l.b16 %v49
    %v63 = vunpack.c.l.b16 %v50
    %v64 = vpack.c.b16 %v63, %v62
    %vm66 = vcmask 130048
    %v68 = vsel %vm66, %v59, 0
    %70 = vmatpush.bf16.msra.mxu0 0
    %71 = vmatpush.bf16.msra.mxu0 0
    %72 = vmatpush.bf16.msra.mxu0 0
    %73 = vmatpush.bf16.msra.mxu0 0
    %74 = vmatpush.bf16.msra.mxu0 0
    %75 = vmatpush.bf16.msra.mxu0 0
    %76 = vmatpush.bf16.msra.mxu0 0
    %77 = vmatpush.bf16.msra.mxu0 %v64
    %78 = vmatmul.bf16.gmra.mxu0 %v68
    %v79 = vpop.f32.mrf.mxu0
    %v80 = vadd.f32 %v53, %v79
    %v81 = vpop.f32.mrf.mxu0
    %v82 = vadd.f32 %v53, %v81
    %83 = vdwg.mxu0
    %vm84 = vcmask 261120
    %85 = vst.msk [vmem:[#allocation2] sm:$0xff] %vm84, %v80
    %86 = vst.msk [vmem:[#allocation2 + $0x8] sm:$0xff] %vm84, %v82
    %s87 = scalar_lea.vmem %s1, 8
    %v88 = vld [vmem:[%s87] sm:$0xf]
    %v89 = vld [vmem:[%s87 + $0x4] sm:$0xf]
    %s90 = scalar_lea.vmem %s3, 1
    %v91 = vld [vmem:[%s90] sm:$0x1]
    %v93 = vperm.slane %v91, 0
    %v97 = vunpack.c.l.b16 %v88
    %v98 = vunpack.c.l.b16 %v89
    %v99 = vpack.c.b16 %v98, %v97
    %101 = vmatpush.bf16.msra.mxu0 0
    %102 = vmatpush.bf16.msra.mxu0 0
    %103 = vmatpush.bf16.msra.mxu0 0
    %104 = vmatpush.bf16.msra.mxu0 0
    %105 = vmatpush.bf16.msra.mxu0 0
    %106 = vmatpush.bf16.msra.mxu0 0
    %107 = vmatpush.bf16.msra.mxu0 0
    %108 = vmatpush.bf16.msra.mxu0 %v99
    %109 = vmatmul.bf16.gmra.mxu0 %v68
    %v110 = vpop.f32.mrf.mxu0
    %v111 = vadd.f32 %v93, %v110
    %v112 = vpop.f32.mrf.mxu0
    %v113 = vadd.f32 %v93, %v112
    %114 = vdwg.mxu0
    %s115 = scalar_lea.vmem [#allocation2], 16
    %116 = vst.msk [vmem:[%s115] sm:$0xff] %vm84, %v111
    %117 = vst.msk [vmem:[%s115 + $0x8] sm:$0xff] %vm84, %v113
    %s118 = scalar_lea.vmem %s1, 16
    %v119 = vld [vmem:[%s118] sm:$0xf]
    %v120 = vld [vmem:[%s118 + $0x4] sm:$0xf]
    %s121 = scalar_lea.vmem %s3, 2
    %v122 = vld [vmem:[%s121] sm:$0x1]
    %v124 = vperm.slane %v122, 0
    %v128 = vunpack.c.l.b16 %v119
    %v129 = vunpack.c.l.b16 %v120
    %v130 = vpack.c.b16 %v129, %v128
    %132 = vmatpush.bf16.msra.mxu0 0
    %133 = vmatpush.bf16.msra.mxu0 0
    %134 = vmatpush.bf16.msra.mxu0 0
    %135 = vmatpush.bf16.msra.mxu0 0
    %136 = vmatpush.bf16.msra.mxu0 0
    %137 = vmatpush.bf16.msra.mxu0 0
    %138 = vmatpush.bf16.msra.mxu0 0
    %139 = vmatpush.bf16.msra.mxu0 %v130
    %140 = vmatmul.bf16.gmra.mxu0 %v68
    %v141 = vpop.f32.mrf.mxu0
    %v142 = vadd.f32 %v124, %v141
    %v143 = vpop.f32.mrf.mxu0
    %v144 = vadd.f32 %v124, %v143
    %145 = vdwg.mxu0
    %s146 = scalar_lea.vmem [#allocation2], 32
    %147 = vst.msk [vmem:[%s146] sm:$0xff] %vm84, %v142
    %148 = vst.msk [vmem:[%s146 + $0x8] sm:$0xff] %vm84, %v144
    %s149 = scalar_lea.vmem %s1, 24
    %v150 = vld [vmem:[%s149] sm:$0xf]
    %v151 = vld [vmem:[%s149 + $0x4] sm:$0xf]
    %s152 = scalar_lea.vmem %s3, 3
    %v153 = vld [vmem:[%s152] sm:$0x1]
    %v155 = vperm.slane %v153, 0
    %v159 = vunpack.c.l.b16 %v150
    %v160 = vunpack.c.l.b16 %v151
    %v161 = vpack.c.b16 %v160, %v159
    %163 = vmatpush.bf16.msra.mxu0 0
    %164 = vmatpush.bf16.msra.mxu0 0
    %165 = vmatpush.bf16.msra.mxu0 0
    %166 = vmatpush.bf16.msra.mxu0 0
    %167 = vmatpush.bf16.msra.mxu0 0
    %168 = vmatpush.bf16.msra.mxu0 0
    %169 = vmatpush.bf16.msra.mxu0 0
    %170 = vmatpush.bf16.msra.mxu0 %v161
    %171 = vmatmul.bf16.gmra.mxu0 %v68
    %v172 = vpop.f32.mrf.mxu0
    %v173 = vadd.f32 %v155, %v172
    %v174 = vpop.f32.mrf.mxu0
    %v175 = vadd.f32 %v155, %v174
    %176 = vdwg.mxu0
    %s177 = scalar_lea.vmem [#allocation2], 48
    %178 = vst.msk [vmem:[%s177] sm:$0xff] %vm84, %v173
    %179 = vst.msk [vmem:[%s177 + $0x8] sm:$0xff] %vm84, %v175
    %v180 = vld [vmem:[%s2] sm:$0xf]
    %v181 = vld [vmem:[%s2 + $0x4] sm:$0xf]
    %v182 = vld [vmem:[%s2 + $0x8] sm:$0xf]
    %v183 = vld [vmem:[%s2 + $0xc] sm:$0xf]
    %v184 = vld [vmem:[%s2 + $0x10] sm:$0xf]
    %v185 = vld [vmem:[%s2 + $0x14] sm:$0xf]
    %v186 = vld [vmem:[%s2 + $0x18] sm:$0xf]
    %v187 = vld [vmem:[%s2 + $0x1c] sm:$0xf]
    %v188 = vld [vmem:[%s2 + $0x20] sm:$0xf]
    %v189 = vld [vmem:[%s2 + $0x24] sm:$0xf]
    %v190 = vld [vmem:[%s2 + $0x28] sm:$0xf]
    %v191 = vld [vmem:[%s2 + $0x2c] sm:$0xf]
    %v192 = vld [vmem:[%s2 + $0x30] sm:$0xf]
    %v193 = vld [vmem:[%s2 + $0x34] sm:$0xf]
    %v194 = vld [vmem:[%s2 + $0x38] sm:$0xf]
    %v195 = vld [vmem:[%s2 + $0x3c] sm:$0xf]
    %v196 = vld [vmem:[#allocation2] sm:$0x3]
    %v201 = vunpack.c.l.b16 %v180
    %v202 = vunpack.c.l.b16 %v181
    %v203 = vunpack.c.l.b16 %v182
    %v204 = vunpack.c.l.b16 %v183
    %v205 = vpack.c.b16 %v202, %v201
    %v206 = vpack.c.b16 %v204, %v203
    %v210 = vsel %vm84, 0, 0
    %212 = vmatpush.bf16.msra.mxu0 0
    %213 = vmatpush.bf16.msra.mxu0 0
    %214 = vmatpush.bf16.msra.mxu0 0
    %215 = vmatpush.bf16.msra.mxu0 0
    %216 = vmatpush.bf16.msra.mxu0 0
    %217 = vmatpush.bf16.msra.mxu0 0
    %218 = vmatpush.bf16.msra.mxu0 %v206
    %219 = vmatpush.bf16.msra.mxu0 %v205
    %220 = vmatmul.bf16.gmra.mxu0 %v210
    %v221 = vpop.f32.mrf.mxu0
    %v222 = vadd.f32 0.0, %v221
    %v223 = vpop.f32.mrf.mxu0
    %224 = vdwg.mxu0
    %v225 = vadd.f32 %v196, %v222
    %v226 = vxor.u32 %v225, 2147483648
    %v227 = vmul.f32 %v226, 1.442695
    %v228 = vpow.pop %v227
    %v229 = vadd.f32 %v228, 1.0
    %v230 = vrcp.pop %v229
    %v231 = vmul.f32 %v229, %v230
    %v232 = vsub.f32 1.0, %v231
    %v233 = vmul.f32 %v230, %v232
    %v234 = vadd.f32 %v230, %v233
    %vm235 = vweird.f32 %v229
    %vm236 = vweird.f32 %v230
    %vm237 = vmor %vm235, %vm236
    %v238 = vsel %vm237, %v230, %v234
    %v239 = vand.u32 2147483647, %v229
    %vm240 = vcmp.eq.f32.partialorder %v239, 8.507059e+37
    %v241 = vand.u32 %v229, 2147483648
    %v242 = vor.u32 1.1754944e-38, %v241
    %v243 = vsel %vm240, %v242, %v238
    %v244 = vmul.f32 1.0, %v243
    %s245 = sadd.s32 0, 16
    %s246 = scalar_lea.vmem [#allocation2], %s245
    %v247 = vld [vmem:[%s246] sm:$0x3]
    %v252 = vunpack.c.l.b16 %v184
    %v253 = vunpack.c.l.b16 %v185
    %v254 = vunpack.c.l.b16 %v186
    %v255 = vunpack.c.l.b16 %v187
    %v256 = vpack.c.b16 %v253, %v252
    %v257 = vpack.c.b16 %v255, %v254
    %260 = vmatpush.bf16.msra.mxu0 0
    %261 = vmatpush.bf16.msra.mxu0 0
    %262 = vmatpush.bf16.msra.mxu0 0
    %263 = vmatpush.bf16.msra.mxu0 0
    %264 = vmatpush.bf16.msra.mxu0 0
    %265 = vmatpush.bf16.msra.mxu0 0
    %266 = vmatpush.bf16.msra.mxu0 %v257
    %267 = vmatpush.bf16.msra.mxu0 %v256
    %268 = vmatmul.bf16.gmra.mxu0 %v210
    %v269 = vpop.f32.mrf.mxu0
    %v270 = vadd.f32 0.0, %v269
    %v271 = vpop.f32.mrf.mxu0
    %272 = vdwg.mxu0
    %v273 = vadd.f32 %v247, %v270
    %v274 = vxor.u32 %v273, 2147483648
    %v275 = vmul.f32 %v274, 1.442695
    %v276 = vpow.pop %v275
    %v277 = vadd.f32 %v276, 1.0
    %v278 = vrcp.pop %v277
    %v279 = vmul.f32 %v277, %v278
    %v280 = vsub.f32 1.0, %v279
    %v281 = vmul.f32 %v278, %v280
    %v282 = vadd.f32 %v278, %v281
    %vm283 = vweird.f32 %v277
    %vm284 = vweird.f32 %v278
    %vm285 = vmor %vm283, %vm284
    %v286 = vsel %vm285, %v278, %v282
    %v287 = vand.u32 2147483647, %v277
    %vm288 = vcmp.eq.f32.partialorder %v287, 8.507059e+37
    %v289 = vand.u32 %v277, 2147483648
    %v290 = vor.u32 1.1754944e-38, %v289
    %v291 = vsel %vm288, %v290, %v286
    %v292 = vmul.f32 1.0, %v291
    %s293 = sadd.s32 0, 32
    %s294 = scalar_lea.vmem [#allocation2], %s293
    %v295 = vld [vmem:[%s294] sm:$0x3]
    %v300 = vunpack.c.l.b16 %v188
    %v301 = vunpack.c.l.b16 %v189
    %v302 = vunpack.c.l.b16 %v190
    %v303 = vunpack.c.l.b16 %v191
    %v304 = vpack.c.b16 %v301, %v300
    %v305 = vpack.c.b16 %v303, %v302
    %308 = vmatpush.bf16.msra.mxu0 0
    %309 = vmatpush.bf16.msra.mxu0 0
    %310 = vmatpush.bf16.msra.mxu0 0
    %311 = vmatpush.bf16.msra.mxu0 0
    %312 = vmatpush.bf16.msra.mxu0 0
    %313 = vmatpush.bf16.msra.mxu0 0
    %314 = vmatpush.bf16.msra.mxu0 %v305
    %315 = vmatpush.bf16.msra.mxu0 %v304
    %316 = vmatmul.bf16.gmra.mxu0 %v210
    %v317 = vpop.f32.mrf.mxu0
    %v318 = vadd.f32 0.0, %v317
    %v319 = vpop.f32.mrf.mxu0
    %320 = vdwg.mxu0
    %v321 = vadd.f32 %v295, %v318
    %v322 = vtanh.pop %v321
    %s323 = sadd.s32 0, 48
    %s324 = scalar_lea.vmem [#allocation2], %s323
    %v325 = vld [vmem:[%s324] sm:$0x3]
    %v330 = vunpack.c.l.b16 %v192
    %v331 = vunpack.c.l.b16 %v193
    %v332 = vunpack.c.l.b16 %v194
    %v333 = vunpack.c.l.b16 %v195
    %v334 = vpack.c.b16 %v331, %v330
    %v335 = vpack.c.b16 %v333, %v332
    %338 = vmatpush.bf16.msra.mxu0 0
    %339 = vmatpush.bf16.msra.mxu0 0
    %340 = vmatpush.bf16.msra.mxu0 0
    %341 = vmatpush.bf16.msra.mxu0 0
    %342 = vmatpush.bf16.msra.mxu0 0
    %343 = vmatpush.bf16.msra.mxu0 0
    %344 = vmatpush.bf16.msra.mxu0 %v335
    %345 = vmatpush.bf16.msra.mxu0 %v334
    %346 = vmatmul.bf16.gmra.mxu0 %v210
    %v347 = vpop.f32.mrf.mxu0
    %v348 = vadd.f32 0.0, %v347
    %v349 = vpop.f32.mrf.mxu0
    %350 = vdwg.mxu0
    %v351 = vadd.f32 %v325, %v348
    %v352 = vxor.u32 %v351, 2147483648
    %v353 = vmul.f32 %v352, 1.442695
    %v354 = vpow.pop %v353
    %v355 = vadd.f32 %v354, 1.0
    %v356 = vrcp.pop %v355
    %v357 = vmul.f32 %v355, %v356
    %v358 = vsub.f32 1.0, %v357
    %v359 = vmul.f32 %v356, %v358
    %v360 = vadd.f32 %v356, %v359
    %vm361 = vweird.f32 %v355
    %vm362 = vweird.f32 %v356
    %vm363 = vmor %vm361, %vm362
    %v364 = vsel %vm363, %v356, %v360
    %v365 = vand.u32 2147483647, %v355
    %vm366 = vcmp.eq.f32.partialorder %v365, 8.507059e+37
    %v367 = vand.u32 %v355, 2147483648
    %v368 = vor.u32 1.1754944e-38, %v367
    %v369 = vsel %vm366, %v368, %v364
    %v370 = vmul.f32 1.0, %v369
    %v371 = vmul.f32 %v292, 0.0
    %v372 = vmul.f32 %v244, %v322
    %v373 = vadd.f32 %v371, %v372
    %v374 = vtanh.pop %v373
    %v375 = vmul.f32 %v370, %v374
    %vm376 = vcmask 254976
    %377 = vst.msk [vmem:[#allocation3] sm:$0x3] %vm376, %v375
    %v378 = vpack.c.bf16 %v375, %v375
    %s379 = scalar_lea.vmem [#allocation2], 2
    %v380 = vld [vmem:[%s379] sm:$0x3]
    %v382 = vsel %vm84, %v378, 0
    %384 = vmatpush.bf16.msra.mxu0 0
    %385 = vmatpush.bf16.msra.mxu0 0
    %386 = vmatpush.bf16.msra.mxu0 0
    %387 = vmatpush.bf16.msra.mxu0 0
    %388 = vmatpush.bf16.msra.mxu0 0
    %389 = vmatpush.bf16.msra.mxu0 0
    %390 = vmatpush.bf16.msra.mxu0 %v206
    %391 = vmatpush.bf16.msra.mxu0 %v205
    %392 = vmatmul.bf16.gmra.mxu0 %v382
    %v393 = vpop.f32.mrf.mxu0
    %v394 = vadd.f32 0.0, %v393
    %v395 = vpop.f32.mrf.mxu0
    %396 = vdwg.mxu0
    %v397 = vadd.f32 %v380, %v394
    %v398 = vxor.u32 %v397, 2147483648
    %v399 = vmul.f32 %v398, 1.442695
    %v400 = vpow.pop %v399
    %v401 = vadd.f32 %v400, 1.0
    %v402 = vrcp.pop %v401
    %v403 = vmul.f32 %v401, %v402
    %v404 = vsub.f32 1.0, %v403
    %v405 = vmul.f32 %v402, %v404
    %v406 = vadd.f32 %v402, %v405
    %vm407 = vweird.f32 %v401
    %vm408 = vweird.f32 %v402
    %vm409 = vmor %vm407, %vm408
    %v410 = vsel %vm409, %v402, %v406
    %v411 = vand.u32 2147483647, %v401
    %vm412 = vcmp.eq.f32.partialorder %v411, 8.507059e+37
    %v413 = vand.u32 %v401, 2147483648
    %v414 = vor.u32 1.1754944e-38, %v413
    %v415 = vsel %vm412, %v414, %v410
    %v416 = vmul.f32 1.0, %v415
    %s417 = sadd.s32 2, 16
    %s418 = scalar_lea.vmem [#allocation2], %s417
    %v419 = vld [vmem:[%s418] sm:$0x3]
    %420 = vmatpush.bf16.msra.mxu0 0
    %421 = vmatpush.bf16.msra.mxu0 0
    %422 = vmatpush.bf16.msra.mxu0 0
    %423 = vmatpush.bf16.msra.mxu0 0
    %424 = vmatpush.bf16.msra.mxu0 0
    %425 = vmatpush.bf16.msra.mxu0 0
    %426 = vmatpush.bf16.msra.mxu0 %v257
    %427 = vmatpush.bf16.msra.mxu0 %v256
    %428 = vmatmul.bf16.gmra.mxu0 %v382
    %v429 = vpop.f32.mrf.mxu0
    %v430 = vadd.f32 0.0, %v429
    %v431 = vpop.f32.mrf.mxu0
    %432 = vdwg.mxu0
    %v433 = vadd.f32 %v419, %v430
    %v434 = vxor.u32 %v433, 2147483648
    %v435 = vmul.f32 %v434, 1.442695
    %v436 = vpow.pop %v435
    %v437 = vadd.f32 %v436, 1.0
    %v438 = vrcp.pop %v437
    %v439 = vmul.f32 %v437, %v438
    %v440 = vsub.f32 1.0, %v439
    %v441 = vmul.f32 %v438, %v440
    %v442 = vadd.f32 %v438, %v441
    %vm443 = vweird.f32 %v437
    %vm444 = vweird.f32 %v438
    %vm445 = vmor %vm443, %vm444
    %v446 = vsel %vm445, %v438, %v442
    %v447 = vand.u32 2147483647, %v437
    %vm448 = vcmp.eq.f32.partialorder %v447, 8.507059e+37
    %v449 = vand.u32 %v437, 2147483648
    %v450 = vor.u32 1.1754944e-38, %v449
    %v451 = vsel %vm448, %v450, %v446
    %v452 = vmul.f32 1.0, %v451
    %s453 = sadd.s32 2, 32
    %s454 = scalar_lea.vmem [#allocation2], %s453
    %v455 = vld [vmem:[%s454] sm:$0x3]
    %456 = vmatpush.bf16.msra.mxu0 0
    %457 = vmatpush.bf16.msra.mxu0 0
    %458 = vmatpush.bf16.msra.mxu0 0
    %459 = vmatpush.bf16.msra.mxu0 0
    %460 = vmatpush.bf16.msra.mxu0 0
    %461 = vmatpush.bf16.msra.mxu0 0
    %462 = vmatpush.bf16.msra.mxu0 %v305
    %463 = vmatpush.bf16.msra.mxu0 %v304
    %464 = vmatmul.bf16.gmra.mxu0 %v382
    %v465 = vpop.f32.mrf.mxu0
    %v466 = vadd.f32 0.0, %v465
    %v467 = vpop.f32.mrf.mxu0
    %468 = vdwg.mxu0
    %v469 = vadd.f32 %v455, %v466
    %v470 = vtanh.pop %v469
    %s471 = sadd.s32 2, 48
    %s472 = scalar_lea.vmem [#allocation2], %s471
    %v473 = vld [vmem:[%s472] sm:$0x3]
    %474 = vmatpush.bf16.msra.mxu0 0
    %475 = vmatpush.bf16.msra.mxu0 0
    %476 = vmatpush.bf16.msra.mxu0 0
    %477 = vmatpush.bf16.msra.mxu0 0
    %478 = vmatpush.bf16.msra.mxu0 0
    %479 = vmatpush.bf16.msra.mxu0 0
    %480 = vmatpush.bf16.msra.mxu0 %v335
    %481 = vmatpush.bf16.msra.mxu0 %v334
    %482 = vmatmul.bf16.gmra.mxu0 %v382
    %v483 = vpop.f32.mrf.mxu0
    %v484 = vadd.f32 0.0, %v483
    %v485 = vpop.f32.mrf.mxu0
    %486 = vdwg.mxu0
    %v487 = vadd.f32 %v473, %v484
    %v488 = vxor.u32 %v487, 2147483648
    %v489 = vmul.f32 %v488, 1.442695
    %v490 = vpow.pop %v489
    %v491 = vadd.f32 %v490, 1.0
    %v492 = vrcp.pop %v491
    %v493 = vmul.f32 %v491, %v492
    %v494 = vsub.f32 1.0, %v493
    %v495 = vmul.f32 %v492, %v494
    %v496 = vadd.f32 %v492, %v495
    %vm497 = vweird.f32 %v491
    %vm498 = vweird.f32 %v492
    %vm499 = vmor %vm497, %vm498
    %v500 = vsel %vm499, %v492, %v496
    %v501 = vand.u32 2147483647, %v491
    %vm502 = vcmp.eq.f32.partialorder %v501, 8.507059e+37
    %v503 = vand.u32 %v491, 2147483648
    %v504 = vor.u32 1.1754944e-38, %v503
    %v505 = vsel %vm502, %v504, %v500
    %v506 = vmul.f32 1.0, %v505
    %v507 = vmul.f32 %v452, %v373
    %v508 = vmul.f32 %v416, %v470
    %v509 = vadd.f32 %v507, %v508
    %v510 = vtanh.pop %v509
    %v511 = vmul.f32 %v506, %v510
    %s512 = scalar_lea.vmem [#allocation3], 2
    %513 = vst.msk [vmem:[%s512] sm:$0x3] %vm376, %v511
    %v514 = vpack.c.bf16 %v511, %v511
    %s515 = scalar_lea.vmem [#allocation2], 4
    %v516 = vld [vmem:[%s515] sm:$0x3]
    %v518 = vsel %vm84, %v514, 0
    %520 = vmatpush.bf16.msra.mxu0 0
    %521 = vmatpush.bf16.msra.mxu0 0
    %522 = vmatpush.bf16.msra.mxu0 0
    %523 = vmatpush.bf16.msra.mxu0 0
    %524 = vmatpush.bf16.msra.mxu0 0
    %525 = vmatpush.bf16.msra.mxu0 0
    %526 = vmatpush.bf16.msra.mxu0 %v206
    %527 = vmatpush.bf16.msra.mxu0 %v205
    %528 = vmatmul.bf16.gmra.mxu0 %v518
    %v529 = vpop.f32.mrf.mxu0
    %v530 = vadd.f32 0.0, %v529
    %v531 = vpop.f32.mrf.mxu0
    %532 = vdwg.mxu0
    %v533 = vadd.f32 %v516, %v530
    %v534 = vxor.u32 %v533, 2147483648
    %v535 = vmul.f32 %v534, 1.442695
    %v536 = vpow.pop %v535
    %v537 = vadd.f32 %v536, 1.0
    %v538 = vrcp.pop %v537
    %v539 = vmul.f32 %v537, %v538
    %v540 = vsub.f32 1.0, %v539
    %v541 = vmul.f32 %v538, %v540
    %v542 = vadd.f32 %v538, %v541
    %vm543 = vweird.f32 %v537
    %vm544 = vweird.f32 %v538
    %vm545 = vmor %vm543, %vm544
    %v546 = vsel %vm545, %v538, %v542
    %v547 = vand.u32 2147483647, %v537
    %vm548 = vcmp.eq.f32.partialorder %v547, 8.507059e+37
    %v549 = vand.u32 %v537, 2147483648
    %v550 = vor.u32 1.1754944e-38, %v549
    %v551 = vsel %vm548, %v550, %v546
    %v552 = vmul.f32 1.0, %v551
    %s553 = sadd.s32 4, 16
    %s554 = scalar_lea.vmem [#allocation2], %s553
    %v555 = vld [vmem:[%s554] sm:$0x3]
    %556 = vmatpush.bf16.msra.mxu0 0
    %557 = vmatpush.bf16.msra.mxu0 0
    %558 = vmatpush.bf16.msra.mxu0 0
    %559 = vmatpush.bf16.msra.mxu0 0
    %560 = vmatpush.bf16.msra.mxu0 0
    %561 = vmatpush.bf16.msra.mxu0 0
    %562 = vmatpush.bf16.msra.mxu0 %v257
    %563 = vmatpush.bf16.msra.mxu0 %v256
    %564 = vmatmul.bf16.gmra.mxu0 %v518
    %v565 = vpop.f32.mrf.mxu0
    %v566 = vadd.f32 0.0, %v565
    %v567 = vpop.f32.mrf.mxu0
    %568 = vdwg.mxu0
    %v569 = vadd.f32 %v555, %v566
    %v570 = vxor.u32 %v569, 2147483648
    %v571 = vmul.f32 %v570, 1.442695
    %v572 = vpow.pop %v571
    %v573 = vadd.f32 %v572, 1.0
    %v574 = vrcp.pop %v573
    %v575 = vmul.f32 %v573, %v574
    %v576 = vsub.f32 1.0, %v575
    %v577 = vmul.f32 %v574, %v576
    %v578 = vadd.f32 %v574, %v577
    %vm579 = vweird.f32 %v573
    %vm580 = vweird.f32 %v574
    %vm581 = vmor %vm579, %vm580
    %v582 = vsel %vm581, %v574, %v578
    %v583 = vand.u32 2147483647, %v573
    %vm584 = vcmp.eq.f32.partialorder %v583, 8.507059e+37
    %v585 = vand.u32 %v573, 2147483648
    %v586 = vor.u32 1.1754944e-38, %v585
    %v587 = vsel %vm584, %v586, %v582
    %v588 = vmul.f32 1.0, %v587
    %s589 = sadd.s32 4, 32
    %s590 = scalar_lea.vmem [#allocation2], %s589
    %v591 = vld [vmem:[%s590] sm:$0x3]
    %592 = vmatpush.bf16.msra.mxu0 0
    %593 = vmatpush.bf16.msra.mxu0 0
    %594 = vmatpush.bf16.msra.mxu0 0
    %595 = vmatpush.bf16.msra.mxu0 0
    %596 = vmatpush.bf16.msra.mxu0 0
    %597 = vmatpush.bf16.msra.mxu0 0
    %598 = vmatpush.bf16.msra.mxu0 %v305
    %599 = vmatpush.bf16.msra.mxu0 %v304
    %600 = vmatmul.bf16.gmra.mxu0 %v518
    %v601 = vpop.f32.mrf.mxu0
    %v602 = vadd.f32 0.0, %v601
    %v603 = vpop.f32.mrf.mxu0
    %604 = vdwg.mxu0
    %v605 = vadd.f32 %v591, %v602
    %v606 = vtanh.pop %v605
    %s607 = sadd.s32 4, 48
    %s608 = scalar_lea.vmem [#allocation2], %s607
    %v609 = vld [vmem:[%s608] sm:$0x3]
    %610 = vmatpush.bf16.msra.mxu0 0
    %611 = vmatpush.bf16.msra.mxu0 0
    %612 = vmatpush.bf16.msra.mxu0 0
    %613 = vmatpush.bf16.msra.mxu0 0
    %614 = vmatpush.bf16.msra.mxu0 0
    %615 = vmatpush.bf16.msra.mxu0 0
    %616 = vmatpush.bf16.msra.mxu0 %v335
    %617 = vmatpush.bf16.msra.mxu0 %v334
    %618 = vmatmul.bf16.gmra.mxu0 %v518
    %v619 = vpop.f32.mrf.mxu0
    %v620 = vadd.f32 0.0, %v619
    %v621 = vpop.f32.mrf.mxu0
    %622 = vdwg.mxu0
    %v623 = vadd.f32 %v609, %v620
    %v624 = vxor.u32 %v623, 2147483648
    %v625 = vmul.f32 %v624, 1.442695
    %v626 = vpow.pop %v625
    %v627 = vadd.f32 %v626, 1.0
    %v628 = vrcp.pop %v627
    %v629 = vmul.f32 %v627, %v628
    %v630 = vsub.f32 1.0, %v629
    %v631 = vmul.f32 %v628, %v630
    %v632 = vadd.f32 %v628, %v631
    %vm633 = vweird.f32 %v627
    %vm634 = vweird.f32 %v628
    %vm635 = vmor %vm633, %vm634
    %v636 = vsel %vm635, %v628, %v632
    %v637 = vand.u32 2147483647, %v627
    %vm638 = vcmp.eq.f32.partialorder %v637, 8.507059e+37
    %v639 = vand.u32 %v627, 2147483648
    %v640 = vor.u32 1.1754944e-38, %v639
    %v641 = vsel %vm638, %v640, %v636
    %v642 = vmul.f32 1.0, %v641
    %v643 = vmul.f32 %v588, %v509
    %v644 = vmul.f32 %v552, %v606
    %v645 = vadd.f32 %v643, %v644
    %v646 = vtanh.pop %v645
    %v647 = vmul.f32 %v642, %v646
    %s648 = scalar_lea.vmem [#allocation3], 4
    %649 = vst.msk [vmem:[%s648] sm:$0x3] %vm376, %v647
    %v650 = vpack.c.bf16 %v647, %v647
    %s651 = scalar_lea.vmem [#allocation2], 6
    %v652 = vld [vmem:[%s651] sm:$0x3]
    %v654 = vsel %vm84, %v650, 0
    %656 = vmatpush.bf16.msra.mxu0 0
    %657 = vmatpush.bf16.msra.mxu0 0
    %658 = vmatpush.bf16.msra.mxu0 0
    %659 = vmatpush.bf16.msra.mxu0 0
    %660 = vmatpush.bf16.msra.mxu0 0
    %661 = vmatpush.bf16.msra.mxu0 0
    %662 = vmatpush.bf16.msra.mxu0 %v206
    %663 = vmatpush.bf16.msra.mxu0 %v205
    %664 = vmatmul.bf16.gmra.mxu0 %v654
    %v665 = vpop.f32.mrf.mxu0
    %v666 = vadd.f32 0.0, %v665
    %v667 = vpop.f32.mrf.mxu0
    %668 = vdwg.mxu0
    %v669 = vadd.f32 %v652, %v666
    %v670 = vxor.u32 %v669, 2147483648
    %v671 = vmul.f32 %v670, 1.442695
    %v672 = vpow.pop %v671
    %v673 = vadd.f32 %v672, 1.0
    %v674 = vrcp.pop %v673
    %v675 = vmul.f32 %v673, %v674
    %v676 = vsub.f32 1.0, %v675
    %v677 = vmul.f32 %v674, %v676
    %v678 = vadd.f32 %v674, %v677
    %vm679 = vweird.f32 %v673
    %vm680 = vweird.f32 %v674
    %vm681 = vmor %vm679, %vm680
    %v682 = vsel %vm681, %v674, %v678
    %v683 = vand.u32 2147483647, %v673
    %vm684 = vcmp.eq.f32.partialorder %v683, 8.507059e+37
    %v685 = vand.u32 %v673, 2147483648
    %v686 = vor.u32 1.1754944e-38, %v685
    %v687 = vsel %vm684, %v686, %v682
    %v688 = vmul.f32 1.0, %v687
    %s689 = sadd.s32 6, 16
    %s690 = scalar_lea.vmem [#allocation2], %s689
    %v691 = vld [vmem:[%s690] sm:$0x3]
    %692 = vmatpush.bf16.msra.mxu0 0
    %693 = vmatpush.bf16.msra.mxu0 0
    %694 = vmatpush.bf16.msra.mxu0 0
    %695 = vmatpush.bf16.msra.mxu0 0
    %696 = vmatpush.bf16.msra.mxu0 0
    %697 = vmatpush.bf16.msra.mxu0 0
    %698 = vmatpush.bf16.msra.mxu0 %v257
    %699 = vmatpush.bf16.msra.mxu0 %v256
    %700 = vmatmul.bf16.gmra.mxu0 %v654
    %v701 = vpop.f32.mrf.mxu0
    %v702 = vadd.f32 0.0, %v701
    %v703 = vpop.f32.mrf.mxu0
    %704 = vdwg.mxu0
    %v705 = vadd.f32 %v691, %v702
    %v706 = vxor.u32 %v705, 2147483648
    %v707 = vmul.f32 %v706, 1.442695
    %v708 = vpow.pop %v707
    %v709 = vadd.f32 %v708, 1.0
    %v710 = vrcp.pop %v709
    %v711 = vmul.f32 %v709, %v710
    %v712 = vsub.f32 1.0, %v711
    %v713 = vmul.f32 %v710, %v712
    %v714 = vadd.f32 %v710, %v713
    %vm715 = vweird.f32 %v709
    %vm716 = vweird.f32 %v710
    %vm717 = vmor %vm715, %vm716
    %v718 = vsel %vm717, %v710, %v714
    %v719 = vand.u32 2147483647, %v709
    %vm720 = vcmp.eq.f32.partialorder %v719, 8.507059e+37
    %v721 = vand.u32 %v709, 2147483648
    %v722 = vor.u32 1.1754944e-38, %v721
    %v723 = vsel %vm720, %v722, %v718
    %v724 = vmul.f32 1.0, %v723
    %s725 = sadd.s32 6, 32
    %s726 = scalar_lea.vmem [#allocation2], %s725
    %v727 = vld [vmem:[%s726] sm:$0x3]
    %728 = vmatpush.bf16.msra.mxu0 0
    %729 = vmatpush.bf16.msra.mxu0 0
    %730 = vmatpush.bf16.msra.mxu0 0
    %731 = vmatpush.bf16.msra.mxu0 0
    %732 = vmatpush.bf16.msra.mxu0 0
    %733 = vmatpush.bf16.msra.mxu0 0
    %734 = vmatpush.bf16.msra.mxu0 %v305
    %735 = vmatpush.bf16.msra.mxu0 %v304
    %736 = vmatmul.bf16.gmra.mxu0 %v654
    %v737 = vpop.f32.mrf.mxu0
    %v738 = vadd.f32 0.0, %v737
    %v739 = vpop.f32.mrf.mxu0
    %740 = vdwg.mxu0
    %v741 = vadd.f32 %v727, %v738
    %v742 = vtanh.pop %v741
    %s743 = sadd.s32 6, 48
    %s744 = scalar_lea.vmem [#allocation2], %s743
    %v745 = vld [vmem:[%s744] sm:$0x3]
    %746 = vmatpush.bf16.msra.mxu0 0
    %747 = vmatpush.bf16.msra.mxu0 0
    %748 = vmatpush.bf16.msra.mxu0 0
    %749 = vmatpush.bf16.msra.mxu0 0
    %750 = vmatpush.bf16.msra.mxu0 0
    %751 = vmatpush.bf16.msra.mxu0 0
    %752 = vmatpush.bf16.msra.mxu0 %v335
    %753 = vmatpush.bf16.msra.mxu0 %v334
    %754 = vmatmul.bf16.gmra.mxu0 %v654
    %v755 = vpop.f32.mrf.mxu0
    %v756 = vadd.f32 0.0, %v755
    %v757 = vpop.f32.mrf.mxu0
    %758 = vdwg.mxu0
    %v759 = vadd.f32 %v745, %v756
    %v760 = vxor.u32 %v759, 2147483648
    %v761 = vmul.f32 %v760, 1.442695
    %v762 = vpow.pop %v761
    %v763 = vadd.f32 %v762, 1.0
    %v764 = vrcp.pop %v763
    %v765 = vmul.f32 %v763, %v764
    %v766 = vsub.f32 1.0, %v765
    %v767 = vmul.f32 %v764, %v766
    %v768 = vadd.f32 %v764, %v767
    %vm769 = vweird.f32 %v763
    %vm770 = vweird.f32 %v764
    %vm771 = vmor %vm769, %vm770
    %v772 = vsel %vm771, %v764, %v768
    %v773 = vand.u32 2147483647, %v763
    %vm774 = vcmp.eq.f32.partialorder %v773, 8.507059e+37
    %v775 = vand.u32 %v763, 2147483648
    %v776 = vor.u32 1.1754944e-38, %v775
    %v777 = vsel %vm774, %v776, %v772
    %v778 = vmul.f32 1.0, %v777
    %v779 = vmul.f32 %v724, %v645
    %v780 = vmul.f32 %v688, %v742
    %v781 = vadd.f32 %v779, %v780
    %v782 = vtanh.pop %v781
    %v783 = vmul.f32 %v778, %v782
    %s784 = scalar_lea.vmem [#allocation3], 6
    %785 = vst.msk [vmem:[%s784] sm:$0x3] %vm376, %v783
    %v786 = vpack.c.bf16 %v783, %v783
    %s787 = scalar_lea.vmem [#allocation2], 8
    %v788 = vld [vmem:[%s787] sm:$0x3]
    %v790 = vsel %vm84, %v786, 0
    %792 = vmatpush.bf16.msra.mxu0 0
    %793 = vmatpush.bf16.msra.mxu0 0
    %794 = vmatpush.bf16.msra.mxu0 0
    %795 = vmatpush.bf16.msra.mxu0 0
    %796 = vmatpush.bf16.msra.mxu0 0
    %797 = vmatpush.bf16.msra.mxu0 0
    %798 = vmatpush.bf16.msra.mxu0 %v206
    %799 = vmatpush.bf16.msra.mxu0 %v205
    %800 = vmatmul.bf16.gmra.mxu0 %v790
    %v801 = vpop.f32.mrf.mxu0
    %v802 = vadd.f32 0.0, %v801
    %v803 = vpop.f32.mrf.mxu0
    %804 = vdwg.mxu0
    %v805 = vadd.f32 %v788, %v802
    %v806 = vxor.u32 %v805, 2147483648
    %v807 = vmul.f32 %v806, 1.442695
    %v808 = vpow.pop %v807
    %v809 = vadd.f32 %v808, 1.0
    %v810 = vrcp.pop %v809
    %v811 = vmul.f32 %v809, %v810
    %v812 = vsub.f32 1.0, %v811
    %v813 = vmul.f32 %v810, %v812
    %v814 = vadd.f32 %v810, %v813
    %vm815 = vweird.f32 %v809
    %vm816 = vweird.f32 %v810
    %vm817 = vmor %vm815, %vm816
    %v818 = vsel %vm817, %v810, %v814
    %v819 = vand.u32 2147483647, %v809
    %vm820 = vcmp.eq.f32.partialorder %v819, 8.507059e+37
    %v821 = vand.u32 %v809, 2147483648
    %v822 = vor.u32 1.1754944e-38, %v821
    %v823 = vsel %vm820, %v822, %v818
    %v824 = vmul.f32 1.0, %v823
    %s825 = sadd.s32 8, 16
    %s826 = scalar_lea.vmem [#allocation2], %s825
    %v827 = vld [vmem:[%s826] sm:$0x3]
    %828 = vmatpush.bf16.msra.mxu0 0
    %829 = vmatpush.bf16.msra.mxu0 0
    %830 = vmatpush.bf16.msra.mxu0 0
    %831 = vmatpush.bf16.msra.mxu0 0
    %832 = vmatpush.bf16.msra.mxu0 0
    %833 = vmatpush.bf16.msra.mxu0 0
    %834 = vmatpush.bf16.msra.mxu0 %v257
    %835 = vmatpush.bf16.msra.mxu0 %v256
    %836 = vmatmul.bf16.gmra.mxu0 %v790
    %v837 = vpop.f32.mrf.mxu0
    %v838 = vadd.f32 0.0, %v837
    %v839 = vpop.f32.mrf.mxu0
    %840 = vdwg.mxu0
    %v841 = vadd.f32 %v827, %v838
    %v842 = vxor.u32 %v841, 2147483648
    %v843 = vmul.f32 %v842, 1.442695
    %v844 = vpow.pop %v843
    %v845 = vadd.f32 %v844, 1.0
    %v846 = vrcp.pop %v845
    %v847 = vmul.f32 %v845, %v846
    %v848 = vsub.f32 1.0, %v847
    %v849 = vmul.f32 %v846, %v848
    %v850 = vadd.f32 %v846, %v849
    %vm851 = vweird.f32 %v845
    %vm852 = vweird.f32 %v846
    %vm853 = vmor %vm851, %vm852
    %v854 = vsel %vm853, %v846, %v850
    %v855 = vand.u32 2147483647, %v845
    %vm856 = vcmp.eq.f32.partialorder %v855, 8.507059e+37
    %v857 = vand.u32 %v845, 2147483648
    %v858 = vor.u32 1.1754944e-38, %v857
    %v859 = vsel %vm856, %v858, %v854
    %v860 = vmul.f32 1.0, %v859
    %s861 = sadd.s32 8, 32
    %s862 = scalar_lea.vmem [#allocation2], %s861
    %v863 = vld [vmem:[%s862] sm:$0x3]
    %864 = vmatpush.bf16.msra.mxu0 0
    %865 = vmatpush.bf16.msra.mxu0 0
    %866 = vmatpush.bf16.msra.mxu0 0
    %867 = vmatpush.bf16.msra.mxu0 0
    %868 = vmatpush.bf16.msra.mxu0 0
    %869 = vmatpush.bf16.msra.mxu0 0
    %870 = vmatpush.bf16.msra.mxu0 %v305
    %871 = vmatpush.bf16.msra.mxu0 %v304
    %872 = vmatmul.bf16.gmra.mxu0 %v790
    %v873 = vpop.f32.mrf.mxu0
    %v874 = vadd.f32 0.0, %v873
    %v875 = vpop.f32.mrf.mxu0
    %876 = vdwg.mxu0
    %v877 = vadd.f32 %v863, %v874
    %v878 = vtanh.pop %v877
    %s879 = sadd.s32 8, 48
    %s880 = scalar_lea.vmem [#allocation2], %s879
    %v881 = vld [vmem:[%s880] sm:$0x3]
    %882 = vmatpush.bf16.msra.mxu0 0
    %883 = vmatpush.bf16.msra.mxu0 0
    %884 = vmatpush.bf16.msra.mxu0 0
    %885 = vmatpush.bf16.msra.mxu0 0
    %886 = vmatpush.bf16.msra.mxu0 0
    %887 = vmatpush.bf16.msra.mxu0 0
    %888 = vmatpush.bf16.msra.mxu0 %v335
    %889 = vmatpush.bf16.msra.mxu0 %v334
    %890 = vmatmul.bf16.gmra.mxu0 %v790
    %v891 = vpop.f32.mrf.mxu0
    %v892 = vadd.f32 0.0, %v891
    %v893 = vpop.f32.mrf.mxu0
    %894 = vdwg.mxu0
    %v895 = vadd.f32 %v881, %v892
    %v896 = vxor.u32 %v895, 2147483648
    %v897 = vmul.f32 %v896, 1.442695
    %v898 = vpow.pop %v897
    %v899 = vadd.f32 %v898, 1.0
    %v900 = vrcp.pop %v899
    %v901 = vmul.f32 %v899, %v900
    %v902 = vsub.f32 1.0, %v901
    %v903 = vmul.f32 %v900, %v902
    %v904 = vadd.f32 %v900, %v903
    %vm905 = vweird.f32 %v899
    %vm906 = vweird.f32 %v900
    %vm907 = vmor %vm905, %vm906
    %v908 = vsel %vm907, %v900, %v904
    %v909 = vand.u32 2147483647, %v899
    %vm910 = vcmp.eq.f32.partialorder %v909, 8.507059e+37
    %v911 = vand.u32 %v899, 2147483648
    %v912 = vor.u32 1.1754944e-38, %v911
    %v913 = vsel %vm910, %v912, %v908
    %v914 = vmul.f32 1.0, %v913
    %v915 = vmul.f32 %v860, %v781
    %v916 = vmul.f32 %v824, %v878
    %v917 = vadd.f32 %v915, %v916
    %v918 = vtanh.pop %v917
    %v919 = vmul.f32 %v914, %v918
    %s920 = scalar_lea.vmem [#allocation3], 8
    %921 = vst.msk [vmem:[%s920] sm:$0x3] %vm376, %v919
    %v922 = vpack.c.bf16 %v919, %v919
    %s923 = scalar_lea.vmem [#allocation2], 10
    %v924 = vld [vmem:[%s923] sm:$0x3]
    %v926 = vsel %vm84, %v922, 0
    %928 = vmatpush.bf16.msra.mxu0 0
    %929 = vmatpush.bf16.msra.mxu0 0
    %930 = vmatpush.bf16.msra.mxu0 0
    %931 = vmatpush.bf16.msra.mxu0 0
    %932 = vmatpush.bf16.msra.mxu0 0
    %933 = vmatpush.bf16.msra.mxu0 0
    %934 = vmatpush.bf16.msra.mxu0 %v206
    %935 = vmatpush.bf16.msra.mxu0 %v205
    %936 = vmatmul.bf16.gmra.mxu0 %v926
    %v937 = vpop.f32.mrf.mxu0
    %v938 = vadd.f32 0.0, %v937
    %v939 = vpop.f32.mrf.mxu0
    %940 = vdwg.mxu0
    %v941 = vadd.f32 %v924, %v938
    %v942 = vxor.u32 %v941, 2147483648
    %v943 = vmul.f32 %v942, 1.442695
    %v944 = vpow.pop %v943
    %v945 = vadd.f32 %v944, 1.0
    %v946 = vrcp.pop %v945
    %v947 = vmul.f32 %v945, %v946
    %v948 = vsub.f32 1.0, %v947
    %v949 = vmul.f32 %v946, %v948
    %v950 = vadd.f32 %v946, %v949
    %vm951 = vweird.f32 %v945
    %vm952 = vweird.f32 %v946
    %vm953 = vmor %vm951, %vm952
    %v954 = vsel %vm953, %v946, %v950
    %v955 = vand.u32 2147483647, %v945
    %vm956 = vcmp.eq.f32.partialorder %v955, 8.507059e+37
    %v957 = vand.u32 %v945, 2147483648
    %v958 = vor.u32 1.1754944e-38, %v957
    %v959 = vsel %vm956, %v958, %v954
    %v960 = vmul.f32 1.0, %v959
    %s961 = sadd.s32 10, 16
    %s962 = scalar_lea.vmem [#allocation2], %s961
    %v963 = vld [vmem:[%s962] sm:$0x3]
    %964 = vmatpush.bf16.msra.mxu0 0
    %965 = vmatpush.bf16.msra.mxu0 0
    %966 = vmatpush.bf16.msra.mxu0 0
    %967 = vmatpush.bf16.msra.mxu0 0
    %968 = vmatpush.bf16.msra.mxu0 0
    %969 = vmatpush.bf16.msra.mxu0 0
    %970 = vmatpush.bf16.msra.mxu0 %v257
    %971 = vmatpush.bf16.msra.mxu0 %v256
    %972 = vmatmul.bf16.gmra.mxu0 %v926
    %v973 = vpop.f32.mrf.mxu0
    %v974 = vadd.f32 0.0, %v973
    %v975 = vpop.f32.mrf.mxu0
    %976 = vdwg.mxu0
    %v977 = vadd.f32 %v963, %v974
    %v978 = vxor.u32 %v977, 2147483648
    %v979 = vmul.f32 %v978, 1.442695
    %v980 = vpow.pop %v979
    %v981 = vadd.f32 %v980, 1.0
    %v982 = vrcp.pop %v981
    %v983 = vmul.f32 %v981, %v982
    %v984 = vsub.f32 1.0, %v983
    %v985 = vmul.f32 %v982, %v984
    %v986 = vadd.f32 %v982, %v985
    %vm987 = vweird.f32 %v981
    %vm988 = vweird.f32 %v982
    %vm989 = vmor %vm987, %vm988
    %v990 = vsel %vm989, %v982, %v986
    %v991 = vand.u32 2147483647, %v981
    %vm992 = vcmp.eq.f32.partialorder %v991, 8.507059e+37
    %v993 = vand.u32 %v981, 2147483648
    %v994 = vor.u32 1.1754944e-38, %v993
    %v995 = vsel %vm992, %v994, %v990
    %v996 = vmul.f32 1.0, %v995
    %s997 = sadd.s32 10, 32
    %s998 = scalar_lea.vmem [#allocation2], %s997
    %v999 = vld [vmem:[%s998] sm:$0x3]
    %1000 = vmatpush.bf16.msra.mxu0 0
    %1001 = vmatpush.bf16.msra.mxu0 0
    %1002 = vmatpush.bf16.msra.mxu0 0
    %1003 = vmatpush.bf16.msra.mxu0 0
    %1004 = vmatpush.bf16.msra.mxu0 0
    %1005 = vmatpush.bf16.msra.mxu0 0
    %1006 = vmatpush.bf16.msra.mxu0 %v305
    %1007 = vmatpush.bf16.msra.mxu0 %v304
    %1008 = vmatmul.bf16.gmra.mxu0 %v926
    %v1009 = vpop.f32.mrf.mxu0
    %v1010 = vadd.f32 0.0, %v1009
    %v1011 = vpop.f32.mrf.mxu0
    %1012 = vdwg.mxu0
    %v1013 = vadd.f32 %v999, %v1010
    %v1014 = vtanh.pop %v1013
    %s1015 = sadd.s32 10, 48
    %s1016 = scalar_lea.vmem [#allocation2], %s1015
    %v1017 = vld [vmem:[%s1016] sm:$0x3]
    %1018 = vmatpush.bf16.msra.mxu0 0
    %1019 = vmatpush.bf16.msra.mxu0 0
    %1020 = vmatpush.bf16.msra.mxu0 0
    %1021 = vmatpush.bf16.msra.mxu0 0
    %1022 = vmatpush.bf16.msra.mxu0 0
    %1023 = vmatpush.bf16.msra.mxu0 0
    %1024 = vmatpush.bf16.msra.mxu0 %v335
    %1025 = vmatpush.bf16.msra.mxu0 %v334
    %1026 = vmatmul.bf16.gmra.mxu0 %v926
    %v1027 = vpop.f32.mrf.mxu0
    %v1028 = vadd.f32 0.0, %v1027
    %v1029 = vpop.f32.mrf.mxu0
    %1030 = vdwg.mxu0
    %v1031 = vadd.f32 %v1017, %v1028
    %v1032 = vxor.u32 %v1031, 2147483648
    %v1033 = vmul.f32 %v1032, 1.442695
    %v1034 = vpow.pop %v1033
    %v1035 = vadd.f32 %v1034, 1.0
    %v1036 = vrcp.pop %v1035
    %v1037 = vmul.f32 %v1035, %v1036
    %v1038 = vsub.f32 1.0, %v1037
    %v1039 = vmul.f32 %v1036, %v1038
    %v1040 = vadd.f32 %v1036, %v1039
    %vm1041 = vweird.f32 %v1035
    %vm1042 = vweird.f32 %v1036
    %vm1043 = vmor %vm1041, %vm1042
    %v1044 = vsel %vm1043, %v1036, %v1040
    %v1045 = vand.u32 2147483647, %v1035
    %vm1046 = vcmp.eq.f32.partialorder %v1045, 8.507059e+37
    %v1047 = vand.u32 %v1035, 2147483648
    %v1048 = vor.u32 1.1754944e-38, %v1047
    %v1049 = vsel %vm1046, %v1048, %v1044
    %v1050 = vmul.f32 1.0, %v1049
    %v1051 = vmul.f32 %v996, %v917
    %v1052 = vmul.f32 %v960, %v1014
    %v1053 = vadd.f32 %v1051, %v1052
    %v1054 = vtanh.pop %v1053
    %v1055 = vmul.f32 %v1050, %v1054
    %s1056 = scalar_lea.vmem [#allocation3], 10
    %1057 = vst.msk [vmem:[%s1056] sm:$0x3] %vm376, %v1055
    %v1058 = vpack.c.bf16 %v1055, %v1055
    %s1059 = scalar_lea.vmem [#allocation2], 12
    %v1060 = vld [vmem:[%s1059] sm:$0x3]
    %v1062 = vsel %vm84, %v1058, 0
    %1064 = vmatpush.bf16.msra.mxu0 0
    %1065 = vmatpush.bf16.msra.mxu0 0
    %1066 = vmatpush.bf16.msra.mxu0 0
    %1067 = vmatpush.bf16.msra.mxu0 0
    %1068 = vmatpush.bf16.msra.mxu0 0
    %1069 = vmatpush.bf16.msra.mxu0 0
    %1070 = vmatpush.bf16.msra.mxu0 %v206
    %1071 = vmatpush.bf16.msra.mxu0 %v205
    %1072 = vmatmul.bf16.gmra.mxu0 %v1062
    %v1073 = vpop.f32.mrf.mxu0
    %v1074 = vadd.f32 0.0, %v1073
    %v1075 = vpop.f32.mrf.mxu0
    %1076 = vdwg.mxu0
    %v1077 = vadd.f32 %v1060, %v1074
    %v1078 = vxor.u32 %v1077, 2147483648
    %v1079 = vmul.f32 %v1078, 1.442695
    %v1080 = vpow.pop %v1079
    %v1081 = vadd.f32 %v1080, 1.0
    %v1082 = vrcp.pop %v1081
    %v1083 = vmul.f32 %v1081, %v1082
    %v1084 = vsub.f32 1.0, %v1083
    %v1085 = vmul.f32 %v1082, %v1084
    %v1086 = vadd.f32 %v1082, %v1085
    %vm1087 = vweird.f32 %v1081
    %vm1088 = vweird.f32 %v1082
    %vm1089 = vmor %vm1087, %vm1088
    %v1090 = vsel %vm1089, %v1082, %v1086
    %v1091 = vand.u32 2147483647, %v1081
    %vm1092 = vcmp.eq.f32.partialorder %v1091, 8.507059e+37
    %v1093 = vand.u32 %v1081, 2147483648
    %v1094 = vor.u32 1.1754944e-38, %v1093
    %v1095 = vsel %vm1092, %v1094, %v1090
    %v1096 = vmul.f32 1.0, %v1095
    %s1097 = sadd.s32 12, 16
    %s1098 = scalar_lea.vmem [#allocation2], %s1097
    %v1099 = vld [vmem:[%s1098] sm:$0x3]
    %1100 = vmatpush.bf16.msra.mxu0 0
    %1101 = vmatpush.bf16.msra.mxu0 0
    %1102 = vmatpush.bf16.msra.mxu0 0
    %1103 = vmatpush.bf16.msra.mxu0 0
    %1104 = vmatpush.bf16.msra.mxu0 0
    %1105 = vmatpush.bf16.msra.mxu0 0
    %1106 = vmatpush.bf16.msra.mxu0 %v257
    %1107 = vmatpush.bf16.msra.mxu0 %v256
    %1108 = vmatmul.bf16.gmra.mxu0 %v1062
    %v1109 = vpop.f32.mrf.mxu0
    %v1110 = vadd.f32 0.0, %v1109
    %v1111 = vpop.f32.mrf.mxu0
    %1112 = vdwg.mxu0
    %v1113 = vadd.f32 %v1099, %v1110
    %v1114 = vxor.u32 %v1113, 2147483648
    %v1115 = vmul.f32 %v1114, 1.442695
    %v1116 = vpow.pop %v1115
    %v1117 = vadd.f32 %v1116, 1.0
    %v1118 = vrcp.pop %v1117
    %v1119 = vmul.f32 %v1117, %v1118
    %v1120 = vsub.f32 1.0, %v1119
    %v1121 = vmul.f32 %v1118, %v1120
    %v1122 = vadd.f32 %v1118, %v1121
    %vm1123 = vweird.f32 %v1117
    %vm1124 = vweird.f32 %v1118
    %vm1125 = vmor %vm1123, %vm1124
    %v1126 = vsel %vm1125, %v1118, %v1122
    %v1127 = vand.u32 2147483647, %v1117
    %vm1128 = vcmp.eq.f32.partialorder %v1127, 8.507059e+37
    %v1129 = vand.u32 %v1117, 2147483648
    %v1130 = vor.u32 1.1754944e-38, %v1129
    %v1131 = vsel %vm1128, %v1130, %v1126
    %v1132 = vmul.f32 1.0, %v1131
    %s1133 = sadd.s32 12, 32
    %s1134 = scalar_lea.vmem [#allocation2], %s1133
    %v1135 = vld [vmem:[%s1134] sm:$0x3]
    %1136 = vmatpush.bf16.msra.mxu0 0
    %1137 = vmatpush.bf16.msra.mxu0 0
    %1138 = vmatpush.bf16.msra.mxu0 0
    %1139 = vmatpush.bf16.msra.mxu0 0
    %1140 = vmatpush.bf16.msra.mxu0 0
    %1141 = vmatpush.bf16.msra.mxu0 0
    %1142 = vmatpush.bf16.msra.mxu0 %v305
    %1143 = vmatpush.bf16.msra.mxu0 %v304
    %1144 = vmatmul.bf16.gmra.mxu0 %v1062
    %v1145 = vpop.f32.mrf.mxu0
    %v1146 = vadd.f32 0.0, %v1145
    %v1147 = vpop.f32.mrf.mxu0
    %1148 = vdwg.mxu0
    %v1149 = vadd.f32 %v1135, %v1146
    %v1150 = vtanh.pop %v1149
    %s1151 = sadd.s32 12, 48
    %s1152 = scalar_lea.vmem [#allocation2], %s1151
    %v1153 = vld [vmem:[%s1152] sm:$0x3]
    %1154 = vmatpush.bf16.msra.mxu0 0
    %1155 = vmatpush.bf16.msra.mxu0 0
    %1156 = vmatpush.bf16.msra.mxu0 0
    %1157 = vmatpush.bf16.msra.mxu0 0
    %1158 = vmatpush.bf16.msra.mxu0 0
    %1159 = vmatpush.bf16.msra.mxu0 0
    %1160 = vmatpush.bf16.msra.mxu0 %v335
    %1161 = vmatpush.bf16.msra.mxu0 %v334
    %1162 = vmatmul.bf16.gmra.mxu0 %v1062
    %v1163 = vpop.f32.mrf.mxu0
    %v1164 = vadd.f32 0.0, %v1163
    %v1165 = vpop.f32.mrf.mxu0
    %1166 = vdwg.mxu0
    %v1167 = vadd.f32 %v1153, %v1164
    %v1168 = vxor.u32 %v1167, 2147483648
    %v1169 = vmul.f32 %v1168, 1.442695
    %v1170 = vpow.pop %v1169
    %v1171 = vadd.f32 %v1170, 1.0
    %v1172 = vrcp.pop %v1171
    %v1173 = vmul.f32 %v1171, %v1172
    %v1174 = vsub.f32 1.0, %v1173
    %v1175 = vmul.f32 %v1172, %v1174
    %v1176 = vadd.f32 %v1172, %v1175
    %vm1177 = vweird.f32 %v1171
    %vm1178 = vweird.f32 %v1172
    %vm1179 = vmor %vm1177, %vm1178
    %v1180 = vsel %vm1179, %v1172, %v1176
    %v1181 = vand.u32 2147483647, %v1171
    %vm1182 = vcmp.eq.f32.partialorder %v1181, 8.507059e+37
    %v1183 = vand.u32 %v1171, 2147483648
    %v1184 = vor.u32 1.1754944e-38, %v1183
    %v1185 = vsel %vm1182, %v1184, %v1180
    %v1186 = vmul.f32 1.0, %v1185
    %v1187 = vmul.f32 %v1132, %v1053
    %v1188 = vmul.f32 %v1096, %v1150
    %v1189 = vadd.f32 %v1187, %v1188
    %v1190 = vtanh.pop %v1189
    %v1191 = vmul.f32 %v1186, %v1190
    %s1192 = scalar_lea.vmem [#allocation3], 12
    %1193 = vst.msk [vmem:[%s1192] sm:$0x3] %vm376, %v1191
    %v1194 = vpack.c.bf16 %v1191, %v1191
    %s1195 = scalar_lea.vmem [#allocation2], 14
    %v1196 = vld [vmem:[%s1195] sm:$0x3]
    %v1198 = vsel %vm84, %v1194, 0
    %1200 = vmatpush.bf16.msra.mxu0 0
    %1201 = vmatpush.bf16.msra.mxu0 0
    %1202 = vmatpush.bf16.msra.mxu0 0
    %1203 = vmatpush.bf16.msra.mxu0 0
    %1204 = vmatpush.bf16.msra.mxu0 0
    %1205 = vmatpush.bf16.msra.mxu0 0
    %1206 = vmatpush.bf16.msra.mxu0 %v206
    %1207 = vmatpush.bf16.msra.mxu0 %v205
    %1208 = vmatmul.bf16.gmra.mxu0 %v1198
    %v1209 = vpop.f32.mrf.mxu0
    %v1210 = vadd.f32 0.0, %v1209
    %v1211 = vpop.f32.mrf.mxu0
    %1212 = vdwg.mxu0
    %v1213 = vadd.f32 %v1196, %v1210
    %v1214 = vxor.u32 %v1213, 2147483648
    %v1215 = vmul.f32 %v1214, 1.442695
    %v1216 = vpow.pop %v1215
    %v1217 = vadd.f32 %v1216, 1.0
    %v1218 = vrcp.pop %v1217
    %v1219 = vmul.f32 %v1217, %v1218
    %v1220 = vsub.f32 1.0, %v1219
    %v1221 = vmul.f32 %v1218, %v1220
    %v1222 = vadd.f32 %v1218, %v1221
    %vm1223 = vweird.f32 %v1217
    %vm1224 = vweird.f32 %v1218
    %vm1225 = vmor %vm1223, %vm1224
    %v1226 = vsel %vm1225, %v1218, %v1222
    %v1227 = vand.u32 2147483647, %v1217
    %vm1228 = vcmp.eq.f32.partialorder %v1227, 8.507059e+37
    %v1229 = vand.u32 %v1217, 2147483648
    %v1230 = vor.u32 1.1754944e-38, %v1229
    %v1231 = vsel %vm1228, %v1230, %v1226
    %v1232 = vmul.f32 1.0, %v1231
    %s1233 = sadd.s32 14, 16
    %s1234 = scalar_lea.vmem [#allocation2], %s1233
    %v1235 = vld [vmem:[%s1234] sm:$0x3]
    %1236 = vmatpush.bf16.msra.mxu0 0
    %1237 = vmatpush.bf16.msra.mxu0 0
    %1238 = vmatpush.bf16.msra.mxu0 0
    %1239 = vmatpush.bf16.msra.mxu0 0
    %1240 = vmatpush.bf16.msra.mxu0 0
    %1241 = vmatpush.bf16.msra.mxu0 0
    %1242 = vmatpush.bf16.msra.mxu0 %v257
    %1243 = vmatpush.bf16.msra.mxu0 %v256
    %1244 = vmatmul.bf16.gmra.mxu0 %v1198
    %v1245 = vpop.f32.mrf.mxu0
    %v1246 = vadd.f32 0.0, %v1245
    %v1247 = vpop.f32.mrf.mxu0
    %1248 = vdwg.mxu0
    %v1249 = vadd.f32 %v1235, %v1246
    %v1250 = vxor.u32 %v1249, 2147483648
    %v1251 = vmul.f32 %v1250, 1.442695
    %v1252 = vpow.pop %v1251
    %v1253 = vadd.f32 %v1252, 1.0
    %v1254 = vrcp.pop %v1253
    %v1255 = vmul.f32 %v1253, %v1254
    %v1256 = vsub.f32 1.0, %v1255
    %v1257 = vmul.f32 %v1254, %v1256
    %v1258 = vadd.f32 %v1254, %v1257
    %vm1259 = vweird.f32 %v1253
    %vm1260 = vweird.f32 %v1254
    %vm1261 = vmor %vm1259, %vm1260
    %v1262 = vsel %vm1261, %v1254, %v1258
    %v1263 = vand.u32 2147483647, %v1253
    %vm1264 = vcmp.eq.f32.partialorder %v1263, 8.507059e+37
    %v1265 = vand.u32 %v1253, 2147483648
    %v1266 = vor.u32 1.1754944e-38, %v1265
    %v1267 = vsel %vm1264, %v1266, %v1262
    %v1268 = vmul.f32 1.0, %v1267
    %s1269 = sadd.s32 14, 32
    %s1270 = scalar_lea.vmem [#allocation2], %s1269
    %v1271 = vld [vmem:[%s1270] sm:$0x3]
    %1272 = vmatpush.bf16.msra.mxu0 0
    %1273 = vmatpush.bf16.msra.mxu0 0
    %1274 = vmatpush.bf16.msra.mxu0 0
    %1275 = vmatpush.bf16.msra.mxu0 0
    %1276 = vmatpush.bf16.msra.mxu0 0
    %1277 = vmatpush.bf16.msra.mxu0 0
    %1278 = vmatpush.bf16.msra.mxu0 %v305
    %1279 = vmatpush.bf16.msra.mxu0 %v304
    %1280 = vmatmul.bf16.gmra.mxu0 %v1198
    %v1281 = vpop.f32.mrf.mxu0
    %v1282 = vadd.f32 0.0, %v1281
    %v1283 = vpop.f32.mrf.mxu0
    %1284 = vdwg.mxu0
    %v1285 = vadd.f32 %v1271, %v1282
    %v1286 = vtanh.pop %v1285
    %s1287 = sadd.s32 14, 48
    %s1288 = scalar_lea.vmem [#allocation2], %s1287
    %v1289 = vld [vmem:[%s1288] sm:$0x3]
    %1290 = vmatpush.bf16.msra.mxu0 0
    %1291 = vmatpush.bf16.msra.mxu0 0
    %1292 = vmatpush.bf16.msra.mxu0 0
    %1293 = vmatpush.bf16.msra.mxu0 0
    %1294 = vmatpush.bf16.msra.mxu0 0
    %1295 = vmatpush.bf16.msra.mxu0 0
    %1296 = vmatpush.bf16.msra.mxu0 %v335
    %1297 = vmatpush.bf16.msra.mxu0 %v334
    %1298 = vmatmul.bf16.gmra.mxu0 %v1198
    %v1299 = vpop.f32.mrf.mxu0
    %v1300 = vadd.f32 0.0, %v1299
    %v1301 = vpop.f32.mrf.mxu0
    %1302 = vdwg.mxu0
    %v1303 = vadd.f32 %v1289, %v1300
    %v1304 = vxor.u32 %v1303, 2147483648
    %v1305 = vmul.f32 %v1304, 1.442695
    %v1306 = vpow.pop %v1305
    %v1307 = vadd.f32 %v1306, 1.0
    %v1308 = vrcp.pop %v1307
    %v1309 = vmul.f32 %v1307, %v1308
    %v1310 = vsub.f32 1.0, %v1309
    %v1311 = vmul.f32 %v1308, %v1310
    %v1312 = vadd.f32 %v1308, %v1311
    %vm1313 = vweird.f32 %v1307
    %vm1314 = vweird.f32 %v1308
    %vm1315 = vmor %vm1313, %vm1314
    %v1316 = vsel %vm1315, %v1308, %v1312
    %v1317 = vand.u32 2147483647, %v1307
    %vm1318 = vcmp.eq.f32.partialorder %v1317, 8.507059e+37
    %v1319 = vand.u32 %v1307, 2147483648
    %v1320 = vor.u32 1.1754944e-38, %v1319
    %v1321 = vsel %vm1318, %v1320, %v1316
    %v1322 = vmul.f32 1.0, %v1321
    %v1323 = vmul.f32 %v1268, %v1189
    %v1324 = vmul.f32 %v1232, %v1286
    %v1325 = vadd.f32 %v1323, %v1324
    %v1326 = vtanh.pop %v1325
    %v1327 = vmul.f32 %v1322, %v1326
    %s1328 = scalar_lea.vmem [#allocation3], 14
    %1329 = vst.msk [vmem:[%s1328] sm:$0x3] %vm376, %v1327
    %1330 = vst.msk [vmem:[#allocation7] sm:$0x3] %vm376, %v1327
    %1331 = vst.msk [vmem:[#allocation8] sm:$0x3] %vm376, %v1325
    %v1332 = vld [vmem:[#allocation3] sm:$0xff]
    %v1333 = vld [vmem:[#allocation3 + $0x8] sm:$0xff]
    %v1334 = vpack.c.bf16 %v1333, %v1332
    %v1335 = vld [vmem:[%s4] sm:$0xf]
    %v1336 = vld [vmem:[%s4 + $0x4] sm:$0xf]
    %v1337 = vld [vmem:[%s4 + $0x8] sm:$0xf]
    %v1338 = vld [vmem:[%s4 + $0xc] sm:$0xf]
    %v1339 = vld [vmem:[%s6] sm:$0x1]
    %v1341 = vperm.slane %v1339, 0
    %v1347 = vunpack.c.l.b16 %v1335
    %v1348 = vunpack.c.l.b16 %v1336
    %v1349 = vunpack.c.l.b16 %v1337
    %v1350 = vunpack.c.l.b16 %v1338
    %v1351 = vpack.c.b16 %v1348, %v1347
    %v1352 = vpack.c.b16 %v1350, %v1349
    %v1356 = vsel %vm84, %v1334, 0
    %1358 = vmatpush.bf16.msra.mxu0 0
    %1359 = vmatpush.bf16.msra.mxu0 0
    %1360 = vmatpush.bf16.msra.mxu0 0
    %1361 = vmatpush.bf16.msra.mxu0 0
    %1362 = vmatpush.bf16.msra.mxu0 0
    %1363 = vmatpush.bf16.msra.mxu0 0
    %1364 = vmatpush.bf16.msra.mxu0 %v1352
    %1365 = vmatpush.bf16.msra.mxu0 %v1351
    %1366 = vmatmul.bf16.gmra.mxu0 %v1356
    %v1367 = vpop.f32.mrf.mxu0
    %v1368 = vadd.f32 %v1341, %v1367
    %v1369 = vpop.f32.mrf.mxu0
    %v1370 = vadd.f32 %v1341, %v1369
    %1371 = vdwg.mxu0
    %1372 = vst.msk [vmem:[#allocation2] sm:$0xff] %vm84, %v1368
    %1373 = vst.msk [vmem:[#allocation2 + $0x8] sm:$0xff] %vm84, %v1370
    %s1374 = scalar_lea.vmem %s4, 16
    %v1375 = vld [vmem:[%s1374] sm:$0xf]
    %v1376 = vld [vmem:[%s1374 + $0x4] sm:$0xf]
    %v1377 = vld [vmem:[%s1374 + $0x8] sm:$0xf]
    %v1378 = vld [vmem:[%s1374 + $0xc] sm:$0xf]
    %s1379 = scalar_lea.vmem %s6, 1
    %v1380 = vld [vmem:[%s1379] sm:$0x1]
    %v1382 = vperm.slane %v1380, 0
    %v1388 = vunpack.c.l.b16 %v1375
    %v1389 = vunpack.c.l.b16 %v1376
    %v1390 = vunpack.c.l.b16 %v1377
    %v1391 = vunpack.c.l.b16 %v1378
    %v1392 = vpack.c.b16 %v1389, %v1388
    %v1393 = vpack.c.b16 %v1391, %v1390
    %1396 = vmatpush.bf16.msra.mxu0 0
    %1397 = vmatpush.bf16.msra.mxu0 0
    %1398 = vmatpush.bf16.msra.mxu0 0
    %1399 = vmatpush.bf16.msra.mxu0 0
    %1400 = vmatpush.bf16.msra.mxu0 0
    %1401 = vmatpush.bf16.msra.mxu0 0
    %1402 = vmatpush.bf16.msra.mxu0 %v1393
    %1403 = vmatpush.bf16.msra.mxu0 %v1392
    %1404 = vmatmul.bf16.gmra.mxu0 %v1356
    %v1405 = vpop.f32.mrf.mxu0
    %v1406 = vadd.f32 %v1382, %v1405
    %v1407 = vpop.f32.mrf.mxu0
    %v1408 = vadd.f32 %v1382, %v1407
    %1409 = vdwg.mxu0
    %1410 = vst.msk [vmem:[%s115] sm:$0xff] %vm84, %v1406
    %1411 = vst.msk [vmem:[%s115 + $0x8] sm:$0xff] %vm84, %v1408
    %s1412 = scalar_lea.vmem %s4, 32
    %v1413 = vld [vmem:[%s1412] sm:$0xf]
    %v1414 = vld [vmem:[%s1412 + $0x4] sm:$0xf]
    %v1415 = vld [vmem:[%s1412 + $0x8] sm:$0xf]
    %v1416 = vld [vmem:[%s1412 + $0xc] sm:$0xf]
    %s1417 = scalar_lea.vmem %s6, 2
    %v1418 = vld [vmem:[%s1417] sm:$0x1]
    %v1420 = vperm.slane %v1418, 0
    %v1426 = vunpack.c.l.b16 %v1413
    %v1427 = vunpack.c.l.b16 %v1414
    %v1428 = vunpack.c.l.b16 %v1415
    %v1429 = vunpack.c.l.b16 %v1416
    %v1430 = vpack.c.b16 %v1427, %v1426
    %v1431 = vpack.c.b16 %v1429, %v1428
    %1434 = vmatpush.bf16.msra.mxu0 0
    %1435 = vmatpush.bf16.msra.mxu0 0
    %1436 = vmatpush.bf16.msra.mxu0 0
    %1437 = vmatpush.bf16.msra.mxu0 0
    %1438 = vmatpush.bf16.msra.mxu0 0
    %1439 = vmatpush.bf16.msra.mxu0 0
    %1440 = vmatpush.bf16.msra.mxu0 %v1431
    %1441 = vmatpush.bf16.msra.mxu0 %v1430
    %1442 = vmatmul.bf16.gmra.mxu0 %v1356
    %v1443 = vpop.f32.mrf.mxu0
    %v1444 = vadd.f32 %v1420, %v1443
    %v1445 = vpop.f32.mrf.mxu0
    %v1446 = vadd.f32 %v1420, %v1445
    %1447 = vdwg.mxu0
    %1448 = vst.msk [vmem:[%s146] sm:$0xff] %vm84, %v1444
    %1449 = vst.msk [vmem:[%s146 + $0x8] sm:$0xff] %vm84, %v1446
    %s1450 = scalar_lea.vmem %s4, 48
    %v1451 = vld [vmem:[%s1450] sm:$0xf]
    %v1452 = vld [vmem:[%s1450 + $0x4] sm:$0xf]
    %v1453 = vld [vmem:[%s1450 + $0x8] sm:$0xf]
    %v1454 = vld [vmem:[%s1450 + $0xc] sm:$0xf]
    %s1455 = scalar_lea.vmem %s6, 3
    %v1456 = vld [vmem:[%s1455] sm:$0x1]
    %v1458 = vperm.slane %v1456, 0
    %v1464 = vunpack.c.l.b16 %v1451
    %v1465 = vunpack.c.l.b16 %v1452
    %v1466 = vunpack.c.l.b16 %v1453
    %v1467 = vunpack.c.l.b16 %v1454
    %v1468 = vpack.c.b16 %v1465, %v1464
    %v1469 = vpack.c.b16 %v1467, %v1466
    %1472 = vmatpush.bf16.msra.mxu0 0
    %1473 = vmatpush.bf16.msra.mxu0 0
    %1474 = vmatpush.bf16.msra.mxu0 0
    %1475 = vmatpush.bf16.msra.mxu0 0
    %1476 = vmatpush.bf16.msra.mxu0 0
    %1477 = vmatpush.bf16.msra.mxu0 0
    %1478 = vmatpush.bf16.msra.mxu0 %v1469
    %1479 = vmatpush.bf16.msra.mxu0 %v1468
    %1480 = vmatmul.bf16.gmra.mxu0 %v1356
    %v1481 = vpop.f32.mrf.mxu0
    %v1482 = vadd.f32 %v1458, %v1481
    %v1483 = vpop.f32.mrf.mxu0
    %v1484 = vadd.f32 %v1458, %v1483
    %1485 = vdwg.mxu0
    %1486 = vst.msk [vmem:[%s177] sm:$0xff] %vm84, %v1482
    %1487 = vst.msk [vmem:[%s177 + $0x8] sm:$0xff] %vm84, %v1484
    %v1488 = vld [vmem:[#allocation4] sm:$0xf]
    %v1489 = vld [vmem:[#allocation4 + $0x4] sm:$0xf]
    %v1490 = vld [vmem:[#allocation4 + $0x8] sm:$0xf]
    %v1491 = vld [vmem:[#allocation4 + $0xc] sm:$0xf]
    %v1492 = vld [vmem:[#allocation4 + $0x10] sm:$0xf]
    %v1493 = vld [vmem:[#allocation4 + $0x14] sm:$0xf]
    %v1494 = vld [vmem:[#allocation4 + $0x18] sm:$0xf]
    %v1495 = vld [vmem:[#allocation4 + $0x1c] sm:$0xf]
    %v1496 = vld [vmem:[#allocation4 + $0x20] sm:$0xf]
    %v1497 = vld [vmem:[#allocation4 + $0x24] sm:$0xf]
    %v1498 = vld [vmem:[#allocation4 + $0x28] sm:$0xf]
    %v1499 = vld [vmem:[#allocation4 + $0x2c] sm:$0xf]
    %v1500 = vld [vmem:[#allocation4 + $0x30] sm:$0xf]
    %v1501 = vld [vmem:[#allocation4 + $0x34] sm:$0xf]
    %v1502 = vld [vmem:[#allocation4 + $0x38] sm:$0xf]
    %v1503 = vld [vmem:[#allocation4 + $0x3c] sm:$0xf]
    %v1504 = vld [vmem:[#allocation2] sm:$0x3]
    %v1509 = vunpack.c.l.b16 %v1488
    %v1510 = vunpack.c.l.b16 %v1489
    %v1511 = vunpack.c.l.b16 %v1490
    %v1512 = vunpack.c.l.b16 %v1491
    %v1513 = vpack.c.b16 %v1510, %v1509
    %v1514 = vpack.c.b16 %v1512, %v1511
    %1517 = vmatpush.bf16.msra.mxu0 0
    %1518 = vmatpush.bf16.msra.mxu0 0
    %1519 = vmatpush.bf16.msra.mxu0 0
    %1520 = vmatpush.bf16.msra.mxu0 0
    %1521 = vmatpush.bf16.msra.mxu0 0
    %1522 = vmatpush.bf16.msra.mxu0 0
    %1523 = vmatpush.bf16.msra.mxu0 %v1514
    %1524 = vmatpush.bf16.msra.mxu0 %v1513
    %1525 = vmatmul.bf16.gmra.mxu0 %v210
    %v1526 = vpop.f32.mrf.mxu0
    %v1527 = vadd.f32 0.0, %v1526
    %v1528 = vpop.f32.mrf.mxu0
    %1529 = vdwg.mxu0
    %v1530 = vadd.f32 %v1504, %v1527
    %v1531 = vxor.u32 %v1530, 2147483648
    %v1532 = vmul.f32 %v1531, 1.442695
    %v1533 = vpow.pop %v1532
    %v1534 = vadd.f32 %v1533, 1.0
    %v1535 = vrcp.pop %v1534
    %v1536 = vmul.f32 %v1534, %v1535
    %v1537 = vsub.f32 1.0, %v1536
    %v1538 = vmul.f32 %v1535, %v1537
    %v1539 = vadd.f32 %v1535, %v1538
    %vm1540 = vweird.f32 %v1534
    %vm1541 = vweird.f32 %v1535
    %vm1542 = vmor %vm1540, %vm1541
    %v1543 = vsel %vm1542, %v1535, %v1539
    %v1544 = vand.u32 2147483647, %v1534
    %vm1545 = vcmp.eq.f32.partialorder %v1544, 8.507059e+37
    %v1546 = vand.u32 %v1534, 2147483648
    %v1547 = vor.u32 1.1754944e-38, %v1546
    %v1548 = vsel %vm1545, %v1547, %v1543
    %v1549 = vmul.f32 1.0, %v1548
    %v1550 = vld [vmem:[%s246] sm:$0x3]
    %v1555 = vunpack.c.l.b16 %v1492
    %v1556 = vunpack.c.l.b16 %v1493
    %v1557 = vunpack.c.l.b16 %v1494
    %v1558 = vunpack.c.l.b16 %v1495
    %v1559 = vpack.c.b16 %v1556, %v1555
    %v1560 = vpack.c.b16 %v1558, %v1557
    %1563 = vmatpush.bf16.msra.mxu0 0
    %1564 = vmatpush.bf16.msra.mxu0 0
    %1565 = vmatpush.bf16.msra.mxu0 0
    %1566 = vmatpush.bf16.msra.mxu0 0
    %1567 = vmatpush.bf16.msra.mxu0 0
    %1568 = vmatpush.bf16.msra.mxu0 0
    %1569 = vmatpush.bf16.msra.mxu0 %v1560
    %1570 = vmatpush.bf16.msra.mxu0 %v1559
    %1571 = vmatmul.bf16.gmra.mxu0 %v210
    %v1572 = vpop.f32.mrf.mxu0
    %v1573 = vadd.f32 0.0, %v1572
    %v1574 = vpop.f32.mrf.mxu0
    %1575 = vdwg.mxu0
    %v1576 = vadd.f32 %v1550, %v1573
    %v1577 = vxor.u32 %v1576, 2147483648
    %v1578 = vmul.f32 %v1577, 1.442695
    %v1579 = vpow.pop %v1578
    %v1580 = vadd.f32 %v1579, 1.0
    %v1581 = vrcp.pop %v1580
    %v1582 = vmul.f32 %v1580, %v1581
    %v1583 = vsub.f32 1.0, %v1582
    %v1584 = vmul.f32 %v1581, %v1583
    %v1585 = vadd.f32 %v1581, %v1584
    %vm1586 = vweird.f32 %v1580
    %vm1587 = vweird.f32 %v1581
    %vm1588 = vmor %vm1586, %vm1587
    %v1589 = vsel %vm1588, %v1581, %v1585
    %v1590 = vand.u32 2147483647, %v1580
    %vm1591 = vcmp.eq.f32.partialorder %v1590, 8.507059e+37
    %v1592 = vand.u32 %v1580, 2147483648
    %v1593 = vor.u32 1.1754944e-38, %v1592
    %v1594 = vsel %vm1591, %v1593, %v1589
    %v1595 = vmul.f32 1.0, %v1594
    %v1596 = vld [vmem:[%s294] sm:$0x3]
    %v1601 = vunpack.c.l.b16 %v1496
    %v1602 = vunpack.c.l.b16 %v1497
    %v1603 = vunpack.c.l.b16 %v1498
    %v1604 = vunpack.c.l.b16 %v1499
    %v1605 = vpack.c.b16 %v1602, %v1601
    %v1606 = vpack.c.b16 %v1604, %v1603
    %1609 = vmatpush.bf16.msra.mxu0 0
    %1610 = vmatpush.bf16.msra.mxu0 0
    %1611 = vmatpush.bf16.msra.mxu0 0
    %1612 = vmatpush.bf16.msra.mxu0 0
    %1613 = vmatpush.bf16.msra.mxu0 0
    %1614 = vmatpush.bf16.msra.mxu0 0
    %1615 = vmatpush.bf16.msra.mxu0 %v1606
    %1616 = vmatpush.bf16.msra.mxu0 %v1605
    %1617 = vmatmul.bf16.gmra.mxu0 %v210
    %v1618 = vpop.f32.mrf.mxu0
    %v1619 = vadd.f32 0.0, %v1618
    %v1620 = vpop.f32.mrf.mxu0
    %1621 = vdwg.mxu0
    %v1622 = vadd.f32 %v1596, %v1619
    %v1623 = vtanh.pop %v1622
    %v1624 = vld [vmem:[%s324] sm:$0x3]
    %v1629 = vunpack.c.l.b16 %v1500
    %v1630 = vunpack.c.l.b16 %v1501
    %v1631 = vunpack.c.l.b16 %v1502
    %v1632 = vunpack.c.l.b16 %v1503
    %v1633 = vpack.c.b16 %v1630, %v1629
    %v1634 = vpack.c.b16 %v1632, %v1631
    %1637 = vmatpush.bf16.msra.mxu0 0
    %1638 = vmatpush.bf16.msra.mxu0 0
    %1639 = vmatpush.bf16.msra.mxu0 0
    %1640 = vmatpush.bf16.msra.mxu0 0
    %1641 = vmatpush.bf16.msra.mxu0 0
    %1642 = vmatpush.bf16.msra.mxu0 0
    %1643 = vmatpush.bf16.msra.mxu0 %v1634
    %1644 = vmatpush.bf16.msra.mxu0 %v1633
    %1645 = vmatmul.bf16.gmra.mxu0 %v210
    %v1646 = vpop.f32.mrf.mxu0
    %v1647 = vadd.f32 0.0, %v1646
    %v1648 = vpop.f32.mrf.mxu0
    %1649 = vdwg.mxu0
    %v1650 = vadd.f32 %v1624, %v1647
    %v1651 = vxor.u32 %v1650, 2147483648
    %v1652 = vmul.f32 %v1651, 1.442695
    %v1653 = vpow.pop %v1652
    %v1654 = vadd.f32 %v1653, 1.0
    %v1655 = vrcp.pop %v1654
    %v1656 = vmul.f32 %v1654, %v1655
    %v1657 = vsub.f32 1.0, %v1656
    %v1658 = vmul.f32 %v1655, %v1657
    %v1659 = vadd.f32 %v1655, %v1658
    %vm1660 = vweird.f32 %v1654
    %vm1661 = vweird.f32 %v1655
    %vm1662 = vmor %vm1660, %vm1661
    %v1663 = vsel %vm1662, %v1655, %v1659
    %v1664 = vand.u32 2147483647, %v1654
    %vm1665 = vcmp.eq.f32.partialorder %v1664, 8.507059e+37
    %v1666 = vand.u32 %v1654, 2147483648
    %v1667 = vor.u32 1.1754944e-38, %v1666
    %v1668 = vsel %vm1665, %v1667, %v1663
    %v1669 = vmul.f32 1.0, %v1668
    %v1670 = vmul.f32 %v1595, 0.0
    %v1671 = vmul.f32 %v1549, %v1623
    %v1672 = vadd.f32 %v1670, %v1671
    %v1673 = vtanh.pop %v1672
    %v1674 = vmul.f32 %v1669, %v1673
    %v1675 = vpack.c.bf16 %v1674, %v1674
    %v1676 = vld [vmem:[%s379] sm:$0x3]
    %v1678 = vsel %vm84, %v1675, 0
    %1680 = vmatpush.bf16.msra.mxu0 0
    %1681 = vmatpush.bf16.msra.mxu0 0
    %1682 = vmatpush.bf16.msra.mxu0 0
    %1683 = vmatpush.bf16.msra.mxu0 0
    %1684 = vmatpush.bf16.msra.mxu0 0
    %1685 = vmatpush.bf16.msra.mxu0 0
    %1686 = vmatpush.bf16.msra.mxu0 %v1514
    %1687 = vmatpush.bf16.msra.mxu0 %v1513
    %1688 = vmatmul.bf16.gmra.mxu0 %v1678
    %v1689 = vpop.f32.mrf.mxu0
    %v1690 = vadd.f32 0.0, %v1689
    %v1691 = vpop.f32.mrf.mxu0
    %1692 = vdwg.mxu0
    %v1693 = vadd.f32 %v1676, %v1690
    %v1694 = vxor.u32 %v1693, 2147483648
    %v1695 = vmul.f32 %v1694, 1.442695
    %v1696 = vpow.pop %v1695
    %v1697 = vadd.f32 %v1696, 1.0
    %v1698 = vrcp.pop %v1697
    %v1699 = vmul.f32 %v1697, %v1698
    %v1700 = vsub.f32 1.0, %v1699
    %v1701 = vmul.f32 %v1698, %v1700
    %v1702 = vadd.f32 %v1698, %v1701
    %vm1703 = vweird.f32 %v1697
    %vm1704 = vweird.f32 %v1698
    %vm1705 = vmor %vm1703, %vm1704
    %v1706 = vsel %vm1705, %v1698, %v1702
    %v1707 = vand.u32 2147483647, %v1697
    %vm1708 = vcmp.eq.f32.partialorder %v1707, 8.507059e+37
    %v1709 = vand.u32 %v1697, 2147483648
    %v1710 = vor.u32 1.1754944e-38, %v1709
    %v1711 = vsel %vm1708, %v1710, %v1706
    %v1712 = vmul.f32 1.0, %v1711
    %v1713 = vld [vmem:[%s418] sm:$0x3]
    %1714 = vmatpush.bf16.msra.mxu0 0
    %1715 = vmatpush.bf16.msra.mxu0 0
    %1716 = vmatpush.bf16.msra.mxu0 0
    %1717 = vmatpush.bf16.msra.mxu0 0
    %1718 = vmatpush.bf16.msra.mxu0 0
    %1719 = vmatpush.bf16.msra.mxu0 0
    %1720 = vmatpush.bf16.msra.mxu0 %v1560
    %1721 = vmatpush.bf16.msra.mxu0 %v1559
    %1722 = vmatmul.bf16.gmra.mxu0 %v1678
    %v1723 = vpop.f32.mrf.mxu0
    %v1724 = vadd.f32 0.0, %v1723
    %v1725 = vpop.f32.mrf.mxu0
    %1726 = vdwg.mxu0
    %v1727 = vadd.f32 %v1713, %v1724
    %v1728 = vxor.u32 %v1727, 2147483648
    %v1729 = vmul.f32 %v1728, 1.442695
    %v1730 = vpow.pop %v1729
    %v1731 = vadd.f32 %v1730, 1.0
    %v1732 = vrcp.pop %v1731
    %v1733 = vmul.f32 %v1731, %v1732
    %v1734 = vsub.f32 1.0, %v1733
    %v1735 = vmul.f32 %v1732, %v1734
    %v1736 = vadd.f32 %v1732, %v1735
    %vm1737 = vweird.f32 %v1731
    %vm1738 = vweird.f32 %v1732
    %vm1739 = vmor %vm1737, %vm1738
    %v1740 = vsel %vm1739, %v1732, %v1736
    %v1741 = vand.u32 2147483647, %v1731
    %vm1742 = vcmp.eq.f32.partialorder %v1741, 8.507059e+37
    %v1743 = vand.u32 %v1731, 2147483648
    %v1744 = vor.u32 1.1754944e-38, %v1743
    %v1745 = vsel %vm1742, %v1744, %v1740
    %v1746 = vmul.f32 1.0, %v1745
    %v1747 = vld [vmem:[%s454] sm:$0x3]
    %1748 = vmatpush.bf16.msra.mxu0 0
    %1749 = vmatpush.bf16.msra.mxu0 0
    %1750 = vmatpush.bf16.msra.mxu0 0
    %1751 = vmatpush.bf16.msra.mxu0 0
    %1752 = vmatpush.bf16.msra.mxu0 0
    %1753 = vmatpush.bf16.msra.mxu0 0
    %1754 = vmatpush.bf16.msra.mxu0 %v1606
    %1755 = vmatpush.bf16.msra.mxu0 %v1605
    %1756 = vmatmul.bf16.gmra.mxu0 %v1678
    %v1757 = vpop.f32.mrf.mxu0
    %v1758 = vadd.f32 0.0, %v1757
    %v1759 = vpop.f32.mrf.mxu0
    %1760 = vdwg.mxu0
    %v1761 = vadd.f32 %v1747, %v1758
    %v1762 = vtanh.pop %v1761
    %v1763 = vld [vmem:[%s472] sm:$0x3]
    %1764 = vmatpush.bf16.msra.mxu0 0
    %1765 = vmatpush.bf16.msra.mxu0 0
    %1766 = vmatpush.bf16.msra.mxu0 0
    %1767 = vmatpush.bf16.msra.mxu0 0
    %1768 = vmatpush.bf16.msra.mxu0 0
    %1769 = vmatpush.bf16.msra.mxu0 0
    %1770 = vmatpush.bf16.msra.mxu0 %v1634
    %1771 = vmatpush.bf16.msra.mxu0 %v1633
    %1772 = vmatmul.bf16.gmra.mxu0 %v1678
    %v1773 = vpop.f32.mrf.mxu0
    %v1774 = vadd.f32 0.0, %v1773
    %v1775 = vpop.f32.mrf.mxu0
    %1776 = vdwg.mxu0
    %v1777 = vadd.f32 %v1763, %v1774
    %v1778 = vxor.u32 %v1777, 2147483648
    %v1779 = vmul.f32 %v1778, 1.442695
    %v1780 = vpow.pop %v1779
    %v1781 = vadd.f32 %v1780, 1.0
    %v1782 = vrcp.pop %v1781
    %v1783 = vmul.f32 %v1781, %v1782
    %v1784 = vsub.f32 1.0, %v1783
    %v1785 = vmul.f32 %v1782, %v1784
    %v1786 = vadd.f32 %v1782, %v1785
    %vm1787 = vweird.f32 %v1781
    %vm1788 = vweird.f32 %v1782
    %vm1789 = vmor %vm1787, %vm1788
    %v1790 = vsel %vm1789, %v1782, %v1786
    %v1791 = vand.u32 2147483647, %v1781
    %vm1792 = vcmp.eq.f32.partialorder %v1791, 8.507059e+37
    %v1793 = vand.u32 %v1781, 2147483648
    %v1794 = vor.u32 1.1754944e-38, %v1793
    %v1795 = vsel %vm1792, %v1794, %v1790
    %v1796 = vmul.f32 1.0, %v1795
    %v1797 = vmul.f32 %v1746, %v1672
    %v1798 = vmul.f32 %v1712, %v1762
    %v1799 = vadd.f32 %v1797, %v1798
    %v1800 = vtanh.pop %v1799
    %v1801 = vmul.f32 %v1796, %v1800
    %v1802 = vpack.c.bf16 %v1801, %v1801
    %v1803 = vld [vmem:[%s515] sm:$0x3]
    %v1805 = vsel %vm84, %v1802, 0
    %1807 = vmatpush.bf16.msra.mxu0 0
    %1808 = vmatpush.bf16.msra.mxu0 0
    %1809 = vmatpush.bf16.msra.mxu0 0
    %1810 = vmatpush.bf16.msra.mxu0 0
    %1811 = vmatpush.bf16.msra.mxu0 0
    %1812 = vmatpush.bf16.msra.mxu0 0
    %1813 = vmatpush.bf16.msra.mxu0 %v1514
    %1814 = vmatpush.bf16.msra.mxu0 %v1513
    %1815 = vmatmul.bf16.gmra.mxu0 %v1805
    %v1816 = vpop.f32.mrf.mxu0
    %v1817 = vadd.f32 0.0, %v1816
    %v1818 = vpop.f32.mrf.mxu0
    %1819 = vdwg.mxu0
    %v1820 = vadd.f32 %v1803, %v1817
    %v1821 = vxor.u32 %v1820, 2147483648
    %v1822 = vmul.f32 %v1821, 1.442695
    %v1823 = vpow.pop %v1822
    %v1824 = vadd.f32 %v1823, 1.0
    %v1825 = vrcp.pop %v1824
    %v1826 = vmul.f32 %v1824, %v1825
    %v1827 = vsub.f32 1.0, %v1826
    %v1828 = vmul.f32 %v1825, %v1827
    %v1829 = vadd.f32 %v1825, %v1828
    %vm1830 = vweird.f32 %v1824
    %vm1831 = vweird.f32 %v1825
    %vm1832 = vmor %vm1830, %vm1831
    %v1833 = vsel %vm1832, %v1825, %v1829
    %v1834 = vand.u32 2147483647, %v1824
    %vm1835 = vcmp.eq.f32.partialorder %v1834, 8.507059e+37
    %v1836 = vand.u32 %v1824, 2147483648
    %v1837 = vor.u32 1.1754944e-38, %v1836
    %v1838 = vsel %vm1835, %v1837, %v1833
    %v1839 = vmul.f32 1.0, %v1838
    %v1840 = vld [vmem:[%s554] sm:$0x3]
    %1841 = vmatpush.bf16.msra.mxu0 0
    %1842 = vmatpush.bf16.msra.mxu0 0
    %1843 = vmatpush.bf16.msra.mxu0 0
    %1844 = vmatpush.bf16.msra.mxu0 0
    %1845 = vmatpush.bf16.msra.mxu0 0
    %1846 = vmatpush.bf16.msra.mxu0 0
    %1847 = vmatpush.bf16.msra.mxu0 %v1560
    %1848 = vmatpush.bf16.msra.mxu0 %v1559
    %1849 = vmatmul.bf16.gmra.mxu0 %v1805
    %v1850 = vpop.f32.mrf.mxu0
    %v1851 = vadd.f32 0.0, %v1850
    %v1852 = vpop.f32.mrf.mxu0
    %1853 = vdwg.mxu0
    %v1854 = vadd.f32 %v1840, %v1851
    %v1855 = vxor.u32 %v1854, 2147483648
    %v1856 = vmul.f32 %v1855, 1.442695
    %v1857 = vpow.pop %v1856
    %v1858 = vadd.f32 %v1857, 1.0
    %v1859 = vrcp.pop %v1858
    %v1860 = vmul.f32 %v1858, %v1859
    %v1861 = vsub.f32 1.0, %v1860
    %v1862 = vmul.f32 %v1859, %v1861
    %v1863 = vadd.f32 %v1859, %v1862
    %vm1864 = vweird.f32 %v1858
    %vm1865 = vweird.f32 %v1859
    %vm1866 = vmor %vm1864, %vm1865
    %v1867 = vsel %vm1866, %v1859, %v1863
    %v1868 = vand.u32 2147483647, %v1858
    %vm1869 = vcmp.eq.f32.partialorder %v1868, 8.507059e+37
    %v1870 = vand.u32 %v1858, 2147483648
    %v1871 = vor.u32 1.1754944e-38, %v1870
    %v1872 = vsel %vm1869, %v1871, %v1867
    %v1873 = vmul.f32 1.0, %v1872
    %v1874 = vld [vmem:[%s590] sm:$0x3]
    %1875 = vmatpush.bf16.msra.mxu0 0
    %1876 = vmatpush.bf16.msra.mxu0 0
    %1877 = vmatpush.bf16.msra.mxu0 0
    %1878 = vmatpush.bf16.msra.mxu0 0
    %1879 = vmatpush.bf16.msra.mxu0 0
    %1880 = vmatpush.bf16.msra.mxu0 0
    %1881 = vmatpush.bf16.msra.mxu0 %v1606
    %1882 = vmatpush.bf16.msra.mxu0 %v1605
    %1883 = vmatmul.bf16.gmra.mxu0 %v1805
    %v1884 = vpop.f32.mrf.mxu0
    %v1885 = vadd.f32 0.0, %v1884
    %v1886 = vpop.f32.mrf.mxu0
    %1887 = vdwg.mxu0
    %v1888 = vadd.f32 %v1874, %v1885
    %v1889 = vtanh.pop %v1888
    %v1890 = vld [vmem:[%s608] sm:$0x3]
    %1891 = vmatpush.bf16.msra.mxu0 0
    %1892 = vmatpush.bf16.msra.mxu0 0
    %1893 = vmatpush.bf16.msra.mxu0 0
    %1894 = vmatpush.bf16.msra.mxu0 0
    %1895 = vmatpush.bf16.msra.mxu0 0
    %1896 = vmatpush.bf16.msra.mxu0 0
    %1897 = vmatpush.bf16.msra.mxu0 %v1634
    %1898 = vmatpush.bf16.msra.mxu0 %v1633
    %1899 = vmatmul.bf16.gmra.mxu0 %v1805
    %v1900 = vpop.f32.mrf.mxu0
    %v1901 = vadd.f32 0.0, %v1900
    %v1902 = vpop.f32.mrf.mxu0
    %1903 = vdwg.mxu0
    %v1904 = vadd.f32 %v1890, %v1901
    %v1905 = vxor.u32 %v1904, 2147483648
    %v1906 = vmul.f32 %v1905, 1.442695
    %v1907 = vpow.pop %v1906
    %v1908 = vadd.f32 %v1907, 1.0
    %v1909 = vrcp.pop %v1908
    %v1910 = vmul.f32 %v1908, %v1909
    %v1911 = vsub.f32 1.0, %v1910
    %v1912 = vmul.f32 %v1909, %v1911
    %v1913 = vadd.f32 %v1909, %v1912
    %vm1914 = vweird.f32 %v1908
    %vm1915 = vweird.f32 %v1909
    %vm1916 = vmor %vm1914, %vm1915
    %v1917 = vsel %vm1916, %v1909, %v1913
    %v1918 = vand.u32 2147483647, %v1908
    %vm1919 = vcmp.eq.f32.partialorder %v1918, 8.507059e+37
    %v1920 = vand.u32 %v1908, 2147483648
    %v1921 = vor.u32 1.1754944e-38, %v1920
    %v1922 = vsel %vm1919, %v1921, %v1917
    %v1923 = vmul.f32 1.0, %v1922
    %v1924 = vmul.f32 %v1873, %v1799
    %v1925 = vmul.f32 %v1839, %v1889
    %v1926 = vadd.f32 %v1924, %v1925
    %v1927 = vtanh.pop %v1926
    %v1928 = vmul.f32 %v1923, %v1927
    %v1929 = vpack.c.bf16 %v1928, %v1928
    %v1930 = vld [vmem:[%s651] sm:$0x3]
    %v1932 = vsel %vm84, %v1929, 0
    %1934 = vmatpush.bf16.msra.mxu0 0
    %1935 = vmatpush.bf16.msra.mxu0 0
    %1936 = vmatpush.bf16.msra.mxu0 0
    %1937 = vmatpush.bf16.msra.mxu0 0
    %1938 = vmatpush.bf16.msra.mxu0 0
    %1939 = vmatpush.bf16.msra.mxu0 0
    %1940 = vmatpush.bf16.msra.mxu0 %v1514
    %1941 = vmatpush.bf16.msra.mxu0 %v1513
    %1942 = vmatmul.bf16.gmra.mxu0 %v1932
    %v1943 = vpop.f32.mrf.mxu0
    %v1944 = vadd.f32 0.0, %v1943
    %v1945 = vpop.f32.mrf.mxu0
    %1946 = vdwg.mxu0
    %v1947 = vadd.f32 %v1930, %v1944
    %v1948 = vxor.u32 %v1947, 2147483648
    %v1949 = vmul.f32 %v1948, 1.442695
    %v1950 = vpow.pop %v1949
    %v1951 = vadd.f32 %v1950, 1.0
    %v1952 = vrcp.pop %v1951
    %v1953 = vmul.f32 %v1951, %v1952
    %v1954 = vsub.f32 1.0, %v1953
    %v1955 = vmul.f32 %v1952, %v1954
    %v1956 = vadd.f32 %v1952, %v1955
    %vm1957 = vweird.f32 %v1951
    %vm1958 = vweird.f32 %v1952
    %vm1959 = vmor %vm1957, %vm1958
    %v1960 = vsel %vm1959, %v1952, %v1956
    %v1961 = vand.u32 2147483647, %v1951
    %vm1962 = vcmp.eq.f32.partialorder %v1961, 8.507059e+37
    %v1963 = vand.u32 %v1951, 2147483648
    %v1964 = vor.u32 1.1754944e-38, %v1963
    %v1965 = vsel %vm1962, %v1964, %v1960
    %v1966 = vmul.f32 1.0, %v1965
    %v1967 = vld [vmem:[%s690] sm:$0x3]
    %1968 = vmatpush.bf16.msra.mxu0 0
    %1969 = vmatpush.bf16.msra.mxu0 0
    %1970 = vmatpush.bf16.msra.mxu0 0
    %1971 = vmatpush.bf16.msra.mxu0 0
    %1972 = vmatpush.bf16.msra.mxu0 0
    %1973 = vmatpush.bf16.msra.mxu0 0
    %1974 = vmatpush.bf16.msra.mxu0 %v1560
    %1975 = vmatpush.bf16.msra.mxu0 %v1559
    %1976 = vmatmul.bf16.gmra.mxu0 %v1932
    %v1977 = vpop.f32.mrf.mxu0
    %v1978 = vadd.f32 0.0, %v1977
    %v1979 = vpop.f32.mrf.mxu0
    %1980 = vdwg.mxu0
    %v1981 = vadd.f32 %v1967, %v1978
    %v1982 = vxor.u32 %v1981, 2147483648
    %v1983 = vmul.f32 %v1982, 1.442695
    %v1984 = vpow.pop %v1983
    %v1985 = vadd.f32 %v1984, 1.0
    %v1986 = vrcp.pop %v1985
    %v1987 = vmul.f32 %v1985, %v1986
    %v1988 = vsub.f32 1.0, %v1987
    %v1989 = vmul.f32 %v1986, %v1988
    %v1990 = vadd.f32 %v1986, %v1989
    %vm1991 = vweird.f32 %v1985
    %vm1992 = vweird.f32 %v1986
    %vm1993 = vmor %vm1991, %vm1992
    %v1994 = vsel %vm1993, %v1986, %v1990
    %v1995 = vand.u32 2147483647, %v1985
    %vm1996 = vcmp.eq.f32.partialorder %v1995, 8.507059e+37
    %v1997 = vand.u32 %v1985, 2147483648
    %v1998 = vor.u32 1.1754944e-38, %v1997
    %v1999 = vsel %vm1996, %v1998, %v1994
    %v2000 = vmul.f32 1.0, %v1999
    %v2001 = vld [vmem:[%s726] sm:$0x3]
    %2002 = vmatpush.bf16.msra.mxu0 0
    %2003 = vmatpush.bf16.msra.mxu0 0
    %2004 = vmatpush.bf16.msra.mxu0 0
    %2005 = vmatpush.bf16.msra.mxu0 0
    %2006 = vmatpush.bf16.msra.mxu0 0
    %2007 = vmatpush.bf16.msra.mxu0 0
    %2008 = vmatpush.bf16.msra.mxu0 %v1606
    %2009 = vmatpush.bf16.msra.mxu0 %v1605
    %2010 = vmatmul.bf16.gmra.mxu0 %v1932
    %v2011 = vpop.f32.mrf.mxu0
    %v2012 = vadd.f32 0.0, %v2011
    %v2013 = vpop.f32.mrf.mxu0
    %2014 = vdwg.mxu0
    %v2015 = vadd.f32 %v2001, %v2012
    %v2016 = vtanh.pop %v2015
    %v2017 = vld [vmem:[%s744] sm:$0x3]
    %2018 = vmatpush.bf16.msra.mxu0 0
    %2019 = vmatpush.bf16.msra.mxu0 0
    %2020 = vmatpush.bf16.msra.mxu0 0
    %2021 = vmatpush.bf16.msra.mxu0 0
    %2022 = vmatpush.bf16.msra.mxu0 0
    %2023 = vmatpush.bf16.msra.mxu0 0
    %2024 = vmatpush.bf16.msra.mxu0 %v1634
    %2025 = vmatpush.bf16.msra.mxu0 %v1633
    %2026 = vmatmul.bf16.gmra.mxu0 %v1932
    %v2027 = vpop.f32.mrf.mxu0
    %v2028 = vadd.f32 0.0, %v2027
    %v2029 = vpop.f32.mrf.mxu0
    %2030 = vdwg.mxu0
    %v2031 = vadd.f32 %v2017, %v2028
    %v2032 = vxor.u32 %v2031, 2147483648
    %v2033 = vmul.f32 %v2032, 1.442695
    %v2034 = vpow.pop %v2033
    %v2035 = vadd.f32 %v2034, 1.0
    %v2036 = vrcp.pop %v2035
    %v2037 = vmul.f32 %v2035, %v2036
    %v2038 = vsub.f32 1.0, %v2037
    %v2039 = vmul.f32 %v2036, %v2038
    %v2040 = vadd.f32 %v2036, %v2039
    %vm2041 = vweird.f32 %v2035
    %vm2042 = vweird.f32 %v2036
    %vm2043 = vmor %vm2041, %vm2042
    %v2044 = vsel %vm2043, %v2036, %v2040
    %v2045 = vand.u32 2147483647, %v2035
    %vm2046 = vcmp.eq.f32.partialorder %v2045, 8.507059e+37
    %v2047 = vand.u32 %v2035, 2147483648
    %v2048 = vor.u32 1.1754944e-38, %v2047
    %v2049 = vsel %vm2046, %v2048, %v2044
    %v2050 = vmul.f32 1.0, %v2049
    %v2051 = vmul.f32 %v2000, %v1926
    %v2052 = vmul.f32 %v1966, %v2016
    %v2053 = vadd.f32 %v2051, %v2052
    %v2054 = vtanh.pop %v2053
    %v2055 = vmul.f32 %v2050, %v2054
    %v2056 = vpack.c.bf16 %v2055, %v2055
    %v2057 = vld [vmem:[%s787] sm:$0x3]
    %v2059 = vsel %vm84, %v2056, 0
    %2061 = vmatpush.bf16.msra.mxu0 0
    %2062 = vmatpush.bf16.msra.mxu0 0
    %2063 = vmatpush.bf16.msra.mxu0 0
    %2064 = vmatpush.bf16.msra.mxu0 0
    %2065 = vmatpush.bf16.msra.mxu0 0
    %2066 = vmatpush.bf16.msra.mxu0 0
    %2067 = vmatpush.bf16.msra.mxu0 %v1514
    %2068 = vmatpush.bf16.msra.mxu0 %v1513
    %2069 = vmatmul.bf16.gmra.mxu0 %v2059
    %v2070 = vpop.f32.mrf.mxu0
    %v2071 = vadd.f32 0.0, %v2070
    %v2072 = vpop.f32.mrf.mxu0
    %2073 = vdwg.mxu0
    %v2074 = vadd.f32 %v2057, %v2071
    %v2075 = vxor.u32 %v2074, 2147483648
    %v2076 = vmul.f32 %v2075, 1.442695
    %v2077 = vpow.pop %v2076
    %v2078 = vadd.f32 %v2077, 1.0
    %v2079 = vrcp.pop %v2078
    %v2080 = vmul.f32 %v2078, %v2079
    %v2081 = vsub.f32 1.0, %v2080
    %v2082 = vmul.f32 %v2079, %v2081
    %v2083 = vadd.f32 %v2079, %v2082
    %vm2084 = vweird.f32 %v2078
    %vm2085 = vweird.f32 %v2079
    %vm2086 = vmor %vm2084, %vm2085
    %v2087 = vsel %vm2086, %v2079, %v2083
    %v2088 = vand.u32 2147483647, %v2078
    %vm2089 = vcmp.eq.f32.partialorder %v2088, 8.507059e+37
    %v2090 = vand.u32 %v2078, 2147483648
    %v2091 = vor.u32 1.1754944e-38, %v2090
    %v2092 = vsel %vm2089, %v2091, %v2087
    %v2093 = vmul.f32 1.0, %v2092
    %v2094 = vld [vmem:[%s826] sm:$0x3]
    %2095 = vmatpush.bf16.msra.mxu0 0
    %2096 = vmatpush.bf16.msra.mxu0 0
    %2097 = vmatpush.bf16.msra.mxu0 0
    %2098 = vmatpush.bf16.msra.mxu0 0
    %2099 = vmatpush.bf16.msra.mxu0 0
    %2100 = vmatpush.bf16.msra.mxu0 0
    %2101 = vmatpush.bf16.msra.mxu0 %v1560
    %2102 = vmatpush.bf16.msra.mxu0 %v1559
    %2103 = vmatmul.bf16.gmra.mxu0 %v2059
    %v2104 = vpop.f32.mrf.mxu0
    %v2105 = vadd.f32 0.0, %v2104
    %v2106 = vpop.f32.mrf.mxu0
    %2107 = vdwg.mxu0
    %v2108 = vadd.f32 %v2094, %v2105
    %v2109 = vxor.u32 %v2108, 2147483648
    %v2110 = vmul.f32 %v2109, 1.442695
    %v2111 = vpow.pop %v2110
    %v2112 = vadd.f32 %v2111, 1.0
    %v2113 = vrcp.pop %v2112
    %v2114 = vmul.f32 %v2112, %v2113
    %v2115 = vsub.f32 1.0, %v2114
    %v2116 = vmul.f32 %v2113, %v2115
    %v2117 = vadd.f32 %v2113, %v2116
    %vm2118 = vweird.f32 %v2112
    %vm2119 = vweird.f32 %v2113
    %vm2120 = vmor %vm2118, %vm2119
    %v2121 = vsel %vm2120, %v2113, %v2117
    %v2122 = vand.u32 2147483647, %v2112
    %vm2123 = vcmp.eq.f32.partialorder %v2122, 8.507059e+37
    %v2124 = vand.u32 %v2112, 2147483648
    %v2125 = vor.u32 1.1754944e-38, %v2124
    %v2126 = vsel %vm2123, %v2125, %v2121
    %v2127 = vmul.f32 1.0, %v2126
    %v2128 = vld [vmem:[%s862] sm:$0x3]
    %2129 = vmatpush.bf16.msra.mxu0 0
    %2130 = vmatpush.bf16.msra.mxu0 0
    %2131 = vmatpush.bf16.msra.mxu0 0
    %2132 = vmatpush.bf16.msra.mxu0 0
    %2133 = vmatpush.bf16.msra.mxu0 0
    %2134 = vmatpush.bf16.msra.mxu0 0
    %2135 = vmatpush.bf16.msra.mxu0 %v1606
    %2136 = vmatpush.bf16.msra.mxu0 %v1605
    %2137 = vmatmul.bf16.gmra.mxu0 %v2059
    %v2138 = vpop.f32.mrf.mxu0
    %v2139 = vadd.f32 0.0, %v2138
    %v2140 = vpop.f32.mrf.mxu0
    %2141 = vdwg.mxu0
    %v2142 = vadd.f32 %v2128, %v2139
    %v2143 = vtanh.pop %v2142
    %v2144 = vld [vmem:[%s880] sm:$0x3]
    %2145 = vmatpush.bf16.msra.mxu0 0
    %2146 = vmatpush.bf16.msra.mxu0 0
    %2147 = vmatpush.bf16.msra.mxu0 0
    %2148 = vmatpush.bf16.msra.mxu0 0
    %2149 = vmatpush.bf16.msra.mxu0 0
    %2150 = vmatpush.bf16.msra.mxu0 0
    %2151 = vmatpush.bf16.msra.mxu0 %v1634
    %2152 = vmatpush.bf16.msra.mxu0 %v1633
    %2153 = vmatmul.bf16.gmra.mxu0 %v2059
    %v2154 = vpop.f32.mrf.mxu0
    %v2155 = vadd.f32 0.0, %v2154
    %v2156 = vpop.f32.mrf.mxu0
    %2157 = vdwg.mxu0
    %v2158 = vadd.f32 %v2144, %v2155
    %v2159 = vxor.u32 %v2158, 2147483648
    %v2160 = vmul.f32 %v2159, 1.442695
    %v2161 = vpow.pop %v2160
    %v2162 = vadd.f32 %v2161, 1.0
    %v2163 = vrcp.pop %v2162
    %v2164 = vmul.f32 %v2162, %v2163
    %v2165 = vsub.f32 1.0, %v2164
    %v2166 = vmul.f32 %v2163, %v2165
    %v2167 = vadd.f32 %v2163, %v2166
    %vm2168 = vweird.f32 %v2162
    %vm2169 = vweird.f32 %v2163
    %vm2170 = vmor %vm2168, %vm2169
    %v2171 = vsel %vm2170, %v2163, %v2167
    %v2172 = vand.u32 2147483647, %v2162
    %vm2173 = vcmp.eq.f32.partialorder %v2172, 8.507059e+37
    %v2174 = vand.u32 %v2162, 2147483648
    %v2175 = vor.u32 1.1754944e-38, %v2174
    %v2176 = vsel %vm2173, %v2175, %v2171
    %v2177 = vmul.f32 1.0, %v2176
    %v2178 = vmul.f32 %v2127, %v2053
    %v2179 = vmul.f32 %v2093, %v2143
    %v2180 = vadd.f32 %v2178, %v2179
    %v2181 = vtanh.pop %v2180
    %v2182 = vmul.f32 %v2177, %v2181
    %v2183 = vpack.c.bf16 %v2182, %v2182
    %v2184 = vld [vmem:[%s923] sm:$0x3]
    %v2186 = vsel %vm84, %v2183, 0
    %2188 = vmatpush.bf16.msra.mxu0 0
    %2189 = vmatpush.bf16.msra.mxu0 0
    %2190 = vmatpush.bf16.msra.mxu0 0
    %2191 = vmatpush.bf16.msra.mxu0 0
    %2192 = vmatpush.bf16.msra.mxu0 0
    %2193 = vmatpush.bf16.msra.mxu0 0
    %2194 = vmatpush.bf16.msra.mxu0 %v1514
    %2195 = vmatpush.bf16.msra.mxu0 %v1513
    %2196 = vmatmul.bf16.gmra.mxu0 %v2186
    %v2197 = vpop.f32.mrf.mxu0
    %v2198 = vadd.f32 0.0, %v2197
    %v2199 = vpop.f32.mrf.mxu0
    %2200 = vdwg.mxu0
    %v2201 = vadd.f32 %v2184, %v2198
    %v2202 = vxor.u32 %v2201, 2147483648
    %v2203 = vmul.f32 %v2202, 1.442695
    %v2204 = vpow.pop %v2203
    %v2205 = vadd.f32 %v2204, 1.0
    %v2206 = vrcp.pop %v2205
    %v2207 = vmul.f32 %v2205, %v2206
    %v2208 = vsub.f32 1.0, %v2207
    %v2209 = vmul.f32 %v2206, %v2208
    %v2210 = vadd.f32 %v2206, %v2209
    %vm2211 = vweird.f32 %v2205
    %vm2212 = vweird.f32 %v2206
    %vm2213 = vmor %vm2211, %vm2212
    %v2214 = vsel %vm2213, %v2206, %v2210
    %v2215 = vand.u32 2147483647, %v2205
    %vm2216 = vcmp.eq.f32.partialorder %v2215, 8.507059e+37
    %v2217 = vand.u32 %v2205, 2147483648
    %v2218 = vor.u32 1.1754944e-38, %v2217
    %v2219 = vsel %vm2216, %v2218, %v2214
    %v2220 = vmul.f32 1.0, %v2219
    %v2221 = vld [vmem:[%s962] sm:$0x3]
    %2222 = vmatpush.bf16.msra.mxu0 0
    %2223 = vmatpush.bf16.msra.mxu0 0
    %2224 = vmatpush.bf16.msra.mxu0 0
    %2225 = vmatpush.bf16.msra.mxu0 0
    %2226 = vmatpush.bf16.msra.mxu0 0
    %2227 = vmatpush.bf16.msra.mxu0 0
    %2228 = vmatpush.bf16.msra.mxu0 %v1560
    %2229 = vmatpush.bf16.msra.mxu0 %v1559
    %2230 = vmatmul.bf16.gmra.mxu0 %v2186
    %v2231 = vpop.f32.mrf.mxu0
    %v2232 = vadd.f32 0.0, %v2231
    %v2233 = vpop.f32.mrf.mxu0
    %2234 = vdwg.mxu0
    %v2235 = vadd.f32 %v2221, %v2232
    %v2236 = vxor.u32 %v2235, 2147483648
    %v2237 = vmul.f32 %v2236, 1.442695
    %v2238 = vpow.pop %v2237
    %v2239 = vadd.f32 %v2238, 1.0
    %v2240 = vrcp.pop %v2239
    %v2241 = vmul.f32 %v2239, %v2240
    %v2242 = vsub.f32 1.0, %v2241
    %v2243 = vmul.f32 %v2240, %v2242
    %v2244 = vadd.f32 %v2240, %v2243
    %vm2245 = vweird.f32 %v2239
    %vm2246 = vweird.f32 %v2240
    %vm2247 = vmor %vm2245, %vm2246
    %v2248 = vsel %vm2247, %v2240, %v2244
    %v2249 = vand.u32 2147483647, %v2239
    %vm2250 = vcmp.eq.f32.partialorder %v2249, 8.507059e+37
    %v2251 = vand.u32 %v2239, 2147483648
    %v2252 = vor.u32 1.1754944e-38, %v2251
    %v2253 = vsel %vm2250, %v2252, %v2248
    %v2254 = vmul.f32 1.0, %v2253
    %v2255 = vld [vmem:[%s998] sm:$0x3]
    %2256 = vmatpush.bf16.msra.mxu0 0
    %2257 = vmatpush.bf16.msra.mxu0 0
    %2258 = vmatpush.bf16.msra.mxu0 0
    %2259 = vmatpush.bf16.msra.mxu0 0
    %2260 = vmatpush.bf16.msra.mxu0 0
    %2261 = vmatpush.bf16.msra.mxu0 0
    %2262 = vmatpush.bf16.msra.mxu0 %v1606
    %2263 = vmatpush.bf16.msra.mxu0 %v1605
    %2264 = vmatmul.bf16.gmra.mxu0 %v2186
    %v2265 = vpop.f32.mrf.mxu0
    %v2266 = vadd.f32 0.0, %v2265
    %v2267 = vpop.f32.mrf.mxu0
    %2268 = vdwg.mxu0
    %v2269 = vadd.f32 %v2255, %v2266
    %v2270 = vtanh.pop %v2269
    %v2271 = vld [vmem:[%s1016] sm:$0x3]
    %2272 = vmatpush.bf16.msra.mxu0 0
    %2273 = vmatpush.bf16.msra.mxu0 0
    %2274 = vmatpush.bf16.msra.mxu0 0
    %2275 = vmatpush.bf16.msra.mxu0 0
    %2276 = vmatpush.bf16.msra.mxu0 0
    %2277 = vmatpush.bf16.msra.mxu0 0
    %2278 = vmatpush.bf16.msra.mxu0 %v1634
    %2279 = vmatpush.bf16.msra.mxu0 %v1633
    %2280 = vmatmul.bf16.gmra.mxu0 %v2186
    %v2281 = vpop.f32.mrf.mxu0
    %v2282 = vadd.f32 0.0, %v2281
    %v2283 = vpop.f32.mrf.mxu0
    %2284 = vdwg.mxu0
    %v2285 = vadd.f32 %v2271, %v2282
    %v2286 = vxor.u32 %v2285, 2147483648
    %v2287 = vmul.f32 %v2286, 1.442695
    %v2288 = vpow.pop %v2287
    %v2289 = vadd.f32 %v2288, 1.0
    %v2290 = vrcp.pop %v2289
    %v2291 = vmul.f32 %v2289, %v2290
    %v2292 = vsub.f32 1.0, %v2291
    %v2293 = vmul.f32 %v2290, %v2292
    %v2294 = vadd.f32 %v2290, %v2293
    %vm2295 = vweird.f32 %v2289
    %vm2296 = vweird.f32 %v2290
    %vm2297 = vmor %vm2295, %vm2296
    %v2298 = vsel %vm2297, %v2290, %v2294
    %v2299 = vand.u32 2147483647, %v2289
    %vm2300 = vcmp.eq.f32.partialorder %v2299, 8.507059e+37
    %v2301 = vand.u32 %v2289, 2147483648
    %v2302 = vor.u32 1.1754944e-38, %v2301
    %v2303 = vsel %vm2300, %v2302, %v2298
    %v2304 = vmul.f32 1.0, %v2303
    %v2305 = vmul.f32 %v2254, %v2180
    %v2306 = vmul.f32 %v2220, %v2270
    %v2307 = vadd.f32 %v2305, %v2306
    %v2308 = vtanh.pop %v2307
    %v2309 = vmul.f32 %v2304, %v2308
    %v2310 = vpack.c.bf16 %v2309, %v2309
    %v2311 = vld [vmem:[%s1059] sm:$0x3]
    %v2313 = vsel %vm84, %v2310, 0
    %2315 = vmatpush.bf16.msra.mxu0 0
    %2316 = vmatpush.bf16.msra.mxu0 0
    %2317 = vmatpush.bf16.msra.mxu0 0
    %2318 = vmatpush.bf16.msra.mxu0 0
    %2319 = vmatpush.bf16.msra.mxu0 0
    %2320 = vmatpush.bf16.msra.mxu0 0
    %2321 = vmatpush.bf16.msra.mxu0 %v1514
    %2322 = vmatpush.bf16.msra.mxu0 %v1513
    %2323 = vmatmul.bf16.gmra.mxu0 %v2313
    %v2324 = vpop.f32.mrf.mxu0
    %v2325 = vadd.f32 0.0, %v2324
    %v2326 = vpop.f32.mrf.mxu0
    %2327 = vdwg.mxu0
    %v2328 = vadd.f32 %v2311, %v2325
    %v2329 = vxor.u32 %v2328, 2147483648
    %v2330 = vmul.f32 %v2329, 1.442695
    %v2331 = vpow.pop %v2330
    %v2332 = vadd.f32 %v2331, 1.0
    %v2333 = vrcp.pop %v2332
    %v2334 = vmul.f32 %v2332, %v2333
    %v2335 = vsub.f32 1.0, %v2334
    %v2336 = vmul.f32 %v2333, %v2335
    %v2337 = vadd.f32 %v2333, %v2336
    %vm2338 = vweird.f32 %v2332
    %vm2339 = vweird.f32 %v2333
    %vm2340 = vmor %vm2338, %vm2339
    %v2341 = vsel %vm2340, %v2333, %v2337
    %v2342 = vand.u32 2147483647, %v2332
    %vm2343 = vcmp.eq.f32.partialorder %v2342, 8.507059e+37
    %v2344 = vand.u32 %v2332, 2147483648
    %v2345 = vor.u32 1.1754944e-38, %v2344
    %v2346 = vsel %vm2343, %v2345, %v2341
    %v2347 = vmul.f32 1.0, %v2346
    %v2348 = vld [vmem:[%s1098] sm:$0x3]
    %2349 = vmatpush.bf16.msra.mxu0 0
    %2350 = vmatpush.bf16.msra.mxu0 0
    %2351 = vmatpush.bf16.msra.mxu0 0
    %2352 = vmatpush.bf16.msra.mxu0 0
    %2353 = vmatpush.bf16.msra.mxu0 0
    %2354 = vmatpush.bf16.msra.mxu0 0
    %2355 = vmatpush.bf16.msra.mxu0 %v1560
    %2356 = vmatpush.bf16.msra.mxu0 %v1559
    %2357 = vmatmul.bf16.gmra.mxu0 %v2313
    %v2358 = vpop.f32.mrf.mxu0
    %v2359 = vadd.f32 0.0, %v2358
    %v2360 = vpop.f32.mrf.mxu0
    %2361 = vdwg.mxu0
    %v2362 = vadd.f32 %v2348, %v2359
    %v2363 = vxor.u32 %v2362, 2147483648
    %v2364 = vmul.f32 %v2363, 1.442695
    %v2365 = vpow.pop %v2364
    %v2366 = vadd.f32 %v2365, 1.0
    %v2367 = vrcp.pop %v2366
    %v2368 = vmul.f32 %v2366, %v2367
    %v2369 = vsub.f32 1.0, %v2368
    %v2370 = vmul.f32 %v2367, %v2369
    %v2371 = vadd.f32 %v2367, %v2370
    %vm2372 = vweird.f32 %v2366
    %vm2373 = vweird.f32 %v2367
    %vm2374 = vmor %vm2372, %vm2373
    %v2375 = vsel %vm2374, %v2367, %v2371
    %v2376 = vand.u32 2147483647, %v2366
    %vm2377 = vcmp.eq.f32.partialorder %v2376, 8.507059e+37
    %v2378 = vand.u32 %v2366, 2147483648
    %v2379 = vor.u32 1.1754944e-38, %v2378
    %v2380 = vsel %vm2377, %v2379, %v2375
    %v2381 = vmul.f32 1.0, %v2380
    %v2382 = vld [vmem:[%s1134] sm:$0x3]
    %2383 = vmatpush.bf16.msra.mxu0 0
    %2384 = vmatpush.bf16.msra.mxu0 0
    %2385 = vmatpush.bf16.msra.mxu0 0
    %2386 = vmatpush.bf16.msra.mxu0 0
    %2387 = vmatpush.bf16.msra.mxu0 0
    %2388 = vmatpush.bf16.msra.mxu0 0
    %2389 = vmatpush.bf16.msra.mxu0 %v1606
    %2390 = vmatpush.bf16.msra.mxu0 %v1605
    %2391 = vmatmul.bf16.gmra.mxu0 %v2313
    %v2392 = vpop.f32.mrf.mxu0
    %v2393 = vadd.f32 0.0, %v2392
    %v2394 = vpop.f32.mrf.mxu0
    %2395 = vdwg.mxu0
    %v2396 = vadd.f32 %v2382, %v2393
    %v2397 = vtanh.pop %v2396
    %v2398 = vld [vmem:[%s1152] sm:$0x3]
    %2399 = vmatpush.bf16.msra.mxu0 0
    %2400 = vmatpush.bf16.msra.mxu0 0
    %2401 = vmatpush.bf16.msra.mxu0 0
    %2402 = vmatpush.bf16.msra.mxu0 0
    %2403 = vmatpush.bf16.msra.mxu0 0
    %2404 = vmatpush.bf16.msra.mxu0 0
    %2405 = vmatpush.bf16.msra.mxu0 %v1634
    %2406 = vmatpush.bf16.msra.mxu0 %v1633
    %2407 = vmatmul.bf16.gmra.mxu0 %v2313
    %v2408 = vpop.f32.mrf.mxu0
    %v2409 = vadd.f32 0.0, %v2408
    %v2410 = vpop.f32.mrf.mxu0
    %2411 = vdwg.mxu0
    %v2412 = vadd.f32 %v2398, %v2409
    %v2413 = vxor.u32 %v2412, 2147483648
    %v2414 = vmul.f32 %v2413, 1.442695
    %v2415 = vpow.pop %v2414
    %v2416 = vadd.f32 %v2415, 1.0
    %v2417 = vrcp.pop %v2416
    %v2418 = vmul.f32 %v2416, %v2417
    %v2419 = vsub.f32 1.0, %v2418
    %v2420 = vmul.f32 %v2417, %v2419
    %v2421 = vadd.f32 %v2417, %v2420
    %vm2422 = vweird.f32 %v2416
    %vm2423 = vweird.f32 %v2417
    %vm2424 = vmor %vm2422, %vm2423
    %v2425 = vsel %vm2424, %v2417, %v2421
    %v2426 = vand.u32 2147483647, %v2416
    %vm2427 = vcmp.eq.f32.partialorder %v2426, 8.507059e+37
    %v2428 = vand.u32 %v2416, 2147483648
    %v2429 = vor.u32 1.1754944e-38, %v2428
    %v2430 = vsel %vm2427, %v2429, %v2425
    %v2431 = vmul.f32 1.0, %v2430
    %v2432 = vmul.f32 %v2381, %v2307
    %v2433 = vmul.f32 %v2347, %v2397
    %v2434 = vadd.f32 %v2432, %v2433
    %v2435 = vtanh.pop %v2434
    %v2436 = vmul.f32 %v2431, %v2435
    %v2437 = vpack.c.bf16 %v2436, %v2436
    %v2438 = vld [vmem:[%s1195] sm:$0x3]
    %v2440 = vsel %vm84, %v2437, 0
    %2442 = vmatpush.bf16.msra.mxu0 0
    %2443 = vmatpush.bf16.msra.mxu0 0
    %2444 = vmatpush.bf16.msra.mxu0 0
    %2445 = vmatpush.bf16.msra.mxu0 0
    %2446 = vmatpush.bf16.msra.mxu0 0
    %2447 = vmatpush.bf16.msra.mxu0 0
    %2448 = vmatpush.bf16.msra.mxu0 %v1514
    %2449 = vmatpush.bf16.msra.mxu0 %v1513
    %2450 = vmatmul.bf16.gmra.mxu0 %v2440
    %v2451 = vpop.f32.mrf.mxu0
    %v2452 = vadd.f32 0.0, %v2451
    %v2453 = vpop.f32.mrf.mxu0
    %2454 = vdwg.mxu0
    %v2455 = vadd.f32 %v2438, %v2452
    %v2456 = vxor.u32 %v2455, 2147483648
    %v2457 = vmul.f32 %v2456, 1.442695
    %v2458 = vpow.pop %v2457
    %v2459 = vadd.f32 %v2458, 1.0
    %v2460 = vrcp.pop %v2459
    %v2461 = vmul.f32 %v2459, %v2460
    %v2462 = vsub.f32 1.0, %v2461
    %v2463 = vmul.f32 %v2460, %v2462
    %v2464 = vadd.f32 %v2460, %v2463
    %vm2465 = vweird.f32 %v2459
    %vm2466 = vweird.f32 %v2460
    %vm2467 = vmor %vm2465, %vm2466
    %v2468 = vsel %vm2467, %v2460, %v2464
    %v2469 = vand.u32 2147483647, %v2459
    %vm2470 = vcmp.eq.f32.partialorder %v2469, 8.507059e+37
    %v2471 = vand.u32 %v2459, 2147483648
    %v2472 = vor.u32 1.1754944e-38, %v2471
    %v2473 = vsel %vm2470, %v2472, %v2468
    %v2474 = vmul.f32 1.0, %v2473
    %v2475 = vld [vmem:[%s1234] sm:$0x3]
    %2476 = vmatpush.bf16.msra.mxu0 0
    %2477 = vmatpush.bf16.msra.mxu0 0
    %2478 = vmatpush.bf16.msra.mxu0 0
    %2479 = vmatpush.bf16.msra.mxu0 0
    %2480 = vmatpush.bf16.msra.mxu0 0
    %2481 = vmatpush.bf16.msra.mxu0 0
    %2482 = vmatpush.bf16.msra.mxu0 %v1560
    %2483 = vmatpush.bf16.msra.mxu0 %v1559
    %2484 = vmatmul.bf16.gmra.mxu0 %v2440
    %v2485 = vpop.f32.mrf.mxu0
    %v2486 = vadd.f32 0.0, %v2485
    %v2487 = vpop.f32.mrf.mxu0
    %2488 = vdwg.mxu0
    %v2489 = vadd.f32 %v2475, %v2486
    %v2490 = vxor.u32 %v2489, 2147483648
    %v2491 = vmul.f32 %v2490, 1.442695
    %v2492 = vpow.pop %v2491
    %v2493 = vadd.f32 %v2492, 1.0
    %v2494 = vrcp.pop %v2493
    %v2495 = vmul.f32 %v2493, %v2494
    %v2496 = vsub.f32 1.0, %v2495
    %v2497 = vmul.f32 %v2494, %v2496
    %v2498 = vadd.f32 %v2494, %v2497
    %vm2499 = vweird.f32 %v2493
    %vm2500 = vweird.f32 %v2494
    %vm2501 = vmor %vm2499, %vm2500
    %v2502 = vsel %vm2501, %v2494, %v2498
    %v2503 = vand.u32 2147483647, %v2493
    %vm2504 = vcmp.eq.f32.partialorder %v2503, 8.507059e+37
    %v2505 = vand.u32 %v2493, 2147483648
    %v2506 = vor.u32 1.1754944e-38, %v2505
    %v2507 = vsel %vm2504, %v2506, %v2502
    %v2508 = vmul.f32 1.0, %v2507
    %v2509 = vld [vmem:[%s1270] sm:$0x3]
    %2510 = vmatpush.bf16.msra.mxu0 0
    %2511 = vmatpush.bf16.msra.mxu0 0
    %2512 = vmatpush.bf16.msra.mxu0 0
    %2513 = vmatpush.bf16.msra.mxu0 0
    %2514 = vmatpush.bf16.msra.mxu0 0
    %2515 = vmatpush.bf16.msra.mxu0 0
    %2516 = vmatpush.bf16.msra.mxu0 %v1606
    %2517 = vmatpush.bf16.msra.mxu0 %v1605
    %2518 = vmatmul.bf16.gmra.mxu0 %v2440
    %v2519 = vpop.f32.mrf.mxu0
    %v2520 = vadd.f32 0.0, %v2519
    %v2521 = vpop.f32.mrf.mxu0
    %2522 = vdwg.mxu0
    %v2523 = vadd.f32 %v2509, %v2520
    %v2524 = vtanh.pop %v2523
    %v2525 = vld [vmem:[%s1288] sm:$0x3]
    %2526 = vmatpush.bf16.msra.mxu0 0
    %2527 = vmatpush.bf16.msra.mxu0 0
    %2528 = vmatpush.bf16.msra.mxu0 0
    %2529 = vmatpush.bf16.msra.mxu0 0
    %2530 = vmatpush.bf16.msra.mxu0 0
    %2531 = vmatpush.bf16.msra.mxu0 0
    %2532 = vmatpush.bf16.msra.mxu0 %v1634
    %2533 = vmatpush.bf16.msra.mxu0 %v1633
    %2534 = vmatmul.bf16.gmra.mxu0 %v2440
    %v2535 = vpop.f32.mrf.mxu0
    %v2536 = vadd.f32 0.0, %v2535
    %v2537 = vpop.f32.mrf.mxu0
    %2538 = vdwg.mxu0
    %v2539 = vadd.f32 %v2525, %v2536
    %v2540 = vxor.u32 %v2539, 2147483648
    %v2541 = vmul.f32 %v2540, 1.442695
    %v2542 = vpow.pop %v2541
    %v2543 = vadd.f32 %v2542, 1.0
    %v2544 = vrcp.pop %v2543
    %v2545 = vmul.f32 %v2543, %v2544
    %v2546 = vsub.f32 1.0, %v2545
    %v2547 = vmul.f32 %v2544, %v2546
    %v2548 = vadd.f32 %v2544, %v2547
    %vm2549 = vweird.f32 %v2543
    %vm2550 = vweird.f32 %v2544
    %vm2551 = vmor %vm2549, %vm2550
    %v2552 = vsel %vm2551, %v2544, %v2548
    %v2553 = vand.u32 2147483647, %v2543
    %vm2554 = vcmp.eq.f32.partialorder %v2553, 8.507059e+37
    %v2555 = vand.u32 %v2543, 2147483648
    %v2556 = vor.u32 1.1754944e-38, %v2555
    %v2557 = vsel %vm2554, %v2556, %v2552
    %v2558 = vmul.f32 1.0, %v2557
    %v2559 = vmul.f32 %v2508, %v2434
    %v2560 = vmul.f32 %v2474, %v2524
    %v2561 = vadd.f32 %v2559, %v2560
    %v2562 = vtanh.pop %v2561
    %v2563 = vmul.f32 %v2558, %v2562
    %s2564 = scalar_lea.vmem [#allocation7], 2
    %2565 = vst.msk [vmem:[%s2564] sm:$0x3] %vm376, %v2563
    %s2566 = scalar_lea.vmem [#allocation8], 2
    %2567 = vst.msk [vmem:[%s2566] sm:$0x3] %vm376, %v2561
    // Predicated region
    $region34: #{encoder_forward.1} parent=1 // pred_check
      _
    $region35: #{encoder_forward.1} parent=1 // pred_check_branch
      %2569 = sbr.rel (0) target = $region37
    $region36: #{encoder_forward.1} parent=1 // pred_region
      %2571 = vsyncadd [#allocation6], 0
      %s2572 = sshll.u32 [#allocation7], 4
      %s2573 = int_to_ptr.vmem [resolvable:$true] %s2572
      %s2574 = sshll.u32 %s7, 4
      %s2575 = int_to_ptr.hbm [resolvable:$true] %s2574
      %2580 = dma.vmem_to_hbm [thread:$0]  %s2573, 64, %s2575, [#allocation6], 32, 32, 2
    $region37: #{encoder_forward.1} parent=1 // pred_fallthru
      _
    // Predicated region
    $region38: #{encoder_forward.1} parent=1 // pred_check
      _
    $region39: #{encoder_forward.1} parent=1 // pred_check_branch
      %2582 = sbr.rel (0) target = $region41
    $region40: #{encoder_forward.1} parent=1 // pred_region
      %2584 = vsyncadd [#allocation9], 0
      %s2585 = sshll.u32 [#allocation8], 4
      %s2586 = int_to_ptr.vmem [resolvable:$true] %s2585
      %s2587 = sshll.u32 %s8, 4
      %s2588 = int_to_ptr.hbm [resolvable:$true] %s2587
      %2593 = dma.vmem_to_hbm [thread:$0]  %s2586, 64, %s2588, [#allocation9], 32, 32, 2
    $region41: #{encoder_forward.1} parent=1 // pred_fallthru
      _
    // Predicated region
    $region42: #{encoder_forward.1} parent=1 // pred_check
      _
    $region43: #{encoder_forward.1} parent=1 // pred_check_branch
      %2595 = sbr.rel (0) target = $region45
    $region44: #{encoder_forward.1} parent=1 // pred_region
      %2597 = dma.done [#allocation6], 64
    $region45: #{encoder_forward.1} parent=1 // pred_fallthru
      _
    // Predicated region
    $region46: #{encoder_forward.1} parent=1 // pred_check
      _
    $region47: #{encoder_forward.1} parent=1 // pred_check_branch
      %2599 = sbr.rel (0) target = $region49
    $region48: #{encoder_forward.1} parent=1 // pred_region
      %2601 = dma.done [#allocation9], 64
    $region49: #{encoder_forward.1} parent=1 // pred_fallthru
      _
    %2602 = vsyncpa [#allocation5], 1
    %2603 = vsyncpa [#allocation6], 1
    %2604 = vsyncpa [#allocation9], 1

</llo_original>
